<compile_context>
chip_gen: v5e
topology: v5e:2x2
jax: 0.10.0
libtpu: 0.0.40
codegen_flags: <defaults>
</compile_context>

<pallas_src>
import functools
import math

import jax
import jax.numpy as jnp
from jax.experimental import pallas as pl
from jax.experimental.pallas import tpu as pltpu

F32 = jnp.float32
BF16 = jnp.bfloat16

_CP = pltpu.CompilerParams(dimension_semantics=("parallel",),
                           vmem_limit_bytes=48 * 1024 * 1024)


# --------------------------------------------------------------------------
# in-kernel helpers (operate on values, not refs)
# --------------------------------------------------------------------------
def _gn(x, m, gamma, beta, inv_count, eps, silu):
    """GroupNorm over (L, C) with group one-hot m (C, G); optional fused SiLU.

    Centered two-pass variance (no E[x^2]-mean^2 cancellation); stats in f32.
    """
    ch_sum = jnp.sum(x, axis=0, keepdims=True)                           # (1,C)
    g_mean = jnp.dot(ch_sum, m, preferred_element_type=F32) * inv_count  # (1,G)
    mean_c = jax.lax.dot_general(g_mean, m, (((1,), (1,)), ((), ())),
                                 preferred_element_type=F32)             # (1,C)
    xc = x - mean_c
    ch_sq = jnp.sum(xc * xc, axis=0, keepdims=True)                      # (1,C)
    g_var = jnp.dot(ch_sq, m, preferred_element_type=F32) * inv_count    # (1,G)
    var_c = jax.lax.dot_general(g_var, m, (((1,), (1,)), ((), ())),
                                preferred_element_type=F32)              # (1,C)
    y = xc * jax.lax.rsqrt(var_c + eps)
    y = y * gamma + beta
    if silu:
        y = y * (1.0 / (1.0 + jnp.exp(-y)))
    return y


def _conv_same(h, w_flat, bias, k_taps, pad):
    """Stride-1 'same' conv1d as one im2col matmul.

    h: (L, C_in) f32; w_flat: (K*C_in, C_out) bf16; bias: (1, C_out) f32.
    Padding is done in-kernel by concatenating zero rows (no glue jnp.pad).
    """
    l, c = h.shape
    if pad:
        z = jnp.zeros((pad, c), h.dtype)
        hp = jnp.concatenate([z, h, z], axis=0)
    else:
        hp = h
    if k_taps == 1:
        x_col = hp
    else:
        x_col = jnp.concatenate([hp[k:k + l, :] for k in range(k_taps)], axis=1)
    return jnp.dot(x_col.astype(BF16), w_flat,
                   preferred_element_type=F32) + bias


def _attn_one(x, m, gg, gb, wqkv, bqkv, wproj, bproj, n_heads, head_ch,
              inv_count, eps):
    """One AttentionBlock on a single sample: GN -> qkv 1x1 -> MHA -> proj
    -> residual add.  x: (T, C) f32; wqkv: (C, 3C) bf16 with column layout
    [head, (q|k|v), head_ch]; wproj: (H, head_ch, C) bf16."""
    xn = _gn(x, m, gg, gb, inv_count, eps, silu=False)
    qkv = jnp.dot(xn.astype(BF16), wqkv,
                  preferred_element_type=F32) + bqkv            # (T, 3C) f32
    scale = 1.0 / math.sqrt(math.sqrt(head_ch))
    qs, ks, vs = [], [], []
    for hh in range(n_heads):
        base = hh * 3 * head_ch
        qs.append(qkv[:, base:base + head_ch])
        ks.append(qkv[:, base + head_ch:base + 2 * head_ch])
        vs.append(qkv[:, base + 2 * head_ch:base + 3 * head_ch])
    q = jnp.stack(qs, axis=0) * scale                            # (H, T, ch)
    k = jnp.stack(ks, axis=0) * scale
    v = jnp.stack(vs, axis=0)
    # batched multi-head attention (single einsum per stage, not a head loop)
    s = jnp.einsum('htc,hsc->hts', q.astype(BF16), k.astype(BF16),
                   preferred_element_type=F32)                   # (H, T, T)
    s = s - jnp.max(s, axis=-1, keepdims=True)
    p = jnp.exp(s)                                               # softmax f32
    p = p / jnp.sum(p, axis=-1, keepdims=True)
    a = jnp.einsum('hts,hsc->htc', p.astype(BF16), v.astype(BF16),
                   preferred_element_type=F32)                   # (H, T, ch)
    # output projection accumulated per head (no concatenate/transpose)
    out = jnp.zeros(x.shape, F32) + bproj
    for hh in range(n_heads):
        out = out + jnp.dot(a[hh].astype(BF16), wproj[hh],
                            preferred_element_type=F32)
    return x + out                                               # residual


# --------------------------------------------------------------------------
# kernels
# --------------------------------------------------------------------------
def _level_kernel(x_ref, *rest, has_init, init_k, init_pad, n_res, k_taps,
                  pad, inv_count, eps, down_k, down_pad, stride):
    """One depth level: [init conv] -> n_res ResBlocks -> stride-2 downsample."""
    it = iter(rest)
    x = x_ref[...]
    if has_init:
        wi_ref = next(it)
        bi_ref = next(it)
        h = _conv_same(x, wi_ref[...], bi_ref[...], init_k, init_pad)
    else:
        h = x
    m = next(it)[...]
    g1_ref = next(it); b1_ref = next(it); w1_ref = next(it); c1b_ref = next(it)
    g2_ref = next(it); b2_ref = next(it); w2_ref = next(it); c2b_ref = next(it)
    for r in range(n_res):
        t = _gn(h, m, g1_ref[r], b1_ref[r], inv_count, eps, silu=True)
        t = _conv_same(t, w1_ref[r], c1b_ref[r], k_taps, pad)
        t = _gn(t, m, g2_ref[r], b2_ref[r], inv_count, eps, silu=True)
        # dropout p=0 -> identity
        t = _conv_same(t, w2_ref[r], c2b_ref[r], k_taps, pad)
        h = h + t                                      # fused residual add
    wd_ref = next(it)
    bd_ref = next(it)
    o_ref = next(it)
    # Downsample: full 'same' conv via im2col, then in-kernel stride subsample
    # starting at padded index 0 (matches nn.Conv1d(stride=2, padding=2)) via
    # an exact 0/1 selection matmul, so only L/stride rows go back to HBM.
    full = _conv_same(h, wd_ref[...], bd_ref[...], down_k, down_pad)
    l_out = o_ref.shape[0]
    l_full = full.shape[0]
    rows = jax.lax.broadcasted_iota(jnp.int32, (l_out, l_full), 0)
    cols = jax.lax.broadcasted_iota(jnp.int32, (l_out, l_full), 1)
    sel = (cols == stride * rows).astype(F32)
    o_ref[...] = jnp.dot(sel, full, preferred_element_type=F32)


def _final_attn_head_kernel(x_ref, mf_ref, gf_ref, bf_ref, wf_ref, cbf_ref,
                            ma_ref, gg_ref, gb_ref, wqkv_ref, bqkv_ref,
                            wproj_ref, bproj_ref, wh_ref, bh_ref, o_ref, *,
                            n_attn, n_heads, head_ch, inv_count_f,
                            inv_count_a, eps):
    """final GN+SiLU+1x1 conv -> all attention blocks -> row 0 -> classifier."""
    x = x_ref[...]
    h = _gn(x, mf_ref[...], gf_ref[...], bf_ref[...], inv_count_f, eps,
            silu=True)
    h = jnp.dot(h.astype(BF16), wf_ref[...],
                preferred_element_type=F32) + cbf_ref[...]       # (T, emb)
    ma = ma_ref[...]
    for a in range(n_attn):
        h = _attn_one(h, ma, gg_ref[a], gb_ref[a], wqkv_ref[a], bqkv_ref[a],
                      wproj_ref[a], bproj_ref[a], n_heads, head_ch,
                      inv_count_a, eps)
    # classifier head on position 0 only (== torch h[:, :, 0] then nn.Linear);
    # keep the tiny head matmul in f32.
    o_ref[...] = (jnp.dot(h[0:1, :], wh_ref[...], preferred_element_type=F32)
                  + bh_ref[...])


# --------------------------------------------------------------------------
# wrappers
# --------------------------------------------------------------------------
def _group_onehot(c, groups):
    cg = c // groups
    return (jnp.arange(c)[:, None] // cg ==
            jnp.arange(groups)[None, :]).astype(F32)


def level_block(x, lvl, init=None):
    """One depth level of the encoder trunk as a single pallas_call."""
    n, l, c_in = x.shape
    ch = lvl['ch']
    groups = lvl['groups']
    cg = ch // groups
    m = _group_onehot(ch, groups)
    k = lvl['k']
    pad = (k - 1) // 2
    n_res = lvl['w1'].shape[0]
    down_k, down_pad, stride = 5, 2, 2
    l_out = (l + 2 * down_pad - down_k) // stride + 1
    c_out = lvl['wd'].shape[1]

    kern = functools.partial(
        _level_kernel, has_init=init is not None, init_k=3, init_pad=1,
        n_res=n_res, k_taps=k, pad=pad, inv_count=1.0 / float(l * cg),
        eps=1e-5, down_k=down_k, down_pad=down_pad, stride=stride)

    in_specs = [pl.BlockSpec((None, l, c_in), lambda i: (i, 0, 0))]
    args = [x]
    if init is not None:
        in_specs += [pl.BlockSpec(init['w'].shape, lambda i: (0, 0)),
                     pl.BlockSpec((1, ch), lambda i: (0, 0))]
        args += [init['w'], init['b'].reshape(1, ch)]
    in_specs.append(pl.BlockSpec((ch, groups), lambda i: (0, 0)))
    args.append(m)
    for name in ('g1', 'b1', 'w1', 'c1b', 'g2', 'b2', 'w2', 'c2b'):
        arr = lvl[name]                       # all stacked arrays are 3-D
        in_specs.append(pl.BlockSpec(arr.shape, lambda i: (0, 0, 0)))
        args.append(arr)
    in_specs += [pl.BlockSpec(lvl['wd'].shape, lambda i: (0, 0)),
                 pl.BlockSpec((1, c_out), lambda i: (0, 0))]
    args += [lvl['wd'], lvl['bd'].reshape(1, c_out)]

    return pl.pallas_call(
        kern,
        out_shape=jax.ShapeDtypeStruct((n, l_out, c_out), F32),
        grid=(n,),
        in_specs=in_specs,
        out_specs=pl.BlockSpec((None, l_out, c_out), lambda i: (i, 0, 0)),
        compiler_params=_CP,
    )(*args)


def final_attn_head(x, fin, attn, head, n_heads, head_ch):
    """final GN+SiLU+1x1 + all attention blocks + classifier head, fused."""
    n, l, c = x.shape
    emb = fin['w'].shape[1]
    gf = fin['groups']
    cgf = c // gf
    mf = _group_onehot(c, gf)
    ga = attn['groups']
    cga = emb // ga
    ma = _group_onehot(emb, ga)
    a_blocks = attn['wqkv'].shape[0]
    classes = head['w'].shape[1]

    kern = functools.partial(
        _final_attn_head_kernel, n_attn=a_blocks, n_heads=n_heads,
        head_ch=head_ch, inv_count_f=1.0 / float(l * cgf),
        inv_count_a=1.0 / float(l * cga), eps=1e-5)

    return pl.pallas_call(
        kern,
        out_shape=jax.ShapeDtypeStruct((n, 1, classes), F32),
        grid=(n,),
        in_specs=[
            pl.BlockSpec((None, l, c), lambda i: (i, 0, 0)),
            pl.BlockSpec((c, gf), lambda i: (0, 0)),
            pl.BlockSpec((1, c), lambda i: (0, 0)),
            pl.BlockSpec((1, c), lambda i: (0, 0)),
            pl.BlockSpec((c, emb), lambda i: (0, 0)),
            pl.BlockSpec((1, emb), lambda i: (0, 0)),
            pl.BlockSpec((emb, ga), lambda i: (0, 0)),
            pl.BlockSpec((a_blocks, 1, emb), lambda i: (0, 0, 0)),
            pl.BlockSpec((a_blocks, 1, emb), lambda i: (0, 0, 0)),
            pl.BlockSpec((a_blocks, emb, 3 * emb), lambda i: (0, 0, 0)),
            pl.BlockSpec((a_blocks, 1, 3 * emb), lambda i: (0, 0, 0)),
            pl.BlockSpec((a_blocks, n_heads, head_ch, emb),
                         lambda i: (0, 0, 0, 0)),
            pl.BlockSpec((a_blocks, 1, emb), lambda i: (0, 0, 0)),
            pl.BlockSpec((emb, classes), lambda i: (0, 0)),
            pl.BlockSpec((1, classes), lambda i: (0, 0)),
        ],
        out_specs=pl.BlockSpec((None, 1, classes), lambda i: (i, 0, 0)),
        compiler_params=_CP,
    )(x, mf, fin['g'].reshape(1, c), fin['b'].reshape(1, c), fin['w'],
      fin['bc'].reshape(1, emb), ma, attn['gg'], attn['gb'], attn['wqkv'],
      attn['bqkv'], attn['wproj'], attn['bproj'],
      head['w'], head['b'].reshape(1, classes))


# --------------------------------------------------------------------------
# parameter init (deterministic; mirrors the PyTorch __init__ shapes)
# --------------------------------------------------------------------------
def num_groups(channels):
    groups = 32
    if channels <= 16:
        groups = 8
    elif channels <= 64:
        groups = 16
    while channels % groups != 0:
        groups = groups // 2
    assert groups > 2
    return groups


def init_params(key, *, spec_dim, embedding_dim, base_channels, depth,
                resnet_blocks, attn_blocks, num_attn_heads, kernel_size,
                classes):
    keys = iter(jax.random.split(key, 1024))

    def nk():
        return next(keys)

    def conv_w_flat(k, cin, cout, scale=0.05):
        w = scale * jax.random.normal(nk(), (k, cin, cout), F32)
        return w.reshape(k * cin, cout).astype(BF16)

    def vec(c, scale=0.02):
        return scale * jax.random.normal(nk(), (c,), F32)

    p = {}
    p['init'] = dict(w=conv_w_flat(3, spec_dim, base_channels),
                     b=vec(base_channels))
    ch = base_channels
    k = kernel_size
    levels = []
    for _l in range(depth):
        r = resnet_blocks
        levels.append(dict(
            ch=ch, groups=num_groups(ch), k=k,
            g1=jnp.ones((r, 1, ch), F32), b1=jnp.zeros((r, 1, ch), F32),
            w1=jnp.stack([conv_w_flat(k, ch, ch) for _ in range(r)], 0),
            c1b=jnp.stack([vec(ch).reshape(1, ch) for _ in range(r)], 0),
            g2=jnp.ones((r, 1, ch), F32), b2=jnp.zeros((r, 1, ch), F32),
            # zero_module(conv) in out_layers
            w2=jnp.zeros((r, k * ch, ch), BF16),
            c2b=jnp.zeros((r, 1, ch), F32),
            # Downsample(use_conv=True, factor=2, ksize=5, pad=2)
            wd=conv_w_flat(5, ch, 2 * ch), bd=vec(2 * ch),
        ))
        ch *= 2
    p['levels'] = levels
    p['final'] = dict(
        groups=num_groups(ch),
        g=jnp.ones((ch,), F32), b=jnp.zeros((ch,), F32),
        w=(0.05 * jax.random.normal(nk(), (ch, embedding_dim), F32)).astype(BF16),
        bc=vec(embedding_dim))
    head_ch = embedding_dim // num_attn_heads
    a = attn_blocks
    p['attn'] = dict(
        groups=num_groups(embedding_dim),
        gg=jnp.ones((a, 1, embedding_dim), F32),
        gb=jnp.zeros((a, 1, embedding_dim), F32),
        wqkv=jnp.stack([(0.05 * jax.random.normal(
            nk(), (embedding_dim, 3 * embedding_dim), F32)).astype(BF16)
            for _ in range(a)], 0),
        bqkv=jnp.stack([vec(3 * embedding_dim).reshape(1, -1)
                        for _ in range(a)], 0),
        # zero_module(proj_out); rows pre-split per head: (A, H, head_ch, C)
        wproj=jnp.zeros((a, num_attn_heads, head_ch, embedding_dim), BF16),
        bproj=jnp.zeros((a, 1, embedding_dim), F32),
    )
    p['head'] = dict(w=0.05 * jax.random.normal(nk(), (embedding_dim, classes),
                                                F32),
                     b=vec(classes))
    p['num_heads'] = num_attn_heads
    p['head_ch'] = head_ch
    return p


# --------------------------------------------------------------------------
# forward (labels=None path -> logits)
# --------------------------------------------------------------------------
def forward(params, x):
    # x: (N, T, spec_dim)   [== PyTorch (N, spec_dim, T) transposed]
    h = x.astype(F32)
    for li, lvl in enumerate(params['levels']):
        h = level_block(h, lvl, init=params['init'] if li == 0 else None)
    logits3 = final_attn_head(h, params['final'], params['attn'],
                              params['head'], params['num_heads'],
                              params['head_ch'])
    return logits3[:, 0, :]
    # TODO(synk): the labels!=None cross-entropy-loss branch is not implemented
    # (forward with labels=None returns logits, which is what we reproduce).


if __name__ == "__main__":
    key = jax.random.PRNGKey(0)
    kx, kp = jax.random.split(key)
    N, T, SPEC = 2, 16, 16
    EMB, BASE = 32, 32
    DEPTH, RES_BLOCKS, ATTN_BLOCKS, HEADS, CLASSES = 2, 1, 2, 4, 5

    x = jax.random.normal(kx, (N, T, SPEC), F32)
    params = init_params(kp, spec_dim=SPEC, embedding_dim=EMB,
                         base_channels=BASE, depth=DEPTH,
                         resnet_blocks=RES_BLOCKS, attn_blocks=ATTN_BLOCKS,
                         num_attn_heads=HEADS, kernel_size=3, classes=CLASSES)

    logits = jax.jit(lambda inp: forward(params, inp))(x)
    jax.block_until_ready(logits)
    assert logits.shape == (N, CLASSES) and logits.dtype == F32
    print("KERNEL_OK")
</pallas_src>

<mosaic_0001>
module attributes {stable_mosaic.version = 11 : i64} {
  func.func @_level_kernel(%arg0: i32, %arg1: memref<1x8x64xf32, #tpu.memory_space<vmem>>, %arg2: memref<64x16xf32, #tpu.memory_space<vmem>>, %arg3: memref<1x1x64xf32, #tpu.memory_space<vmem>>, %arg4: memref<1x1x64xf32, #tpu.memory_space<vmem>>, %arg5: memref<1x192x64xbf16, #tpu.memory_space<vmem>>, %arg6: memref<1x1x64xf32, #tpu.memory_space<vmem>>, %arg7: memref<1x1x64xf32, #tpu.memory_space<vmem>>, %arg8: memref<1x1x64xf32, #tpu.memory_space<vmem>>, %arg9: memref<1x192x64xbf16, #tpu.memory_space<vmem>>, %arg10: memref<1x1x64xf32, #tpu.memory_space<vmem>>, %arg11: memref<320x128xbf16, #tpu.memory_space<vmem>>, %arg12: memref<1x128xf32, #tpu.memory_space<vmem>>, %arg13: memref<1x4x128xf32, #tpu.memory_space<vmem>>) attributes {dimension_semantics = [#tpu.dimension_semantics<parallel>], iteration_bounds = array<i64: 2>, scalar_prefetch = 0 : i64, scratch_operands = 0 : i64, tpu.core_type = #tpu.core_type<tc>, window_params = [{transform_indices = @transform_0, window_bounds = array<i64: 1, 8, 64>}, {pipeline_mode = #tpu.pipeline_mode<synchronous>, transform_indices = @transform_1, window_bounds = array<i64: 64, 16>}, {pipeline_mode = #tpu.pipeline_mode<synchronous>, transform_indices = @transform_2, window_bounds = array<i64: 1, 1, 64>}, {pipeline_mode = #tpu.pipeline_mode<synchronous>, transform_indices = @transform_3, window_bounds = array<i64: 1, 1, 64>}, {pipeline_mode = #tpu.pipeline_mode<synchronous>, transform_indices = @transform_4, window_bounds = array<i64: 1, 192, 64>}, {pipeline_mode = #tpu.pipeline_mode<synchronous>, transform_indices = @transform_5, window_bounds = array<i64: 1, 1, 64>}, {pipeline_mode = #tpu.pipeline_mode<synchronous>, transform_indices = @transform_6, window_bounds = array<i64: 1, 1, 64>}, {pipeline_mode = #tpu.pipeline_mode<synchronous>, transform_indices = @transform_7, window_bounds = array<i64: 1, 1, 64>}, {pipeline_mode = #tpu.pipeline_mode<synchronous>, transform_indices = @transform_8, window_bounds = array<i64: 1, 192, 64>}, {pipeline_mode = #tpu.pipeline_mode<synchronous>, transform_indices = @transform_9, window_bounds = array<i64: 1, 1, 64>}, {pipeline_mode = #tpu.pipeline_mode<synchronous>, transform_indices = @transform_10, window_bounds = array<i64: 320, 128>}, {pipeline_mode = #tpu.pipeline_mode<synchronous>, transform_indices = @transform_11, window_bounds = array<i64: 1, 128>}, {transform_indices = @transform_12, window_bounds = array<i64: 1, 4, 128>}]} {
    %c0 = arith.constant 0 : index
    %c0_0 = arith.constant 0 : index
    %c0_1 = arith.constant 0 : index
    %0 = vector.load %arg1[%c0, %c0_0, %c0_1] : memref<1x8x64xf32, #tpu.memory_space<vmem>>, vector<1x8x64xf32>
    %1 = vector.shape_cast %0 : vector<1x8x64xf32> to vector<8x64xf32>
    %c0_2 = arith.constant 0 : index
    %c0_3 = arith.constant 0 : index
    %2 = vector.load %arg2[%c0_2, %c0_3] : memref<64x16xf32, #tpu.memory_space<vmem>>, vector<64x16xf32>
    %c0_4 = arith.constant 0 : index
    %c0_5 = arith.constant 0 : index
    %c0_6 = arith.constant 0 : index
    %3 = vector.load %arg3[%c0_4, %c0_5, %c0_6] : memref<1x1x64xf32, #tpu.memory_space<vmem>>, vector<1x1x64xf32>
    %4 = vector.shape_cast %3 : vector<1x1x64xf32> to vector<1x64xf32>
    %c0_7 = arith.constant 0 : index
    %c0_8 = arith.constant 0 : index
    %c0_9 = arith.constant 0 : index
    %5 = vector.load %arg4[%c0_7, %c0_8, %c0_9] : memref<1x1x64xf32, #tpu.memory_space<vmem>>, vector<1x1x64xf32>
    %6 = vector.shape_cast %5 : vector<1x1x64xf32> to vector<1x64xf32>
    %cst = arith.constant dense<0.000000e+00> : vector<64xf32>
    %7 = vector.multi_reduction <add>, %1, %cst [0] : vector<8x64xf32> to vector<64xf32>
    %8 = vector.shape_cast %7 : vector<64xf32> to vector<1x64xf32>
    %cst_10 = arith.constant dense<0.000000e+00> : vector<1x16xf32>
    %9 = tpu.matmul %8, %2, %cst_10 {dimension_numbers = #tpu.dot_dimension_numbers<[1], [0], [0], [1], [0, 0, 1, 1], [], []>} : vector<1x64xf32>, vector<64x16xf32>, vector<1x16xf32> -> vector<1x16xf32>
    %cst_11 = arith.constant 3.125000e-02 : f32
    %10 = vector.broadcast %cst_11 : f32 to vector<1x16xf32>
    %11 = arith.mulf %9, %10 : vector<1x16xf32>
    %cst_12 = arith.constant dense<0.000000e+00> : vector<1x64xf32>
    %12 = tpu.matmul %11, %2, %cst_12 {dimension_numbers = #tpu.dot_dimension_numbers<[1], [1], [0], [0], [0, 0, 1, 0], [], []>} : vector<1x16xf32>, vector<64x16xf32>, vector<1x64xf32> -> vector<1x64xf32>
    %13 = vector.broadcast %12 : vector<1x64xf32> to vector<8x64xf32>
    %14 = arith.subf %1, %13 : vector<8x64xf32>
    %15 = arith.mulf %14, %14 : vector<8x64xf32>
    %cst_13 = arith.constant dense<0.000000e+00> : vector<64xf32>
    %16 = vector.multi_reduction <add>, %15, %cst_13 [0] : vector<8x64xf32> to vector<64xf32>
    %17 = vector.shape_cast %16 : vector<64xf32> to vector<1x64xf32>
    %cst_14 = arith.constant dense<0.000000e+00> : vector<1x16xf32>
    %18 = tpu.matmul %17, %2, %cst_14 {dimension_numbers = #tpu.dot_dimension_numbers<[1], [0], [0], [1], [0, 0, 1, 1], [], []>} : vector<1x64xf32>, vector<64x16xf32>, vector<1x16xf32> -> vector<1x16xf32>
    %cst_15 = arith.constant 3.125000e-02 : f32
    %19 = vector.broadcast %cst_15 : f32 to vector<1x16xf32>
    %20 = arith.mulf %18, %19 : vector<1x16xf32>
    %cst_16 = arith.constant dense<0.000000e+00> : vector<1x64xf32>
    %21 = tpu.matmul %20, %2, %cst_16 {dimension_numbers = #tpu.dot_dimension_numbers<[1], [1], [0], [0], [0, 0, 1, 0], [], []>} : vector<1x16xf32>, vector<64x16xf32>, vector<1x64xf32> -> vector<1x64xf32>
    %cst_17 = arith.constant 9.99999974E-6 : f32
    %22 = vector.broadcast %cst_17 : f32 to vector<1x64xf32>
    %23 = arith.addf %21, %22 : vector<1x64xf32>
    %24 = math.rsqrt %23 : vector<1x64xf32>
    %25 = vector.broadcast %24 : vector<1x64xf32> to vector<8x64xf32>
    %26 = arith.mulf %14, %25 : vector<8x64xf32>
    %27 = vector.broadcast %4 : vector<1x64xf32> to vector<8x64xf32>
    %28 = arith.mulf %26, %27 : vector<8x64xf32>
    %29 = vector.broadcast %6 : vector<1x64xf32> to vector<8x64xf32>
    %30 = arith.addf %28, %29 : vector<8x64xf32>
    %cst_18 = arith.constant 0.000000e+00 : f32
    %31 = vector.broadcast %cst_18 : f32 to vector<8x64xf32>
    %32 = arith.subf %31, %30 : vector<8x64xf32>
    %33 = math.exp %32 : vector<8x64xf32>
    %cst_19 = arith.constant 1.000000e+00 : f32
    %34 = vector.broadcast %cst_19 : f32 to vector<8x64xf32>
    %35 = arith.addf %34, %33 : vector<8x64xf32>
    %cst_20 = arith.constant 1.000000e+00 : f32
    %36 = vector.broadcast %cst_20 : f32 to vector<8x64xf32>
    %37 = arith.divf %36, %35 : vector<8x64xf32>
    %38 = arith.mulf %30, %37 : vector<8x64xf32>
    %c0_21 = arith.constant 0 : index
    %c0_22 = arith.constant 0 : index
    %c0_23 = arith.constant 0 : index
    %39 = vector.load %arg5[%c0_21, %c0_22, %c0_23] : memref<1x192x64xbf16, #tpu.memory_space<vmem>>, vector<1x192x64xbf16>
    %40 = vector.shape_cast %39 : vector<1x192x64xbf16> to vector<192x64xbf16>
    %c0_24 = arith.constant 0 : index
    %c0_25 = arith.constant 0 : index
    %c0_26 = arith.constant 0 : index
    %41 = vector.load %arg6[%c0_24, %c0_25, %c0_26] : memref<1x1x64xf32, #tpu.memory_space<vmem>>, vector<1x1x64xf32>
    %42 = vector.shape_cast %41 : vector<1x1x64xf32> to vector<1x64xf32>
    %cst_27 = arith.constant 0.000000e+00 : f32
    %43 = vector.broadcast %cst_27 : f32 to vector<1x64xf32>
    %44 = tpu.concatenate %43, %38, %43 in 0 : vector<1x64xf32>, vector<8x64xf32>, vector<1x64xf32> -> vector<10x64xf32>
    %45 = vector.extract_strided_slice %44 {offsets = [0, 0], sizes = [8, 64], strides = [1, 1]} : vector<10x64xf32> to vector<8x64xf32>
    %46 = vector.extract_strided_slice %44 {offsets = [1, 0], sizes = [8, 64], strides = [1, 1]} : vector<10x64xf32> to vector<8x64xf32>
    %47 = vector.extract_strided_slice %44 {offsets = [2, 0], sizes = [8, 64], strides = [1, 1]} : vector<10x64xf32> to vector<8x64xf32>
    %48 = tpu.concatenate %45, %46, %47 in 1 : vector<8x64xf32>, vector<8x64xf32>, vector<8x64xf32> -> vector<8x192xf32>
    %49 = arith.truncf %48 : vector<8x192xf32> to vector<8x192xbf16>
    %cst_28 = arith.constant dense<0.000000e+00> : vector<8x64xf32>
    %50 = tpu.matmul %49, %40, %cst_28 {dimension_numbers = #tpu.dot_dimension_numbers<[1], [0], [0], [1], [0, 0, 1, 1], [], []>} : vector<8x192xbf16>, vector<192x64xbf16>, vector<8x64xf32> -> vector<8x64xf32>
    %51 = vector.broadcast %42 : vector<1x64xf32> to vector<8x64xf32>
    %52 = arith.addf %50, %51 : vector<8x64xf32>
    %c0_29 = arith.constant 0 : index
    %c0_30 = arith.constant 0 : index
    %c0_31 = arith.constant 0 : index
    %53 = vector.load %arg7[%c0_29, %c0_30, %c0_31] : memref<1x1x64xf32, #tpu.memory_space<vmem>>, vector<1x1x64xf32>
    %54 = vector.shape_cast %53 : vector<1x1x64xf32> to vector<1x64xf32>
    %c0_32 = arith.constant 0 : index
    %c0_33 = arith.constant 0 : index
    %c0_34 = arith.constant 0 : index
    %55 = vector.load %arg8[%c0_32, %c0_33, %c0_34] : memref<1x1x64xf32, #tpu.memory_space<vmem>>, vector<1x1x64xf32>
    %56 = vector.shape_cast %55 : vector<1x1x64xf32> to vector<1x64xf32>
    %cst_35 = arith.constant dense<0.000000e+00> : vector<64xf32>
    %57 = vector.multi_reduction <add>, %52, %cst_35 [0] : vector<8x64xf32> to vector<64xf32>
    %58 = vector.shape_cast %57 : vector<64xf32> to vector<1x64xf32>
    %cst_36 = arith.constant dense<0.000000e+00> : vector<1x16xf32>
    %59 = tpu.matmul %58, %2, %cst_36 {dimension_numbers = #tpu.dot_dimension_numbers<[1], [0], [0], [1], [0, 0, 1, 1], [], []>} : vector<1x64xf32>, vector<64x16xf32>, vector<1x16xf32> -> vector<1x16xf32>
    %cst_37 = arith.constant 3.125000e-02 : f32
    %60 = vector.broadcast %cst_37 : f32 to vector<1x16xf32>
    %61 = arith.mulf %59, %60 : vector<1x16xf32>
    %cst_38 = arith.constant dense<0.000000e+00> : vector<1x64xf32>
    %62 = tpu.matmul %61, %2, %cst_38 {dimension_numbers = #tpu.dot_dimension_numbers<[1], [1], [0], [0], [0, 0, 1, 0], [], []>} : vector<1x16xf32>, vector<64x16xf32>, vector<1x64xf32> -> vector<1x64xf32>
    %63 = vector.broadcast %62 : vector<1x64xf32> to vector<8x64xf32>
    %64 = arith.subf %52, %63 : vector<8x64xf32>
    %65 = arith.mulf %64, %64 : vector<8x64xf32>
    %cst_39 = arith.constant dense<0.000000e+00> : vector<64xf32>
    %66 = vector.multi_reduction <add>, %65, %cst_39 [0] : vector<8x64xf32> to vector<64xf32>
    %67 = vector.shape_cast %66 : vector<64xf32> to vector<1x64xf32>
    %cst_40 = arith.constant dense<0.000000e+00> : vector<1x16xf32>
    %68 = tpu.matmul %67, %2, %cst_40 {dimension_numbers = #tpu.dot_dimension_numbers<[1], [0], [0], [1], [0, 0, 1, 1], [], []>} : vector<1x64xf32>, vector<64x16xf32>, vector<1x16xf32> -> vector<1x16xf32>
    %cst_41 = arith.constant 3.125000e-02 : f32
    %69 = vector.broadcast %cst_41 : f32 to vector<1x16xf32>
    %70 = arith.mulf %68, %69 : vector<1x16xf32>
    %cst_42 = arith.constant dense<0.000000e+00> : vector<1x64xf32>
    %71 = tpu.matmul %70, %2, %cst_42 {dimension_numbers = #tpu.dot_dimension_numbers<[1], [1], [0], [0], [0, 0, 1, 0], [], []>} : vector<1x16xf32>, vector<64x16xf32>, vector<1x64xf32> -> vector<1x64xf32>
    %cst_43 = arith.constant 9.99999974E-6 : f32
    %72 = vector.broadcast %cst_43 : f32 to vector<1x64xf32>
    %73 = arith.addf %71, %72 : vector<1x64xf32>
    %74 = math.rsqrt %73 : vector<1x64xf32>
    %75 = vector.broadcast %74 : vector<1x64xf32> to vector<8x64xf32>
    %76 = arith.mulf %64, %75 : vector<8x64xf32>
    %77 = vector.broadcast %54 : vector<1x64xf32> to vector<8x64xf32>
    %78 = arith.mulf %76, %77 : vector<8x64xf32>
    %79 = vector.broadcast %56 : vector<1x64xf32> to vector<8x64xf32>
    %80 = arith.addf %78, %79 : vector<8x64xf32>
    %cst_44 = arith.constant 0.000000e+00 : f32
    %81 = vector.broadcast %cst_44 : f32 to vector<8x64xf32>
    %82 = arith.subf %81, %80 : vector<8x64xf32>
    %83 = math.exp %82 : vector<8x64xf32>
    %cst_45 = arith.constant 1.000000e+00 : f32
    %84 = vector.broadcast %cst_45 : f32 to vector<8x64xf32>
    %85 = arith.addf %84, %83 : vector<8x64xf32>
    %cst_46 = arith.constant 1.000000e+00 : f32
    %86 = vector.broadcast %cst_46 : f32 to vector<8x64xf32>
    %87 = arith.divf %86, %85 : vector<8x64xf32>
    %88 = arith.mulf %80, %87 : vector<8x64xf32>
    %c0_47 = arith.constant 0 : index
    %c0_48 = arith.constant 0 : index
    %c0_49 = arith.constant 0 : index
    %89 = vector.load %arg9[%c0_47, %c0_48, %c0_49] : memref<1x192x64xbf16, #tpu.memory_space<vmem>>, vector<1x192x64xbf16>
    %90 = vector.shape_cast %89 : vector<1x192x64xbf16> to vector<192x64xbf16>
    %c0_50 = arith.constant 0 : index
    %c0_51 = arith.constant 0 : index
    %c0_52 = arith.constant 0 : index
    %91 = vector.load %arg10[%c0_50, %c0_51, %c0_52] : memref<1x1x64xf32, #tpu.memory_space<vmem>>, vector<1x1x64xf32>
    %92 = vector.shape_cast %91 : vector<1x1x64xf32> to vector<1x64xf32>
    %cst_53 = arith.constant 0.000000e+00 : f32
    %93 = vector.broadcast %cst_53 : f32 to vector<1x64xf32>
    %94 = tpu.concatenate %93, %88, %93 in 0 : vector<1x64xf32>, vector<8x64xf32>, vector<1x64xf32> -> vector<10x64xf32>
    %95 = vector.extract_strided_slice %94 {offsets = [0, 0], sizes = [8, 64], strides = [1, 1]} : vector<10x64xf32> to vector<8x64xf32>
    %96 = vector.extract_strided_slice %94 {offsets = [1, 0], sizes = [8, 64], strides = [1, 1]} : vector<10x64xf32> to vector<8x64xf32>
    %97 = vector.extract_strided_slice %94 {offsets = [2, 0], sizes = [8, 64], strides = [1, 1]} : vector<10x64xf32> to vector<8x64xf32>
    %98 = tpu.concatenate %95, %96, %97 in 1 : vector<8x64xf32>, vector<8x64xf32>, vector<8x64xf32> -> vector<8x192xf32>
    %99 = arith.truncf %98 : vector<8x192xf32> to vector<8x192xbf16>
    %cst_54 = arith.constant dense<0.000000e+00> : vector<8x64xf32>
    %100 = tpu.matmul %99, %90, %cst_54 {dimension_numbers = #tpu.dot_dimension_numbers<[1], [0], [0], [1], [0, 0, 1, 1], [], []>} : vector<8x192xbf16>, vector<192x64xbf16>, vector<8x64xf32> -> vector<8x64xf32>
    %101 = vector.broadcast %92 : vector<1x64xf32> to vector<8x64xf32>
    %102 = arith.addf %100, %101 : vector<8x64xf32>
    %103 = arith.addf %1, %102 : vector<8x64xf32>
    %c0_55 = arith.constant 0 : index
    %c0_56 = arith.constant 0 : index
    %104 = vector.load %arg11[%c0_55, %c0_56] : memref<320x128xbf16, #tpu.memory_space<vmem>>, vector<320x128xbf16>
    %c0_57 = arith.constant 0 : index
    %c0_58 = arith.constant 0 : index
    %105 = vector.load %arg12[%c0_57, %c0_58] : memref<1x128xf32, #tpu.memory_space<vmem>>, vector<1x128xf32>
    %cst_59 = arith.constant 0.000000e+00 : f32
    %106 = vector.broadcast %cst_59 : f32 to vector<2x64xf32>
    %107 = tpu.concatenate %106, %103, %106 in 0 : vector<2x64xf32>, vector<8x64xf32>, vector<2x64xf32> -> vector<12x64xf32>
    %108 = vector.extract_strided_slice %107 {offsets = [0, 0], sizes = [8, 64], strides = [1, 1]} : vector<12x64xf32> to vector<8x64xf32>
    %109 = vector.extract_strided_slice %107 {offsets = [1, 0], sizes = [8, 64], strides = [1, 1]} : vector<12x64xf32> to vector<8x64xf32>
    %110 = vector.extract_strided_slice %107 {offsets = [2, 0], sizes = [8, 64], strides = [1, 1]} : vector<12x64xf32> to vector<8x64xf32>
    %111 = vector.extract_strided_slice %107 {offsets = [3, 0], sizes = [8, 64], strides = [1, 1]} : vector<12x64xf32> to vector<8x64xf32>
    %112 = vector.extract_strided_slice %107 {offsets = [4, 0], sizes = [8, 64], strides = [1, 1]} : vector<12x64xf32> to vector<8x64xf32>
    %113 = tpu.concatenate %108, %109, %110, %111, %112 in 1 : vector<8x64xf32>, vector<8x64xf32>, vector<8x64xf32>, vector<8x64xf32>, vector<8x64xf32> -> vector<8x320xf32>
    %114 = arith.truncf %113 : vector<8x320xf32> to vector<8x320xbf16>
    %cst_60 = arith.constant dense<0.000000e+00> : vector<8x128xf32>
    %115 = tpu.matmul %114, %104, %cst_60 {dimension_numbers = #tpu.dot_dimension_numbers<[1], [0], [0], [1], [0, 0, 1, 1], [], []>} : vector<8x320xbf16>, vector<320x128xbf16>, vector<8x128xf32> -> vector<8x128xf32>
    %116 = vector.broadcast %105 : vector<1x128xf32> to vector<8x128xf32>
    %117 = arith.addf %115, %116 : vector<8x128xf32>
    %118 = tpu.iota {dimensions = array<i32: 0>} : vector<4x8xi32>
    %119 = tpu.iota {dimensions = array<i32: 1>} : vector<4x8xi32>
    %c2_i32 = arith.constant 2 : i32
    %120 = vector.broadcast %c2_i32 : i32 to vector<4x8xi32>
    %121 = arith.muli %120, %118 : vector<4x8xi32>
    %122 = arith.cmpi eq, %119, %121 : vector<4x8xi32>
    %123 = arith.extui %122 : vector<4x8xi1> to vector<4x8xi32>
    %124 = arith.sitofp %123 : vector<4x8xi32> to vector<4x8xf32>
    %cst_61 = arith.constant dense<0.000000e+00> : vector<4x128xf32>
    %125 = tpu.matmul %124, %117, %cst_61 {dimension_numbers = #tpu.dot_dimension_numbers<[1], [0], [0], [1], [0, 0, 1, 1], [], []>} : vector<4x8xf32>, vector<8x128xf32>, vector<4x128xf32> -> vector<4x128xf32>
    %c0_62 = arith.constant 0 : index
    %c0_63 = arith.constant 0 : index
    %c0_64 = arith.constant 0 : index
    %126 = vector.load %arg13[%c0_62, %c0_63, %c0_64] : memref<1x4x128xf32, #tpu.memory_space<vmem>>, vector<1x4x128xf32>
    %127 = vector.shape_cast %126 : vector<1x4x128xf32> to vector<4x128xf32>
    %128 = vector.shape_cast %125 : vector<4x128xf32> to vector<1x4x128xf32>
    tpu.vector_store %arg13[%c0_62, %c0_63, %c0_64], %128 {strides = array<i32>} : memref<1x4x128xf32, #tpu.memory_space<vmem>>, vector<1x4x128xf32>,
    return
  }
  func.func @transform_0(%arg0: i32) -> (i32, i32, i32) {
    %c0_i32 = arith.constant 0 : i32
    %c0_i32_0 = arith.constant 0 : i32
    %c0_i32_1 = arith.constant 0 : i32
    return %arg0, %c0_i32, %c0_i32_0 : i32, i32, i32
  }
  func.func @transform_1(%arg0: i32) -> (i32, i32) {
    %c0_i32 = arith.constant 0 : i32
    %c0_i32_0 = arith.constant 0 : i32
    %c0_i32_1 = arith.constant 0 : i32
    return %c0_i32, %c0_i32_0 : i32, i32
  }
  func.func @transform_2(%arg0: i32) -> (i32, i32, i32) {
    %c0_i32 = arith.constant 0 : i32
    %c0_i32_0 = arith.constant 0 : i32
    %c0_i32_1 = arith.constant 0 : i32
    %c0_i32_2 = arith.constant 0 : i32
    return %c0_i32, %c0_i32_0, %c0_i32_1 : i32, i32, i32
  }
  func.func @transform_3(%arg0: i32) -> (i32, i32, i32) {
    %c0_i32 = arith.constant 0 : i32
    %c0_i32_0 = arith.constant 0 : i32
    %c0_i32_1 = arith.constant 0 : i32
    %c0_i32_2 = arith.constant 0 : i32
    return %c0_i32, %c0_i32_0, %c0_i32_1 : i32, i32, i32
  }
  func.func @transform_4(%arg0: i32) -> (i32, i32, i32) {
    %c0_i32 = arith.constant 0 : i32
    %c0_i32_0 = arith.constant 0 : i32
    %c0_i32_1 = arith.constant 0 : i32
    %c0_i32_2 = arith.constant 0 : i32
    return %c0_i32, %c0_i32_0, %c0_i32_1 : i32, i32, i32
  }
  func.func @transform_5(%arg0: i32) -> (i32, i32, i32) {
    %c0_i32 = arith.constant 0 : i32
    %c0_i32_0 = arith.constant 0 : i32
    %c0_i32_1 = arith.constant 0 : i32
    %c0_i32_2 = arith.constant 0 : i32
    return %c0_i32, %c0_i32_0, %c0_i32_1 : i32, i32, i32
  }
  func.func @transform_6(%arg0: i32) -> (i32, i32, i32) {
    %c0_i32 = arith.constant 0 : i32
    %c0_i32_0 = arith.constant 0 : i32
    %c0_i32_1 = arith.constant 0 : i32
    %c0_i32_2 = arith.constant 0 : i32
    return %c0_i32, %c0_i32_0, %c0_i32_1 : i32, i32, i32
  }
  func.func @transform_7(%arg0: i32) -> (i32, i32, i32) {
    %c0_i32 = arith.constant 0 : i32
    %c0_i32_0 = arith.constant 0 : i32
    %c0_i32_1 = arith.constant 0 : i32
    %c0_i32_2 = arith.constant 0 : i32
    return %c0_i32, %c0_i32_0, %c0_i32_1 : i32, i32, i32
  }
  func.func @transform_8(%arg0: i32) -> (i32, i32, i32) {
    %c0_i32 = arith.constant 0 : i32
    %c0_i32_0 = arith.constant 0 : i32
    %c0_i32_1 = arith.constant 0 : i32
    %c0_i32_2 = arith.constant 0 : i32
    return %c0_i32, %c0_i32_0, %c0_i32_1 : i32, i32, i32
  }
  func.func @transform_9(%arg0: i32) -> (i32, i32, i32) {
    %c0_i32 = arith.constant 0 : i32
    %c0_i32_0 = arith.constant 0 : i32
    %c0_i32_1 = arith.constant 0 : i32
    %c0_i32_2 = arith.constant 0 : i32
    return %c0_i32, %c0_i32_0, %c0_i32_1 : i32, i32, i32
  }
  func.func @transform_10(%arg0: i32) -> (i32, i32) {
    %c0_i32 = arith.constant 0 : i32
    %c0_i32_0 = arith.constant 0 : i32
    %c0_i32_1 = arith.constant 0 : i32
    return %c0_i32, %c0_i32_0 : i32, i32
  }
  func.func @transform_11(%arg0: i32) -> (i32, i32) {
    %c0_i32 = arith.constant 0 : i32
    %c0_i32_0 = arith.constant 0 : i32
    %c0_i32_1 = arith.constant 0 : i32
    return %c0_i32, %c0_i32_0 : i32, i32
  }
  func.func @transform_12(%arg0: i32) -> (i32, i32, i32) {
    %c0_i32 = arith.constant 0 : i32
    %c0_i32_0 = arith.constant 0 : i32
    %c0_i32_1 = arith.constant 0 : i32
    return %arg0, %c0_i32, %c0_i32_0 : i32, i32, i32
  }
}

module attributes {stable_mosaic.version = 11 : i64} {
  func.func @_level_kernel(%arg0: i32, %arg1: memref<1x16x16xf32, #tpu.memory_space<vmem>>, %arg2: memref<48x32xbf16, #tpu.memory_space<vmem>>, %arg3: memref<1x32xf32, #tpu.memory_space<vmem>>, %arg4: memref<32x16xf32, #tpu.memory_space<vmem>>, %arg5: memref<1x1x32xf32, #tpu.memory_space<vmem>>, %arg6: memref<1x1x32xf32, #tpu.memory_space<vmem>>, %arg7: memref<1x96x32xbf16, #tpu.memory_space<vmem>>, %arg8: memref<1x1x32xf32, #tpu.memory_space<vmem>>, %arg9: memref<1x1x32xf32, #tpu.memory_space<vmem>>, %arg10: memref<1x1x32xf32, #tpu.memory_space<vmem>>, %arg11: memref<1x96x32xbf16, #tpu.memory_space<vmem>>, %arg12: memref<1x1x32xf32, #tpu.memory_space<vmem>>, %arg13: memref<160x64xbf16, #tpu.memory_space<vmem>>, %arg14: memref<1x64xf32, #tpu.memory_space<vmem>>, %arg15: memref<1x8x64xf32, #tpu.memory_space<vmem>>) attributes {dimension_semantics = [#tpu.dimension_semantics<parallel>], iteration_bounds = array<i64: 2>, scalar_prefetch = 0 : i64, scratch_operands = 0 : i64, tpu.core_type = #tpu.core_type<tc>, window_params = [{transform_indices = @transform_0, window_bounds = array<i64: 1, 16, 16>}, {pipeline_mode = #tpu.pipeline_mode<synchronous>, transform_indices = @transform_1, window_bounds = array<i64: 48, 32>}, {pipeline_mode = #tpu.pipeline_mode<synchronous>, transform_indices = @transform_2, window_bounds = array<i64: 1, 32>}, {pipeline_mode = #tpu.pipeline_mode<synchronous>, transform_indices = @transform_3, window_bounds = array<i64: 32, 16>}, {pipeline_mode = #tpu.pipeline_mode<synchronous>, transform_indices = @transform_4, window_bounds = array<i64: 1, 1, 32>}, {pipeline_mode = #tpu.pipeline_mode<synchronous>, transform_indices = @transform_5, window_bounds = array<i64: 1, 1, 32>}, {pipeline_mode = #tpu.pipeline_mode<synchronous>, transform_indices = @transform_6, window_bounds = array<i64: 1, 96, 32>}, {pipeline_mode = #tpu.pipeline_mode<synchronous>, transform_indices = @transform_7, window_bounds = array<i64: 1, 1, 32>}, {pipeline_mode = #tpu.pipeline_mode<synchronous>, transform_indices = @transform_8, window_bounds = array<i64: 1, 1, 32>}, {pipeline_mode = #tpu.pipeline_mode<synchronous>, transform_indices = @transform_9, window_bounds = array<i64: 1, 1, 32>}, {pipeline_mode = #tpu.pipeline_mode<synchronous>, transform_indices = @transform_10, window_bounds = array<i64: 1, 96, 32>}, {pipeline_mode = #tpu.pipeline_mode<synchronous>, transform_indices = @transform_11, window_bounds = array<i64: 1, 1, 32>}, {pipeline_mode = #tpu.pipeline_mode<synchronous>, transform_indices = @transform_12, window_bounds = array<i64: 160, 64>}, {pipeline_mode = #tpu.pipeline_mode<synchronous>, transform_indices = @transform_13, window_bounds = array<i64: 1, 64>}, {transform_indices = @transform_14, window_bounds = array<i64: 1, 8, 64>}]} {
    %c0 = arith.constant 0 : index
    %c0_0 = arith.constant 0 : index
    %c0_1 = arith.constant 0 : index
    %0 = vector.load %arg1[%c0, %c0_0, %c0_1] : memref<1x16x16xf32, #tpu.memory_space<vmem>>, vector<1x16x16xf32>
    %1 = vector.shape_cast %0 : vector<1x16x16xf32> to vector<16x16xf32>
    %c0_2 = arith.constant 0 : index
    %c0_3 = arith.constant 0 : index
    %2 = vector.load %arg2[%c0_2, %c0_3] : memref<48x32xbf16, #tpu.memory_space<vmem>>, vector<48x32xbf16>
    %c0_4 = arith.constant 0 : index
    %c0_5 = arith.constant 0 : index
    %3 = vector.load %arg3[%c0_4, %c0_5] : memref<1x32xf32, #tpu.memory_space<vmem>>, vector<1x32xf32>
    %cst = arith.constant 0.000000e+00 : f32
    %4 = vector.broadcast %cst : f32 to vector<1x16xf32>
    %5 = tpu.concatenate %4, %1, %4 in 0 : vector<1x16xf32>, vector<16x16xf32>, vector<1x16xf32> -> vector<18x16xf32>
    %6 = vector.extract_strided_slice %5 {offsets = [0, 0], sizes = [16, 16], strides = [1, 1]} : vector<18x16xf32> to vector<16x16xf32>
    %7 = vector.extract_strided_slice %5 {offsets = [1, 0], sizes = [16, 16], strides = [1, 1]} : vector<18x16xf32> to vector<16x16xf32>
    %8 = vector.extract_strided_slice %5 {offsets = [2, 0], sizes = [16, 16], strides = [1, 1]} : vector<18x16xf32> to vector<16x16xf32>
    %9 = tpu.concatenate %6, %7, %8 in 1 : vector<16x16xf32>, vector<16x16xf32>, vector<16x16xf32> -> vector<16x48xf32>
    %10 = arith.truncf %9 : vector<16x48xf32> to vector<16x48xbf16>
    %cst_6 = arith.constant dense<0.000000e+00> : vector<16x32xf32>
    %11 = tpu.matmul %10, %2, %cst_6 {dimension_numbers = #tpu.dot_dimension_numbers<[1], [0], [0], [1], [0, 0, 1, 1], [], []>} : vector<16x48xbf16>, vector<48x32xbf16>, vector<16x32xf32> -> vector<16x32xf32>
    %12 = vector.broadcast %3 : vector<1x32xf32> to vector<16x32xf32>
    %13 = arith.addf %11, %12 : vector<16x32xf32>
    %c0_7 = arith.constant 0 : index
    %c0_8 = arith.constant 0 : index
    %14 = vector.load %arg4[%c0_7, %c0_8] : memref<32x16xf32, #tpu.memory_space<vmem>>, vector<32x16xf32>
    %c0_9 = arith.constant 0 : index
    %c0_10 = arith.constant 0 : index
    %c0_11 = arith.constant 0 : index
    %15 = vector.load %arg5[%c0_9, %c0_10, %c0_11] : memref<1x1x32xf32, #tpu.memory_space<vmem>>, vector<1x1x32xf32>
    %16 = vector.shape_cast %15 : vector<1x1x32xf32> to vector<1x32xf32>
    %c0_12 = arith.constant 0 : index
    %c0_13 = arith.constant 0 : index
    %c0_14 = arith.constant 0 : index
    %17 = vector.load %arg6[%c0_12, %c0_13, %c0_14] : memref<1x1x32xf32, #tpu.memory_space<vmem>>, vector<1x1x32xf32>
    %18 = vector.shape_cast %17 : vector<1x1x32xf32> to vector<1x32xf32>
    %cst_15 = arith.constant dense<0.000000e+00> : vector<32xf32>
    %19 = vector.multi_reduction <add>, %13, %cst_15 [0] : vector<16x32xf32> to vector<32xf32>
    %20 = vector.shape_cast %19 : vector<32xf32> to vector<1x32xf32>
    %cst_16 = arith.constant dense<0.000000e+00> : vector<1x16xf32>
    %21 = tpu.matmul %20, %14, %cst_16 {dimension_numbers = #tpu.dot_dimension_numbers<[1], [0], [0], [1], [0, 0, 1, 1], [], []>} : vector<1x32xf32>, vector<32x16xf32>, vector<1x16xf32> -> vector<1x16xf32>
    %cst_17 = arith.constant 3.125000e-02 : f32
    %22 = vector.broadcast %cst_17 : f32 to vector<1x16xf32>
    %23 = arith.mulf %21, %22 : vector<1x16xf32>
    %cst_18 = arith.constant dense<0.000000e+00> : vector<1x32xf32>
    %24 = tpu.matmul %23, %14, %cst_18 {dimension_numbers = #tpu.dot_dimension_numbers<[1], [1], [0], [0], [0, 0, 1, 0], [], []>} : vector<1x16xf32>, vector<32x16xf32>, vector<1x32xf32> -> vector<1x32xf32>
    %25 = vector.broadcast %24 : vector<1x32xf32> to vector<16x32xf32>
    %26 = arith.subf %13, %25 : vector<16x32xf32>
    %27 = arith.mulf %26, %26 : vector<16x32xf32>
    %cst_19 = arith.constant dense<0.000000e+00> : vector<32xf32>
    %28 = vector.multi_reduction <add>, %27, %cst_19 [0] : vector<16x32xf32> to vector<32xf32>
    %29 = vector.shape_cast %28 : vector<32xf32> to vector<1x32xf32>
    %cst_20 = arith.constant dense<0.000000e+00> : vector<1x16xf32>
    %30 = tpu.matmul %29, %14, %cst_20 {dimension_numbers = #tpu.dot_dimension_numbers<[1], [0], [0], [1], [0, 0, 1, 1], [], []>} : vector<1x32xf32>, vector<32x16xf32>, vector<1x16xf32> -> vector<1x16xf32>
    %cst_21 = arith.constant 3.125000e-02 : f32
    %31 = vector.broadcast %cst_21 : f32 to vector<1x16xf32>
    %32 = arith.mulf %30, %31 : vector<1x16xf32>
    %cst_22 = arith.constant dense<0.000000e+00> : vector<1x32xf32>
    %33 = tpu.matmul %32, %14, %cst_22 {dimension_numbers = #tpu.dot_dimension_numbers<[1], [1], [0], [0], [0, 0, 1, 0], [], []>} : vector<1x16xf32>, vector<32x16xf32>, vector<1x32xf32> -> vector<1x32xf32>
    %cst_23 = arith.constant 9.99999974E-6 : f32
    %34 = vector.broadcast %cst_23 : f32 to vector<1x32xf32>
    %35 = arith.addf %33, %34 : vector<1x32xf32>
    %36 = math.rsqrt %35 : vector<1x32xf32>
    %37 = vector.broadcast %36 : vector<1x32xf32> to vector<16x32xf32>
    %38 = arith.mulf %26, %37 : vector<16x32xf32>
    %39 = vector.broadcast %16 : vector<1x32xf32> to vector<16x32xf32>
    %40 = arith.mulf %38, %39 : vector<16x32xf32>
    %41 = vector.broadcast %18 : vector<1x32xf32> to vector<16x32xf32>
    %42 = arith.addf %40, %41 : vector<16x32xf32>
    %cst_24 = arith.constant 0.000000e+00 : f32
    %43 = vector.broadcast %cst_24 : f32 to vector<16x32xf32>
    %44 = arith.subf %43, %42 : vector<16x32xf32>
    %45 = math.exp %44 : vector<16x32xf32>
    %cst_25 = arith.constant 1.000000e+00 : f32
    %46 = vector.broadcast %cst_25 : f32 to vector<16x32xf32>
    %47 = arith.addf %46, %45 : vector<16x32xf32>
    %cst_26 = arith.constant 1.000000e+00 : f32
    %48 = vector.broadcast %cst_26 : f32 to vector<16x32xf32>
    %49 = arith.divf %48, %47 : vector<16x32xf32>
    %50 = arith.mulf %42, %49 : vector<16x32xf32>
    %c0_27 = arith.constant 0 : index
    %c0_28 = arith.constant 0 : index
    %c0_29 = arith.constant 0 : index
    %51 = vector.load %arg7[%c0_27, %c0_28, %c0_29] : memref<1x96x32xbf16, #tpu.memory_space<vmem>>, vector<1x96x32xbf16>
    %52 = vector.shape_cast %51 : vector<1x96x32xbf16> to vector<96x32xbf16>
    %c0_30 = arith.constant 0 : index
    %c0_31 = arith.constant 0 : index
    %c0_32 = arith.constant 0 : index
    %53 = vector.load %arg8[%c0_30, %c0_31, %c0_32] : memref<1x1x32xf32, #tpu.memory_space<vmem>>, vector<1x1x32xf32>
    %54 = vector.shape_cast %53 : vector<1x1x32xf32> to vector<1x32xf32>
    %cst_33 = arith.constant 0.000000e+00 : f32
    %55 = vector.broadcast %cst_33 : f32 to vector<1x32xf32>
    %56 = tpu.concatenate %55, %50, %55 in 0 : vector<1x32xf32>, vector<16x32xf32>, vector<1x32xf32> -> vector<18x32xf32>
    %57 = vector.extract_strided_slice %56 {offsets = [0, 0], sizes = [16, 32], strides = [1, 1]} : vector<18x32xf32> to vector<16x32xf32>
    %58 = vector.extract_strided_slice %56 {offsets = [1, 0], sizes = [16, 32], strides = [1, 1]} : vector<18x32xf32> to vector<16x32xf32>
    %59 = vector.extract_strided_slice %56 {offsets = [2, 0], sizes = [16, 32], strides = [1, 1]} : vector<18x32xf32> to vector<16x32xf32>
    %60 = tpu.concatenate %57, %58, %59 in 1 : vector<16x32xf32>, vector<16x32xf32>, vector<16x32xf32> -> vector<16x96xf32>
    %61 = arith.truncf %60 : vector<16x96xf32> to vector<16x96xbf16>
    %cst_34 = arith.constant dense<0.000000e+00> : vector<16x32xf32>
    %62 = tpu.matmul %61, %52, %cst_34 {dimension_numbers = #tpu.dot_dimension_numbers<[1], [0], [0], [1], [0, 0, 1, 1], [], []>} : vector<16x96xbf16>, vector<96x32xbf16>, vector<16x32xf32> -> vector<16x32xf32>
    %63 = vector.broadcast %54 : vector<1x32xf32> to vector<16x32xf32>
    %64 = arith.addf %62, %63 : vector<16x32xf32>
    %c0_35 = arith.constant 0 : index
    %c0_36 = arith.constant 0 : index
    %c0_37 = arith.constant 0 : index
    %65 = vector.load %arg9[%c0_35, %c0_36, %c0_37] : memref<1x1x32xf32, #tpu.memory_space<vmem>>, vector<1x1x32xf32>
    %66 = vector.shape_cast %65 : vector<1x1x32xf32> to vector<1x32xf32>
    %c0_38 = arith.constant 0 : index
    %c0_39 = arith.constant 0 : index
    %c0_40 = arith.constant 0 : index
    %67 = vector.load %arg10[%c0_38, %c0_39, %c0_40] : memref<1x1x32xf32, #tpu.memory_space<vmem>>, vector<1x1x32xf32>
    %68 = vector.shape_cast %67 : vector<1x1x32xf32> to vector<1x32xf32>
    %cst_41 = arith.constant dense<0.000000e+00> : vector<32xf32>
    %69 = vector.multi_reduction <add>, %64, %cst_41 [0] : vector<16x32xf32> to vector<32xf32>
    %70 = vector.shape_cast %69 : vector<32xf32> to vector<1x32xf32>
    %cst_42 = arith.constant dense<0.000000e+00> : vector<1x16xf32>
    %71 = tpu.matmul %70, %14, %cst_42 {dimension_numbers = #tpu.dot_dimension_numbers<[1], [0], [0], [1], [0, 0, 1, 1], [], []>} : vector<1x32xf32>, vector<32x16xf32>, vector<1x16xf32> -> vector<1x16xf32>
    %cst_43 = arith.constant 3.125000e-02 : f32
    %72 = vector.broadcast %cst_43 : f32 to vector<1x16xf32>
    %73 = arith.mulf %71, %72 : vector<1x16xf32>
    %cst_44 = arith.constant dense<0.000000e+00> : vector<1x32xf32>
    %74 = tpu.matmul %73, %14, %cst_44 {dimension_numbers = #tpu.dot_dimension_numbers<[1], [1], [0], [0], [0, 0, 1, 0], [], []>} : vector<1x16xf32>, vector<32x16xf32>, vector<1x32xf32> -> vector<1x32xf32>
    %75 = vector.broadcast %74 : vector<1x32xf32> to vector<16x32xf32>
    %76 = arith.subf %64, %75 : vector<16x32xf32>
    %77 = arith.mulf %76, %76 : vector<16x32xf32>
    %cst_45 = arith.constant dense<0.000000e+00> : vector<32xf32>
    %78 = vector.multi_reduction <add>, %77, %cst_45 [0] : vector<16x32xf32> to vector<32xf32>
    %79 = vector.shape_cast %78 : vector<32xf32> to vector<1x32xf32>
    %cst_46 = arith.constant dense<0.000000e+00> : vector<1x16xf32>
    %80 = tpu.matmul %79, %14, %cst_46 {dimension_numbers = #tpu.dot_dimension_numbers<[1], [0], [0], [1], [0, 0, 1, 1], [], []>} : vector<1x32xf32>, vector<32x16xf32>, vector<1x16xf32> -> vector<1x16xf32>
    %cst_47 = arith.constant 3.125000e-02 : f32
    %81 = vector.broadcast %cst_47 : f32 to vector<1x16xf32>
    %82 = arith.mulf %80, %81 : vector<1x16xf32>
    %cst_48 = arith.constant dense<0.000000e+00> : vector<1x32xf32>
    %83 = tpu.matmul %82, %14, %cst_48 {dimension_numbers = #tpu.dot_dimension_numbers<[1], [1], [0], [0], [0, 0, 1, 0], [], []>} : vector<1x16xf32>, vector<32x16xf32>, vector<1x32xf32> -> vector<1x32xf32>
    %cst_49 = arith.constant 9.99999974E-6 : f32
    %84 = vector.broadcast %cst_49 : f32 to vector<1x32xf32>
    %85 = arith.addf %83, %84 : vector<1x32xf32>
    %86 = math.rsqrt %85 : vector<1x32xf32>
    %87 = vector.broadcast %86 : vector<1x32xf32> to vector<16x32xf32>
    %88 = arith.mulf %76, %87 : vector<16x32xf32>
    %89 = vector.broadcast %66 : vector<1x32xf32> to vector<16x32xf32>
    %90 = arith.mulf %88, %89 : vector<16x32xf32>
    %91 = vector.broadcast %68 : vector<1x32xf32> to vector<16x32xf32>
    %92 = arith.addf %90, %91 : vector<16x32xf32>
    %cst_50 = arith.constant 0.000000e+00 : f32
    %93 = vector.broadcast %cst_50 : f32 to vector<16x32xf32>
    %94 = arith.subf %93, %92 : vector<16x32xf32>
    %95 = math.exp %94 : vector<16x32xf32>
    %cst_51 = arith.constant 1.000000e+00 : f32
    %96 = vector.broadcast %cst_51 : f32 to vector<16x32xf32>
    %97 = arith.addf %96, %95 : vector<16x32xf32>
    %cst_52 = arith.constant 1.000000e+00 : f32
    %98 = vector.broadcast %cst_52 : f32 to vector<16x32xf32>
    %99 = arith.divf %98, %97 : vector<16x32xf32>
    %100 = arith.mulf %92, %99 : vector<16x32xf32>
    %c0_53 = arith.constant 0 : index
    %c0_54 = arith.constant 0 : index
    %c0_55 = arith.constant 0 : index
    %101 = vector.load %arg11[%c0_53, %c0_54, %c0_55] : memref<1x96x32xbf16, #tpu.memory_space<vmem>>, vector<1x96x32xbf16>
    %102 = vector.shape_cast %101 : vector<1x96x32xbf16> to vector<96x32xbf16>
    %c0_56 = arith.constant 0 : index
    %c0_57 = arith.constant 0 : index
    %c0_58 = arith.constant 0 : index
    %103 = vector.load %arg12[%c0_56, %c0_57, %c0_58] : memref<1x1x32xf32, #tpu.memory_space<vmem>>, vector<1x1x32xf32>
    %104 = vector.shape_cast %103 : vector<1x1x32xf32> to vector<1x32xf32>
    %cst_59 = arith.constant 0.000000e+00 : f32
    %105 = vector.broadcast %cst_59 : f32 to vector<1x32xf32>
    %106 = tpu.concatenate %105, %100, %105 in 0 : vector<1x32xf32>, vector<16x32xf32>, vector<1x32xf32> -> vector<18x32xf32>
    %107 = vector.extract_strided_slice %106 {offsets = [0, 0], sizes = [16, 32], strides = [1, 1]} : vector<18x32xf32> to vector<16x32xf32>
    %108 = vector.extract_strided_slice %106 {offsets = [1, 0], sizes = [16, 32], strides = [1, 1]} : vector<18x32xf32> to vector<16x32xf32>
    %109 = vector.extract_strided_slice %106 {offsets = [2, 0], sizes = [16, 32], strides = [1, 1]} : vector<18x32xf32> to vector<16x32xf32>
    %110 = tpu.concatenate %107, %108, %109 in 1 : vector<16x32xf32>, vector<16x32xf32>, vector<16x32xf32> -> vector<16x96xf32>
    %111 = arith.truncf %110 : vector<16x96xf32> to vector<16x96xbf16>
    %cst_60 = arith.constant dense<0.000000e+00> : vector<16x32xf32>
    %112 = tpu.matmul %111, %102, %cst_60 {dimension_numbers = #tpu.dot_dimension_numbers<[1], [0], [0], [1], [0, 0, 1, 1], [], []>} : vector<16x96xbf16>, vector<96x32xbf16>, vector<16x32xf32> -> vector<16x32xf32>
    %113 = vector.broadcast %104 : vector<1x32xf32> to vector<16x32xf32>
    %114 = arith.addf %112, %113 : vector<16x32xf32>
    %115 = arith.addf %13, %114 : vector<16x32xf32>
    %c0_61 = arith.constant 0 : index
    %c0_62 = arith.constant 0 : index
    %116 = vector.load %arg13[%c0_61, %c0_62] : memref<160x64xbf16, #tpu.memory_space<vmem>>, vector<160x64xbf16>
    %c0_63 = arith.constant 0 : index
    %c0_64 = arith.constant 0 : index
    %117 = vector.load %arg14[%c0_63, %c0_64] : memref<1x64xf32, #tpu.memory_space<vmem>>, vector<1x64xf32>
    %cst_65 = arith.constant 0.000000e+00 : f32
    %118 = vector.broadcast %cst_65 : f32 to vector<2x32xf32>
    %119 = tpu.concatenate %118, %115, %118 in 0 : vector<2x32xf32>, vector<16x32xf32>, vector<2x32xf32> -> vector<20x32xf32>
    %120 = vector.extract_strided_slice %119 {offsets = [0, 0], sizes = [16, 32], strides = [1, 1]} : vector<20x32xf32> to vector<16x32xf32>
    %121 = vector.extract_strided_slice %119 {offsets = [1, 0], sizes = [16, 32], strides = [1, 1]} : vector<20x32xf32> to vector<16x32xf32>
    %122 = vector.extract_strided_slice %119 {offsets = [2, 0], sizes = [16, 32], strides = [1, 1]} : vector<20x32xf32> to vector<16x32xf32>
    %123 = vector.extract_strided_slice %119 {offsets = [3, 0], sizes = [16, 32], strides = [1, 1]} : vector<20x32xf32> to vector<16x32xf32>
    %124 = vector.extract_strided_slice %119 {offsets = [4, 0], sizes = [16, 32], strides = [1, 1]} : vector<20x32xf32> to vector<16x32xf32>
    %125 = tpu.concatenate %120, %121, %122, %123, %124 in 1 : vector<16x32xf32>, vector<16x32xf32>, vector<16x32xf32>, vector<16x32xf32>, vector<16x32xf32> -> vector<16x160xf32>
    %126 = arith.truncf %125 : vector<16x160xf32> to vector<16x160xbf16>
    %cst_66 = arith.constant dense<0.000000e+00> : vector<16x64xf32>
    %127 = tpu.matmul %126, %116, %cst_66 {dimension_numbers = #tpu.dot_dimension_numbers<[1], [0], [0], [1], [0, 0, 1, 1], [], []>} : vector<16x160xbf16>, vector<160x64xbf16>, vector<16x64xf32> -> vector<16x64xf32>
    %128 = vector.broadcast %117 : vector<1x64xf32> to vector<16x64xf32>
    %129 = arith.addf %127, %128 : vector<16x64xf32>
    %130 = tpu.iota {dimensions = array<i32: 0>} : vector<8x16xi32>
    %131 = tpu.iota {dimensions = array<i32: 1>} : vector<8x16xi32>
    %c2_i32 = arith.constant 2 : i32
    %132 = vector.broadcast %c2_i32 : i32 to vector<8x16xi32>
    %133 = arith.muli %132, %130 : vector<8x16xi32>
    %134 = arith.cmpi eq, %131, %133 : vector<8x16xi32>
    %135 = arith.extui %134 : vector<8x16xi1> to vector<8x16xi32>
    %136 = arith.sitofp %135 : vector<8x16xi32> to vector<8x16xf32>
    %cst_67 = arith.constant dense<0.000000e+00> : vector<8x64xf32>
    %137 = tpu.matmul %136, %129, %cst_67 {dimension_numbers = #tpu.dot_dimension_numbers<[1], [0], [0], [1], [0, 0, 1, 1], [], []>} : vector<8x16xf32>, vector<16x64xf32>, vector<8x64xf32> -> vector<8x64xf32>
    %c0_68 = arith.constant 0 : index
    %c0_69 = arith.constant 0 : index
    %c0_70 = arith.constant 0 : index
    %138 = vector.load %arg15[%c0_68, %c0_69, %c0_70] : memref<1x8x64xf32, #tpu.memory_space<vmem>>, vector<1x8x64xf32>
    %139 = vector.shape_cast %138 : vector<1x8x64xf32> to vector<8x64xf32>
    %140 = vector.shape_cast %137 : vector<8x64xf32> to vector<1x8x64xf32>
    tpu.vector_store %arg15[%c0_68, %c0_69, %c0_70], %140 {strides = array<i32>} : memref<1x8x64xf32, #tpu.memory_space<vmem>>, vector<1x8x64xf32>,
    return
  }
  func.func @transform_0(%arg0: i32) -> (i32, i32, i32) {
    %c0_i32 = arith.constant 0 : i32
    %c0_i32_0 = arith.constant 0 : i32
    %c0_i32_1 = arith.constant 0 : i32
    return %arg0, %c0_i32, %c0_i32_0 : i32, i32, i32
  }
  func.func @transform_1(%arg0: i32) -> (i32, i32) {
    %c0_i32 = arith.constant 0 : i32
    %c0_i32_0 = arith.constant 0 : i32
    %c0_i32_1 = arith.constant 0 : i32
    return %c0_i32, %c0_i32_0 : i32, i32
  }
  func.func @transform_2(%arg0: i32) -> (i32, i32) {
    %c0_i32 = arith.constant 0 : i32
    %c0_i32_0 = arith.constant 0 : i32
    %c0_i32_1 = arith.constant 0 : i32
    return %c0_i32, %c0_i32_0 : i32, i32
  }
  func.func @transform_3(%arg0: i32) -> (i32, i32) {
    %c0_i32 = arith.constant 0 : i32
    %c0_i32_0 = arith.constant 0 : i32
    %c0_i32_1 = arith.constant 0 : i32
    return %c0_i32, %c0_i32_0 : i32, i32
  }
  func.func @transform_4(%arg0: i32) -> (i32, i32, i32) {
    %c0_i32 = arith.constant 0 : i32
    %c0_i32_0 = arith.constant 0 : i32
    %c0_i32_1 = arith.constant 0 : i32
    %c0_i32_2 = arith.constant 0 : i32
    return %c0_i32, %c0_i32_0, %c0_i32_1 : i32, i32, i32
  }
  func.func @transform_5(%arg0: i32) -> (i32, i32, i32) {
    %c0_i32 = arith.constant 0 : i32
    %c0_i32_0 = arith.constant 0 : i32
    %c0_i32_1 = arith.constant 0 : i32
    %c0_i32_2 = arith.constant 0 : i32
    return %c0_i32, %c0_i32_0, %c0_i32_1 : i32, i32, i32
  }
  func.func @transform_6(%arg0: i32) -> (i32, i32, i32) {
    %c0_i32 = arith.constant 0 : i32
    %c0_i32_0 = arith.constant 0 : i32
    %c0_i32_1 = arith.constant 0 : i32
    %c0_i32_2 = arith.constant 0 : i32
    return %c0_i32, %c0_i32_0, %c0_i32_1 : i32, i32, i32
  }
  func.func @transform_7(%arg0: i32) -> (i32, i32, i32) {
    %c0_i32 = arith.constant 0 : i32
    %c0_i32_0 = arith.constant 0 : i32
    %c0_i32_1 = arith.constant 0 : i32
    %c0_i32_2 = arith.constant 0 : i32
    return %c0_i32, %c0_i32_0, %c0_i32_1 : i32, i32, i32
  }
  func.func @transform_8(%arg0: i32) -> (i32, i32, i32) {
    %c0_i32 = arith.constant 0 : i32
    %c0_i32_0 = arith.constant 0 : i32
    %c0_i32_1 = arith.constant 0 : i32
    %c0_i32_2 = arith.constant 0 : i32
    return %c0_i32, %c0_i32_0, %c0_i32_1 : i32, i32, i32
  }
  func.func @transform_9(%arg0: i32) -> (i32, i32, i32) {
    %c0_i32 = arith.constant 0 : i32
    %c0_i32_0 = arith.constant 0 : i32
    %c0_i32_1 = arith.constant 0 : i32
    %c0_i32_2 = arith.constant 0 : i32
    return %c0_i32, %c0_i32_0, %c0_i32_1 : i32, i32, i32
  }
  func.func @transform_10(%arg0: i32) -> (i32, i32, i32) {
    %c0_i32 = arith.constant 0 : i32
    %c0_i32_0 = arith.constant 0 : i32
    %c0_i32_1 = arith.constant 0 : i32
    %c0_i32_2 = arith.constant 0 : i32
    return %c0_i32, %c0_i32_0, %c0_i32_1 : i32, i32, i32
  }
  func.func @transform_11(%arg0: i32) -> (i32, i32, i32) {
    %c0_i32 = arith.constant 0 : i32
    %c0_i32_0 = arith.constant 0 : i32
    %c0_i32_1 = arith.constant 0 : i32
    %c0_i32_2 = arith.constant 0 : i32
    return %c0_i32, %c0_i32_0, %c0_i32_1 : i32, i32, i32
  }
  func.func @transform_12(%arg0: i32) -> (i32, i32) {
    %c0_i32 = arith.constant 0 : i32
    %c0_i32_0 = arith.constant 0 : i32
    %c0_i32_1 = arith.constant 0 : i32
    return %c0_i32, %c0_i32_0 : i32, i32
  }
  func.func @transform_13(%arg0: i32) -> (i32, i32) {
    %c0_i32 = arith.constant 0 : i32
    %c0_i32_0 = arith.constant 0 : i32
    %c0_i32_1 = arith.constant 0 : i32
    return %c0_i32, %c0_i32_0 : i32, i32
  }
  func.func @transform_14(%arg0: i32) -> (i32, i32, i32) {
    %c0_i32 = arith.constant 0 : i32
    %c0_i32_0 = arith.constant 0 : i32
    %c0_i32_1 = arith.constant 0 : i32
    return %arg0, %c0_i32, %c0_i32_0 : i32, i32, i32
  }
}

module attributes {stable_mosaic.version = 11 : i64} {
  func.func @_final_attn_head_kernel(%arg0: i32, %arg1: memref<1x4x128xf32, #tpu.memory_space<vmem>>, %arg2: memref<128x32xf32, #tpu.memory_space<vmem>>, %arg3: memref<1x128xf32, #tpu.memory_space<vmem>>, %arg4: memref<1x128xf32, #tpu.memory_space<vmem>>, %arg5: memref<128x32xbf16, #tpu.memory_space<vmem>>, %arg6: memref<1x32xf32, #tpu.memory_space<vmem>>, %arg7: memref<32x16xf32, #tpu.memory_space<vmem>>, %arg8: memref<2x1x32xf32, #tpu.memory_space<vmem>>, %arg9: memref<2x1x32xf32, #tpu.memory_space<vmem>>, %arg10: memref<2x32x96xbf16, #tpu.memory_space<vmem>>, %arg11: memref<2x1x96xf32, #tpu.memory_space<vmem>>, %arg12: memref<2x4x8x32xbf16, #tpu.memory_space<vmem>>, %arg13: memref<2x1x32xf32, #tpu.memory_space<vmem>>, %arg14: memref<32x5xf32, #tpu.memory_space<vmem>>, %arg15: memref<1x5xf32, #tpu.memory_space<vmem>>, %arg16: memref<1x1x5xf32, #tpu.memory_space<vmem>>) attributes {dimension_semantics = [#tpu.dimension_semantics<parallel>], iteration_bounds = array<i64: 2>, scalar_prefetch = 0 : i64, scratch_operands = 0 : i64, tpu.core_type = #tpu.core_type<tc>, window_params = [{transform_indices = @transform_0, window_bounds = array<i64: 1, 4, 128>}, {pipeline_mode = #tpu.pipeline_mode<synchronous>, transform_indices = @transform_1, window_bounds = array<i64: 128, 32>}, {pipeline_mode = #tpu.pipeline_mode<synchronous>, transform_indices = @transform_2, window_bounds = array<i64: 1, 128>}, {pipeline_mode = #tpu.pipeline_mode<synchronous>, transform_indices = @transform_3, window_bounds = array<i64: 1, 128>}, {pipeline_mode = #tpu.pipeline_mode<synchronous>, transform_indices = @transform_4, window_bounds = array<i64: 128, 32>}, {pipeline_mode = #tpu.pipeline_mode<synchronous>, transform_indices = @transform_5, window_bounds = array<i64: 1, 32>}, {pipeline_mode = #tpu.pipeline_mode<synchronous>, transform_indices = @transform_6, window_bounds = array<i64: 32, 16>}, {pipeline_mode = #tpu.pipeline_mode<synchronous>, transform_indices = @transform_7, window_bounds = array<i64: 2, 1, 32>}, {pipeline_mode = #tpu.pipeline_mode<synchronous>, transform_indices = @transform_8, window_bounds = array<i64: 2, 1, 32>}, {pipeline_mode = #tpu.pipeline_mode<synchronous>, transform_indices = @transform_9, window_bounds = array<i64: 2, 32, 96>}, {pipeline_mode = #tpu.pipeline_mode<synchronous>, transform_indices = @transform_10, window_bounds = array<i64: 2, 1, 96>}, {pipeline_mode = #tpu.pipeline_mode<synchronous>, transform_indices = @transform_11, window_bounds = array<i64: 2, 4, 8, 32>}, {pipeline_mode = #tpu.pipeline_mode<synchronous>, transform_indices = @transform_12, window_bounds = array<i64: 2, 1, 32>}, {pipeline_mode = #tpu.pipeline_mode<synchronous>, transform_indices = @transform_13, window_bounds = array<i64: 32, 5>}, {pipeline_mode = #tpu.pipeline_mode<synchronous>, transform_indices = @transform_14, window_bounds = array<i64: 1, 5>}, {transform_indices = @transform_15, window_bounds = array<i64: 1, 1, 5>}]} {
    %c0 = arith.constant 0 : index
    %c0_0 = arith.constant 0 : index
    %c0_1 = arith.constant 0 : index
    %0 = vector.load %arg1[%c0, %c0_0, %c0_1] : memref<1x4x128xf32, #tpu.memory_space<vmem>>, vector<1x4x128xf32>
    %1 = vector.shape_cast %0 : vector<1x4x128xf32> to vector<4x128xf32>
    %c0_2 = arith.constant 0 : index
    %c0_3 = arith.constant 0 : index
    %2 = vector.load %arg2[%c0_2, %c0_3] : memref<128x32xf32, #tpu.memory_space<vmem>>, vector<128x32xf32>
    %c0_4 = arith.constant 0 : index
    %c0_5 = arith.constant 0 : index
    %3 = vector.load %arg3[%c0_4, %c0_5] : memref<1x128xf32, #tpu.memory_space<vmem>>, vector<1x128xf32>
    %c0_6 = arith.constant 0 : index
    %c0_7 = arith.constant 0 : index
    %4 = vector.load %arg4[%c0_6, %c0_7] : memref<1x128xf32, #tpu.memory_space<vmem>>, vector<1x128xf32>
    %cst = arith.constant dense<0.000000e+00> : vector<128xf32>
    %5 = vector.multi_reduction <add>, %1, %cst [0] : vector<4x128xf32> to vector<128xf32>
    %6 = vector.shape_cast %5 : vector<128xf32> to vector<1x128xf32>
    %cst_8 = arith.constant dense<0.000000e+00> : vector<1x32xf32>
    %7 = tpu.matmul %6, %2, %cst_8 {dimension_numbers = #tpu.dot_dimension_numbers<[1], [0], [0], [1], [0, 0, 1, 1], [], []>} : vector<1x128xf32>, vector<128x32xf32>, vector<1x32xf32> -> vector<1x32xf32>
    %cst_9 = arith.constant 6.250000e-02 : f32
    %8 = vector.broadcast %cst_9 : f32 to vector<1x32xf32>
    %9 = arith.mulf %7, %8 : vector<1x32xf32>
    %cst_10 = arith.constant dense<0.000000e+00> : vector<1x128xf32>
    %10 = tpu.matmul %9, %2, %cst_10 {dimension_numbers = #tpu.dot_dimension_numbers<[1], [1], [0], [0], [0, 0, 1, 0], [], []>} : vector<1x32xf32>, vector<128x32xf32>, vector<1x128xf32> -> vector<1x128xf32>
    %11 = vector.broadcast %10 : vector<1x128xf32> to vector<4x128xf32>
    %12 = arith.subf %1, %11 : vector<4x128xf32>
    %13 = arith.mulf %12, %12 : vector<4x128xf32>
    %cst_11 = arith.constant dense<0.000000e+00> : vector<128xf32>
    %14 = vector.multi_reduction <add>, %13, %cst_11 [0] : vector<4x128xf32> to vector<128xf32>
    %15 = vector.shape_cast %14 : vector<128xf32> to vector<1x128xf32>
    %cst_12 = arith.constant dense<0.000000e+00> : vector<1x32xf32>
    %16 = tpu.matmul %15, %2, %cst_12 {dimension_numbers = #tpu.dot_dimension_numbers<[1], [0], [0], [1], [0, 0, 1, 1], [], []>} : vector<1x128xf32>, vector<128x32xf32>, vector<1x32xf32> -> vector<1x32xf32>
    %cst_13 = arith.constant 6.250000e-02 : f32
    %17 = vector.broadcast %cst_13 : f32 to vector<1x32xf32>
    %18 = arith.mulf %16, %17 : vector<1x32xf32>
    %cst_14 = arith.constant dense<0.000000e+00> : vector<1x128xf32>
    %19 = tpu.matmul %18, %2, %cst_14 {dimension_numbers = #tpu.dot_dimension_numbers<[1], [1], [0], [0], [0, 0, 1, 0], [], []>} : vector<1x32xf32>, vector<128x32xf32>, vector<1x128xf32> -> vector<1x128xf32>
    %cst_15 = arith.constant 9.99999974E-6 : f32
    %20 = vector.broadcast %cst_15 : f32 to vector<1x128xf32>
    %21 = arith.addf %19, %20 : vector<1x128xf32>
    %22 = math.rsqrt %21 : vector<1x128xf32>
    %23 = vector.broadcast %22 : vector<1x128xf32> to vector<4x128xf32>
    %24 = arith.mulf %12, %23 : vector<4x128xf32>
    %25 = vector.broadcast %3 : vector<1x128xf32> to vector<4x128xf32>
    %26 = arith.mulf %24, %25 : vector<4x128xf32>
    %27 = vector.broadcast %4 : vector<1x128xf32> to vector<4x128xf32>
    %28 = arith.addf %26, %27 : vector<4x128xf32>
    %cst_16 = arith.constant 0.000000e+00 : f32
    %29 = vector.broadcast %cst_16 : f32 to vector<4x128xf32>
    %30 = arith.subf %29, %28 : vector<4x128xf32>
    %31 = math.exp %30 : vector<4x128xf32>
    %cst_17 = arith.constant 1.000000e+00 : f32
    %32 = vector.broadcast %cst_17 : f32 to vector<4x128xf32>
    %33 = arith.addf %32, %31 : vector<4x128xf32>
    %cst_18 = arith.constant 1.000000e+00 : f32
    %34 = vector.broadcast %cst_18 : f32 to vector<4x128xf32>
    %35 = arith.divf %34, %33 : vector<4x128xf32>
    %36 = arith.mulf %28, %35 : vector<4x128xf32>
    %37 = arith.truncf %36 : vector<4x128xf32> to vector<4x128xbf16>
    %c0_19 = arith.constant 0 : index
    %c0_20 = arith.constant 0 : index
    %38 = vector.load %arg5[%c0_19, %c0_20] : memref<128x32xbf16, #tpu.memory_space<vmem>>, vector<128x32xbf16>
    %cst_21 = arith.constant dense<0.000000e+00> : vector<4x32xf32>
    %39 = tpu.matmul %37, %38, %cst_21 {dimension_numbers = #tpu.dot_dimension_numbers<[1], [0], [0], [1], [0, 0, 1, 1], [], []>} : vector<4x128xbf16>, vector<128x32xbf16>, vector<4x32xf32> -> vector<4x32xf32>
    %c0_22 = arith.constant 0 : index
    %c0_23 = arith.constant 0 : index
    %40 = vector.load %arg6[%c0_22, %c0_23] : memref<1x32xf32, #tpu.memory_space<vmem>>, vector<1x32xf32>
    %41 = vector.broadcast %40 : vector<1x32xf32> to vector<4x32xf32>
    %42 = arith.addf %39, %41 : vector<4x32xf32>
    %c0_24 = arith.constant 0 : index
    %c0_25 = arith.constant 0 : index
    %43 = vector.load %arg7[%c0_24, %c0_25] : memref<32x16xf32, #tpu.memory_space<vmem>>, vector<32x16xf32>
    %c0_26 = arith.constant 0 : index
    %c0_27 = arith.constant 0 : index
    %c0_28 = arith.constant 0 : index
    %44 = vector.load %arg8[%c0_26, %c0_27, %c0_28] : memref<2x1x32xf32, #tpu.memory_space<vmem>>, vector<1x1x32xf32>
    %45 = vector.shape_cast %44 : vector<1x1x32xf32> to vector<1x32xf32>
    %c0_29 = arith.constant 0 : index
    %c0_30 = arith.constant 0 : index
    %c0_31 = arith.constant 0 : index
    %46 = vector.load %arg9[%c0_29, %c0_30, %c0_31] : memref<2x1x32xf32, #tpu.memory_space<vmem>>, vector<1x1x32xf32>
    %47 = vector.shape_cast %46 : vector<1x1x32xf32> to vector<1x32xf32>
    %c0_32 = arith.constant 0 : index
    %c0_33 = arith.constant 0 : index
    %c0_34 = arith.constant 0 : index
    %48 = vector.load %arg10[%c0_32, %c0_33, %c0_34] : memref<2x32x96xbf16, #tpu.memory_space<vmem>>, vector<1x32x96xbf16>
    %49 = vector.shape_cast %48 : vector<1x32x96xbf16> to vector<32x96xbf16>
    %c0_35 = arith.constant 0 : index
    %c0_36 = arith.constant 0 : index
    %c0_37 = arith.constant 0 : index
    %50 = vector.load %arg11[%c0_35, %c0_36, %c0_37] : memref<2x1x96xf32, #tpu.memory_space<vmem>>, vector<1x1x96xf32>
    %51 = vector.shape_cast %50 : vector<1x1x96xf32> to vector<1x96xf32>
    %c0_38 = arith.constant 0 : index
    %c0_39 = arith.constant 0 : index
    %c0_40 = arith.constant 0 : index
    %c0_41 = arith.constant 0 : index
    %52 = vector.load %arg12[%c0_38, %c0_39, %c0_40, %c0_41] : memref<2x4x8x32xbf16, #tpu.memory_space<vmem>>, vector<1x4x8x32xbf16>
    %53 = vector.shape_cast %52 : vector<1x4x8x32xbf16> to vector<4x8x32xbf16>
    %c0_42 = arith.constant 0 : index
    %c0_43 = arith.constant 0 : index
    %c0_44 = arith.constant 0 : index
    %54 = vector.load %arg13[%c0_42, %c0_43, %c0_44] : memref<2x1x32xf32, #tpu.memory_space<vmem>>, vector<1x1x32xf32>
    %55 = vector.shape_cast %54 : vector<1x1x32xf32> to vector<1x32xf32>
    %cst_45 = arith.constant dense<0.000000e+00> : vector<32xf32>
    %56 = vector.multi_reduction <add>, %42, %cst_45 [0] : vector<4x32xf32> to vector<32xf32>
    %57 = vector.shape_cast %56 : vector<32xf32> to vector<1x32xf32>
    %cst_46 = arith.constant dense<0.000000e+00> : vector<1x16xf32>
    %58 = tpu.matmul %57, %43, %cst_46 {dimension_numbers = #tpu.dot_dimension_numbers<[1], [0], [0], [1], [0, 0, 1, 1], [], []>} : vector<1x32xf32>, vector<32x16xf32>, vector<1x16xf32> -> vector<1x16xf32>
    %cst_47 = arith.constant 1.250000e-01 : f32
    %59 = vector.broadcast %cst_47 : f32 to vector<1x16xf32>
    %60 = arith.mulf %58, %59 : vector<1x16xf32>
    %cst_48 = arith.constant dense<0.000000e+00> : vector<1x32xf32>
    %61 = tpu.matmul %60, %43, %cst_48 {dimension_numbers = #tpu.dot_dimension_numbers<[1], [1], [0], [0], [0, 0, 1, 0], [], []>} : vector<1x16xf32>, vector<32x16xf32>, vector<1x32xf32> -> vector<1x32xf32>
    %62 = vector.broadcast %61 : vector<1x32xf32> to vector<4x32xf32>
    %63 = arith.subf %42, %62 : vector<4x32xf32>
    %64 = arith.mulf %63, %63 : vector<4x32xf32>
    %cst_49 = arith.constant dense<0.000000e+00> : vector<32xf32>
    %65 = vector.multi_reduction <add>, %64, %cst_49 [0] : vector<4x32xf32> to vector<32xf32>
    %66 = vector.shape_cast %65 : vector<32xf32> to vector<1x32xf32>
    %cst_50 = arith.constant dense<0.000000e+00> : vector<1x16xf32>
    %67 = tpu.matmul %66, %43, %cst_50 {dimension_numbers = #tpu.dot_dimension_numbers<[1], [0], [0], [1], [0, 0, 1, 1], [], []>} : vector<1x32xf32>, vector<32x16xf32>, vector<1x16xf32> -> vector<1x16xf32>
    %cst_51 = arith.constant 1.250000e-01 : f32
    %68 = vector.broadcast %cst_51 : f32 to vector<1x16xf32>
    %69 = arith.mulf %67, %68 : vector<1x16xf32>
    %cst_52 = arith.constant dense<0.000000e+00> : vector<1x32xf32>
    %70 = tpu.matmul %69, %43, %cst_52 {dimension_numbers = #tpu.dot_dimension_numbers<[1], [1], [0], [0], [0, 0, 1, 0], [], []>} : vector<1x16xf32>, vector<32x16xf32>, vector<1x32xf32> -> vector<1x32xf32>
    %cst_53 = arith.constant 9.99999974E-6 : f32
    %71 = vector.broadcast %cst_53 : f32 to vector<1x32xf32>
    %72 = arith.addf %70, %71 : vector<1x32xf32>
    %73 = math.rsqrt %72 : vector<1x32xf32>
    %74 = vector.broadcast %73 : vector<1x32xf32> to vector<4x32xf32>
    %75 = arith.mulf %63, %74 : vector<4x32xf32>
    %76 = vector.broadcast %45 : vector<1x32xf32> to vector<4x32xf32>
    %77 = arith.mulf %75, %76 : vector<4x32xf32>
    %78 = vector.broadcast %47 : vector<1x32xf32> to vector<4x32xf32>
    %79 = arith.addf %77, %78 : vector<4x32xf32>
    %80 = arith.truncf %79 : vector<4x32xf32> to vector<4x32xbf16>
    %cst_54 = arith.constant dense<0.000000e+00> : vector<4x96xf32>
    %81 = tpu.matmul %80, %49, %cst_54 {dimension_numbers = #tpu.dot_dimension_numbers<[1], [0], [0], [1], [0, 0, 1, 1], [], []>} : vector<4x32xbf16>, vector<32x96xbf16>, vector<4x96xf32> -> vector<4x96xf32>
    %82 = vector.broadcast %51 : vector<1x96xf32> to vector<4x96xf32>
    %83 = arith.addf %81, %82 : vector<4x96xf32>
    %84 = vector.extract_strided_slice %83 {offsets = [0, 0], sizes = [4, 8], strides = [1, 1]} : vector<4x96xf32> to vector<4x8xf32>
    %85 = vector.extract_strided_slice %83 {offsets = [0, 8], sizes = [4, 8], strides = [1, 1]} : vector<4x96xf32> to vector<4x8xf32>
    %86 = vector.extract_strided_slice %83 {offsets = [0, 16], sizes = [4, 8], strides = [1, 1]} : vector<4x96xf32> to vector<4x8xf32>
    %87 = vector.extract_strided_slice %83 {offsets = [0, 24], sizes = [4, 8], strides = [1, 1]} : vector<4x96xf32> to vector<4x8xf32>
    %88 = vector.extract_strided_slice %83 {offsets = [0, 32], sizes = [4, 8], strides = [1, 1]} : vector<4x96xf32> to vector<4x8xf32>
    %89 = vector.extract_strided_slice %83 {offsets = [0, 40], sizes = [4, 8], strides = [1, 1]} : vector<4x96xf32> to vector<4x8xf32>
    %90 = vector.extract_strided_slice %83 {offsets = [0, 48], sizes = [4, 8], strides = [1, 1]} : vector<4x96xf32> to vector<4x8xf32>
    %91 = vector.extract_strided_slice %83 {offsets = [0, 56], sizes = [4, 8], strides = [1, 1]} : vector<4x96xf32> to vector<4x8xf32>
    %92 = vector.extract_strided_slice %83 {offsets = [0, 64], sizes = [4, 8], strides = [1, 1]} : vector<4x96xf32> to vector<4x8xf32>
    %93 = vector.extract_strided_slice %83 {offsets = [0, 72], sizes = [4, 8], strides = [1, 1]} : vector<4x96xf32> to vector<4x8xf32>
    %94 = vector.extract_strided_slice %83 {offsets = [0, 80], sizes = [4, 8], strides = [1, 1]} : vector<4x96xf32> to vector<4x8xf32>
    %95 = vector.extract_strided_slice %83 {offsets = [0, 88], sizes = [4, 8], strides = [1, 1]} : vector<4x96xf32> to vector<4x8xf32>
    %96 = vector.shape_cast %84 : vector<4x8xf32> to vector<1x4x8xf32>
    %97 = vector.shape_cast %87 : vector<4x8xf32> to vector<1x4x8xf32>
    %98 = vector.shape_cast %90 : vector<4x8xf32> to vector<1x4x8xf32>
    %99 = vector.shape_cast %93 : vector<4x8xf32> to vector<1x4x8xf32>
    %100 = tpu.concatenate %96, %97, %98, %99 in 0 : vector<1x4x8xf32>, vector<1x4x8xf32>, vector<1x4x8xf32>, vector<1x4x8xf32> -> vector<4x4x8xf32>
    %cst_55 = arith.constant 0.594603539 : f32
    %101 = vector.broadcast %cst_55 : f32 to vector<4x4x8xf32>
    %102 = arith.mulf %100, %101 : vector<4x4x8xf32>
    %103 = vector.shape_cast %85 : vector<4x8xf32> to vector<1x4x8xf32>
    %104 = vector.shape_cast %88 : vector<4x8xf32> to vector<1x4x8xf32>
    %105 = vector.shape_cast %91 : vector<4x8xf32> to vector<1x4x8xf32>
    %106 = vector.shape_cast %94 : vector<4x8xf32> to vector<1x4x8xf32>
    %107 = tpu.concatenate %103, %104, %105, %106 in 0 : vector<1x4x8xf32>, vector<1x4x8xf32>, vector<1x4x8xf32>, vector<1x4x8xf32> -> vector<4x4x8xf32>
    %cst_56 = arith.constant 0.594603539 : f32
    %108 = vector.broadcast %cst_56 : f32 to vector<4x4x8xf32>
    %109 = arith.mulf %107, %108 : vector<4x4x8xf32>
    %110 = vector.shape_cast %86 : vector<4x8xf32> to vector<1x4x8xf32>
    %111 = vector.shape_cast %89 : vector<4x8xf32> to vector<1x4x8xf32>
    %112 = vector.shape_cast %92 : vector<4x8xf32> to vector<1x4x8xf32>
    %113 = vector.shape_cast %95 : vector<4x8xf32> to vector<1x4x8xf32>
    %114 = tpu.concatenate %110, %111, %112, %113 in 0 : vector<1x4x8xf32>, vector<1x4x8xf32>, vector<1x4x8xf32>, vector<1x4x8xf32> -> vector<4x4x8xf32>
    %115 = arith.truncf %102 : vector<4x4x8xf32> to vector<4x4x8xbf16>
    %116 = arith.truncf %109 : vector<4x4x8xf32> to vector<4x4x8xbf16>
    "tpu.trace_start"() <{level = 10 : i32, message = "htc,hsc->hts"}> : () -> ()
    %cst_57 = arith.constant dense<0.000000e+00> : vector<4x4x4xf32>
    %117 = tpu.matmul %115, %116, %cst_57 {dimension_numbers = #tpu.dot_dimension_numbers<[2], [2], [1], [1], [0, 0, 0, 1, 1, 1], [0], [0]>} : vector<4x4x8xbf16>, vector<4x4x8xbf16>, vector<4x4x4xf32> -> vector<4x4x4xf32>
    "tpu.trace_stop"() : () -> ()
    %cst_58 = arith.constant dense<0xFF800000> : vector<4x4xf32>
    %118 = vector.multi_reduction <maximumf>, %117, %cst_58 [2] : vector<4x4x4xf32> to vector<4x4xf32>
    %119 = vector.shape_cast %118 : vector<4x4xf32> to vector<4x4x1xf32>
    %120 = vector.broadcast %119 : vector<4x4x1xf32> to vector<4x4x4xf32>
    %121 = arith.subf %117, %120 : vector<4x4x4xf32>
    %122 = math.exp %121 : vector<4x4x4xf32>
    %cst_59 = arith.constant dense<0.000000e+00> : vector<4x4xf32>
    %123 = vector.multi_reduction <add>, %122, %cst_59 [2] : vector<4x4x4xf32> to vector<4x4xf32>
    %124 = vector.shape_cast %123 : vector<4x4xf32> to vector<4x4x1xf32>
    %125 = vector.broadcast %124 : vector<4x4x1xf32> to vector<4x4x4xf32>
    %126 = arith.divf %122, %125 : vector<4x4x4xf32>
    %127 = arith.truncf %126 : vector<4x4x4xf32> to vector<4x4x4xbf16>
    %128 = arith.truncf %114 : vector<4x4x8xf32> to vector<4x4x8xbf16>
    "tpu.trace_start"() <{level = 10 : i32, message = "hts,hsc->htc"}> : () -> ()
    %cst_60 = arith.constant dense<0.000000e+00> : vector<4x4x8xf32>
    %129 = tpu.matmul %127, %128, %cst_60 {dimension_numbers = #tpu.dot_dimension_numbers<[2], [1], [1], [2], [0, 0, 0, 1, 1, 2], [0], [0]>} : vector<4x4x4xbf16>, vector<4x4x8xbf16>, vector<4x4x8xf32> -> vector<4x4x8xf32>
    %cst_61 = arith.constant 0.000000e+00 : f32
    "tpu.trace_stop"() : () -> ()
    %130 = vector.broadcast %cst_61 : f32 to vector<4x32xf32>
    %131 = vector.broadcast %55 : vector<1x32xf32> to vector<4x32xf32>
    %132 = arith.addf %130, %131 : vector<4x32xf32>
    %133 = vector.extract_strided_slice %129 {offsets = [0, 0, 0], sizes = [1, 4, 8], strides = [1, 1, 1]} : vector<4x4x8xf32> to vector<1x4x8xf32>
    %134 = vector.shape_cast %133 : vector<1x4x8xf32> to vector<4x8xf32>
    %135 = arith.truncf %134 : vector<4x8xf32> to vector<4x8xbf16>
    %136 = vector.extract_strided_slice %53 {offsets = [0, 0, 0], sizes = [1, 8, 32], strides = [1, 1, 1]} : vector<4x8x32xbf16> to vector<1x8x32xbf16>
    %137 = vector.shape_cast %136 : vector<1x8x32xbf16> to vector<8x32xbf16>
    %cst_62 = arith.constant dense<0.000000e+00> : vector<4x32xf32>
    %138 = tpu.matmul %135, %137, %cst_62 {dimension_numbers = #tpu.dot_dimension_numbers<[1], [0], [0], [1], [0, 0, 1, 1], [], []>} : vector<4x8xbf16>, vector<8x32xbf16>, vector<4x32xf32> -> vector<4x32xf32>
    %139 = arith.addf %132, %138 : vector<4x32xf32>
    %140 = vector.extract_strided_slice %129 {offsets = [1, 0, 0], sizes = [1, 4, 8], strides = [1, 1, 1]} : vector<4x4x8xf32> to vector<1x4x8xf32>
    %141 = vector.shape_cast %140 : vector<1x4x8xf32> to vector<4x8xf32>
    %142 = arith.truncf %141 : vector<4x8xf32> to vector<4x8xbf16>
    %143 = vector.extract_strided_slice %53 {offsets = [1, 0, 0], sizes = [1, 8, 32], strides = [1, 1, 1]} : vector<4x8x32xbf16> to vector<1x8x32xbf16>
    %144 = vector.shape_cast %143 : vector<1x8x32xbf16> to vector<8x32xbf16>
    %cst_63 = arith.constant dense<0.000000e+00> : vector<4x32xf32>
    %145 = tpu.matmul %142, %144, %cst_63 {dimension_numbers = #tpu.dot_dimension_numbers<[1], [0], [0], [1], [0, 0, 1, 1], [], []>} : vector<4x8xbf16>, vector<8x32xbf16>, vector<4x32xf32> -> vector<4x32xf32>
    %146 = arith.addf %139, %145 : vector<4x32xf32>
    %147 = vector.extract_strided_slice %129 {offsets = [2, 0, 0], sizes = [1, 4, 8], strides = [1, 1, 1]} : vector<4x4x8xf32> to vector<1x4x8xf32>
    %148 = vector.shape_cast %147 : vector<1x4x8xf32> to vector<4x8xf32>
    %149 = arith.truncf %148 : vector<4x8xf32> to vector<4x8xbf16>
    %150 = vector.extract_strided_slice %53 {offsets = [2, 0, 0], sizes = [1, 8, 32], strides = [1, 1, 1]} : vector<4x8x32xbf16> to vector<1x8x32xbf16>
    %151 = vector.shape_cast %150 : vector<1x8x32xbf16> to vector<8x32xbf16>
    %cst_64 = arith.constant dense<0.000000e+00> : vector<4x32xf32>
    %152 = tpu.matmul %149, %151, %cst_64 {dimension_numbers = #tpu.dot_dimension_numbers<[1], [0], [0], [1], [0, 0, 1, 1], [], []>} : vector<4x8xbf16>, vector<8x32xbf16>, vector<4x32xf32> -> vector<4x32xf32>
    %153 = arith.addf %146, %152 : vector<4x32xf32>
    %154 = vector.extract_strided_slice %129 {offsets = [3, 0, 0], sizes = [1, 4, 8], strides = [1, 1, 1]} : vector<4x4x8xf32> to vector<1x4x8xf32>
    %155 = vector.shape_cast %154 : vector<1x4x8xf32> to vector<4x8xf32>
    %156 = arith.truncf %155 : vector<4x8xf32> to vector<4x8xbf16>
    %157 = vector.extract_strided_slice %53 {offsets = [3, 0, 0], sizes = [1, 8, 32], strides = [1, 1, 1]} : vector<4x8x32xbf16> to vector<1x8x32xbf16>
    %158 = vector.shape_cast %157 : vector<1x8x32xbf16> to vector<8x32xbf16>
    %cst_65 = arith.constant dense<0.000000e+00> : vector<4x32xf32>
    %159 = tpu.matmul %156, %158, %cst_65 {dimension_numbers = #tpu.dot_dimension_numbers<[1], [0], [0], [1], [0, 0, 1, 1], [], []>} : vector<4x8xbf16>, vector<8x32xbf16>, vector<4x32xf32> -> vector<4x32xf32>
    %160 = arith.addf %153, %159 : vector<4x32xf32>
    %161 = arith.addf %42, %160 : vector<4x32xf32>
    %c1 = arith.constant 1 : index
    %c0_66 = arith.constant 0 : index
    %c0_67 = arith.constant 0 : index
    %162 = vector.load %arg8[%c1, %c0_66, %c0_67] : memref<2x1x32xf32, #tpu.memory_space<vmem>>, vector<1x1x32xf32>
    %163 = vector.shape_cast %162 : vector<1x1x32xf32> to vector<1x32xf32>
    %c1_68 = arith.constant 1 : index
    %c0_69 = arith.constant 0 : index
    %c0_70 = arith.constant 0 : index
    %164 = vector.load %arg9[%c1_68, %c0_69, %c0_70] : memref<2x1x32xf32, #tpu.memory_space<vmem>>, vector<1x1x32xf32>
    %165 = vector.shape_cast %164 : vector<1x1x32xf32> to vector<1x32xf32>
    %c1_71 = arith.constant 1 : index
    %c0_72 = arith.constant 0 : index
    %c0_73 = arith.constant 0 : index
    %166 = vector.load %arg10[%c1_71, %c0_72, %c0_73] : memref<2x32x96xbf16, #tpu.memory_space<vmem>>, vector<1x32x96xbf16>
    %167 = vector.shape_cast %166 : vector<1x32x96xbf16> to vector<32x96xbf16>
    %c1_74 = arith.constant 1 : index
    %c0_75 = arith.constant 0 : index
    %c0_76 = arith.constant 0 : index
    %168 = vector.load %arg11[%c1_74, %c0_75, %c0_76] : memref<2x1x96xf32, #tpu.memory_space<vmem>>, vector<1x1x96xf32>
    %169 = vector.shape_cast %168 : vector<1x1x96xf32> to vector<1x96xf32>
    %c1_77 = arith.constant 1 : index
    %c0_78 = arith.constant 0 : index
    %c0_79 = arith.constant 0 : index
    %c0_80 = arith.constant 0 : index
    %170 = vector.load %arg12[%c1_77, %c0_78, %c0_79, %c0_80] : memref<2x4x8x32xbf16, #tpu.memory_space<vmem>>, vector<1x4x8x32xbf16>
    %171 = vector.shape_cast %170 : vector<1x4x8x32xbf16> to vector<4x8x32xbf16>
    %c1_81 = arith.constant 1 : index
    %c0_82 = arith.constant 0 : index
    %c0_83 = arith.constant 0 : index
    %172 = vector.load %arg13[%c1_81, %c0_82, %c0_83] : memref<2x1x32xf32, #tpu.memory_space<vmem>>, vector<1x1x32xf32>
    %173 = vector.shape_cast %172 : vector<1x1x32xf32> to vector<1x32xf32>
    %cst_84 = arith.constant dense<0.000000e+00> : vector<32xf32>
    %174 = vector.multi_reduction <add>, %161, %cst_84 [0] : vector<4x32xf32> to vector<32xf32>
    %175 = vector.shape_cast %174 : vector<32xf32> to vector<1x32xf32>
    %cst_85 = arith.constant dense<0.000000e+00> : vector<1x16xf32>
    %176 = tpu.matmul %175, %43, %cst_85 {dimension_numbers = #tpu.dot_dimension_numbers<[1], [0], [0], [1], [0, 0, 1, 1], [], []>} : vector<1x32xf32>, vector<32x16xf32>, vector<1x16xf32> -> vector<1x16xf32>
    %cst_86 = arith.constant 1.250000e-01 : f32
    %177 = vector.broadcast %cst_86 : f32 to vector<1x16xf32>
    %178 = arith.mulf %176, %177 : vector<1x16xf32>
    %cst_87 = arith.constant dense<0.000000e+00> : vector<1x32xf32>
    %179 = tpu.matmul %178, %43, %cst_87 {dimension_numbers = #tpu.dot_dimension_numbers<[1], [1], [0], [0], [0, 0, 1, 0], [], []>} : vector<1x16xf32>, vector<32x16xf32>, vector<1x32xf32> -> vector<1x32xf32>
    %180 = vector.broadcast %179 : vector<1x32xf32> to vector<4x32xf32>
    %181 = arith.subf %161, %180 : vector<4x32xf32>
    %182 = arith.mulf %181, %181 : vector<4x32xf32>
    %cst_88 = arith.constant dense<0.000000e+00> : vector<32xf32>
    %183 = vector.multi_reduction <add>, %182, %cst_88 [0] : vector<4x32xf32> to vector<32xf32>
    %184 = vector.shape_cast %183 : vector<32xf32> to vector<1x32xf32>
    %cst_89 = arith.constant dense<0.000000e+00> : vector<1x16xf32>
    %185 = tpu.matmul %184, %43, %cst_89 {dimension_numbers = #tpu.dot_dimension_numbers<[1], [0], [0], [1], [0, 0, 1, 1], [], []>} : vector<1x32xf32>, vector<32x16xf32>, vector<1x16xf32> -> vector<1x16xf32>
    %cst_90 = arith.constant 1.250000e-01 : f32
    %186 = vector.broadcast %cst_90 : f32 to vector<1x16xf32>
    %187 = arith.mulf %185, %186 : vector<1x16xf32>
    %cst_91 = arith.constant dense<0.000000e+00> : vector<1x32xf32>
    %188 = tpu.matmul %187, %43, %cst_91 {dimension_numbers = #tpu.dot_dimension_numbers<[1], [1], [0], [0], [0, 0, 1, 0], [], []>} : vector<1x16xf32>, vector<32x16xf32>, vector<1x32xf32> -> vector<1x32xf32>
    %cst_92 = arith.constant 9.99999974E-6 : f32
    %189 = vector.broadcast %cst_92 : f32 to vector<1x32xf32>
    %190 = arith.addf %188, %189 : vector<1x32xf32>
    %191 = math.rsqrt %190 : vector<1x32xf32>
    %192 = vector.broadcast %191 : vector<1x32xf32> to vector<4x32xf32>
    %193 = arith.mulf %181, %192 : vector<4x32xf32>
    %194 = vector.broadcast %163 : vector<1x32xf32> to vector<4x32xf32>
    %195 = arith.mulf %193, %194 : vector<4x32xf32>
    %196 = vector.broadcast %165 : vector<1x32xf32> to vector<4x32xf32>
    %197 = arith.addf %195, %196 : vector<4x32xf32>
    %198 = arith.truncf %197 : vector<4x32xf32> to vector<4x32xbf16>
    %cst_93 = arith.constant dense<0.000000e+00> : vector<4x96xf32>
    %199 = tpu.matmul %198, %167, %cst_93 {dimension_numbers = #tpu.dot_dimension_numbers<[1], [0], [0], [1], [0, 0, 1, 1], [], []>} : vector<4x32xbf16>, vector<32x96xbf16>, vector<4x96xf32> -> vector<4x96xf32>
    %200 = vector.broadcast %169 : vector<1x96xf32> to vector<4x96xf32>
    %201 = arith.addf %199, %200 : vector<4x96xf32>
    %202 = vector.extract_strided_slice %201 {offsets = [0, 0], sizes = [4, 8], strides = [1, 1]} : vector<4x96xf32> to vector<4x8xf32>
    %203 = vector.extract_strided_slice %201 {offsets = [0, 8], sizes = [4, 8], strides = [1, 1]} : vector<4x96xf32> to vector<4x8xf32>
    %204 = vector.extract_strided_slice %201 {offsets = [0, 16], sizes = [4, 8], strides = [1, 1]} : vector<4x96xf32> to vector<4x8xf32>
    %205 = vector.extract_strided_slice %201 {offsets = [0, 24], sizes = [4, 8], strides = [1, 1]} : vector<4x96xf32> to vector<4x8xf32>
    %206 = vector.extract_strided_slice %201 {offsets = [0, 32], sizes = [4, 8], strides = [1, 1]} : vector<4x96xf32> to vector<4x8xf32>
    %207 = vector.extract_strided_slice %201 {offsets = [0, 40], sizes = [4, 8], strides = [1, 1]} : vector<4x96xf32> to vector<4x8xf32>
    %208 = vector.extract_strided_slice %201 {offsets = [0, 48], sizes = [4, 8], strides = [1, 1]} : vector<4x96xf32> to vector<4x8xf32>
    %209 = vector.extract_strided_slice %201 {offsets = [0, 56], sizes = [4, 8], strides = [1, 1]} : vector<4x96xf32> to vector<4x8xf32>
    %210 = vector.extract_strided_slice %201 {offsets = [0, 64], sizes = [4, 8], strides = [1, 1]} : vector<4x96xf32> to vector<4x8xf32>
    %211 = vector.extract_strided_slice %201 {offsets = [0, 72], sizes = [4, 8], strides = [1, 1]} : vector<4x96xf32> to vector<4x8xf32>
    %212 = vector.extract_strided_slice %201 {offsets = [0, 80], sizes = [4, 8], strides = [1, 1]} : vector<4x96xf32> to vector<4x8xf32>
    %213 = vector.extract_strided_slice %201 {offsets = [0, 88], sizes = [4, 8], strides = [1, 1]} : vector<4x96xf32> to vector<4x8xf32>
    %214 = vector.shape_cast %202 : vector<4x8xf32> to vector<1x4x8xf32>
    %215 = vector.shape_cast %205 : vector<4x8xf32> to vector<1x4x8xf32>
    %216 = vector.shape_cast %208 : vector<4x8xf32> to vector<1x4x8xf32>
    %217 = vector.shape_cast %211 : vector<4x8xf32> to vector<1x4x8xf32>
    %218 = tpu.concatenate %214, %215, %216, %217 in 0 : vector<1x4x8xf32>, vector<1x4x8xf32>, vector<1x4x8xf32>, vector<1x4x8xf32> -> vector<4x4x8xf32>
    %cst_94 = arith.constant 0.594603539 : f32
    %219 = vector.broadcast %cst_94 : f32 to vector<4x4x8xf32>
    %220 = arith.mulf %218, %219 : vector<4x4x8xf32>
    %221 = vector.shape_cast %203 : vector<4x8xf32> to vector<1x4x8xf32>
    %222 = vector.shape_cast %206 : vector<4x8xf32> to vector<1x4x8xf32>
    %223 = vector.shape_cast %209 : vector<4x8xf32> to vector<1x4x8xf32>
    %224 = vector.shape_cast %212 : vector<4x8xf32> to vector<1x4x8xf32>
    %225 = tpu.concatenate %221, %222, %223, %224 in 0 : vector<1x4x8xf32>, vector<1x4x8xf32>, vector<1x4x8xf32>, vector<1x4x8xf32> -> vector<4x4x8xf32>
    %cst_95 = arith.constant 0.594603539 : f32
    %226 = vector.broadcast %cst_95 : f32 to vector<4x4x8xf32>
    %227 = arith.mulf %225, %226 : vector<4x4x8xf32>
    %228 = vector.shape_cast %204 : vector<4x8xf32> to vector<1x4x8xf32>
    %229 = vector.shape_cast %207 : vector<4x8xf32> to vector<1x4x8xf32>
    %230 = vector.shape_cast %210 : vector<4x8xf32> to vector<1x4x8xf32>
    %231 = vector.shape_cast %213 : vector<4x8xf32> to vector<1x4x8xf32>
    %232 = tpu.concatenate %228, %229, %230, %231 in 0 : vector<1x4x8xf32>, vector<1x4x8xf32>, vector<1x4x8xf32>, vector<1x4x8xf32> -> vector<4x4x8xf32>
    %233 = arith.truncf %220 : vector<4x4x8xf32> to vector<4x4x8xbf16>
    %234 = arith.truncf %227 : vector<4x4x8xf32> to vector<4x4x8xbf16>
    "tpu.trace_start"() <{level = 10 : i32, message = "htc,hsc->hts"}> : () -> ()
    %cst_96 = arith.constant dense<0.000000e+00> : vector<4x4x4xf32>
    %235 = tpu.matmul %233, %234, %cst_96 {dimension_numbers = #tpu.dot_dimension_numbers<[2], [2], [1], [1], [0, 0, 0, 1, 1, 1], [0], [0]>} : vector<4x4x8xbf16>, vector<4x4x8xbf16>, vector<4x4x4xf32> -> vector<4x4x4xf32>
    "tpu.trace_stop"() : () -> ()
    %cst_97 = arith.constant dense<0xFF800000> : vector<4x4xf32>
    %236 = vector.multi_reduction <maximumf>, %235, %cst_97 [2] : vector<4x4x4xf32> to vector<4x4xf32>
    %237 = vector.shape_cast %236 : vector<4x4xf32> to vector<4x4x1xf32>
    %238 = vector.broadcast %237 : vector<4x4x1xf32> to vector<4x4x4xf32>
    %239 = arith.subf %235, %238 : vector<4x4x4xf32>
    %240 = math.exp %239 : vector<4x4x4xf32>
    %cst_98 = arith.constant dense<0.000000e+00> : vector<4x4xf32>
    %241 = vector.multi_reduction <add>, %240, %cst_98 [2] : vector<4x4x4xf32> to vector<4x4xf32>
    %242 = vector.shape_cast %241 : vector<4x4xf32> to vector<4x4x1xf32>
    %243 = vector.broadcast %242 : vector<4x4x1xf32> to vector<4x4x4xf32>
    %244 = arith.divf %240, %243 : vector<4x4x4xf32>
    %245 = arith.truncf %244 : vector<4x4x4xf32> to vector<4x4x4xbf16>
    %246 = arith.truncf %232 : vector<4x4x8xf32> to vector<4x4x8xbf16>
    "tpu.trace_start"() <{level = 10 : i32, message = "hts,hsc->htc"}> : () -> ()
    %cst_99 = arith.constant dense<0.000000e+00> : vector<4x4x8xf32>
    %247 = tpu.matmul %245, %246, %cst_99 {dimension_numbers = #tpu.dot_dimension_numbers<[2], [1], [1], [2], [0, 0, 0, 1, 1, 2], [0], [0]>} : vector<4x4x4xbf16>, vector<4x4x8xbf16>, vector<4x4x8xf32> -> vector<4x4x8xf32>
    %cst_100 = arith.constant 0.000000e+00 : f32
    "tpu.trace_stop"() : () -> ()
    %248 = vector.broadcast %cst_100 : f32 to vector<4x32xf32>
    %249 = vector.broadcast %173 : vector<1x32xf32> to vector<4x32xf32>
    %250 = arith.addf %248, %249 : vector<4x32xf32>
    %251 = vector.extract_strided_slice %247 {offsets = [0, 0, 0], sizes = [1, 4, 8], strides = [1, 1, 1]} : vector<4x4x8xf32> to vector<1x4x8xf32>
    %252 = vector.shape_cast %251 : vector<1x4x8xf32> to vector<4x8xf32>
    %253 = arith.truncf %252 : vector<4x8xf32> to vector<4x8xbf16>
    %254 = vector.extract_strided_slice %171 {offsets = [0, 0, 0], sizes = [1, 8, 32], strides = [1, 1, 1]} : vector<4x8x32xbf16> to vector<1x8x32xbf16>
    %255 = vector.shape_cast %254 : vector<1x8x32xbf16> to vector<8x32xbf16>
    %cst_101 = arith.constant dense<0.000000e+00> : vector<4x32xf32>
    %256 = tpu.matmul %253, %255, %cst_101 {dimension_numbers = #tpu.dot_dimension_numbers<[1], [0], [0], [1], [0, 0, 1, 1], [], []>} : vector<4x8xbf16>, vector<8x32xbf16>, vector<4x32xf32> -> vector<4x32xf32>
    %257 = arith.addf %250, %256 : vector<4x32xf32>
    %258 = vector.extract_strided_slice %247 {offsets = [1, 0, 0], sizes = [1, 4, 8], strides = [1, 1, 1]} : vector<4x4x8xf32> to vector<1x4x8xf32>
    %259 = vector.shape_cast %258 : vector<1x4x8xf32> to vector<4x8xf32>
    %260 = arith.truncf %259 : vector<4x8xf32> to vector<4x8xbf16>
    %261 = vector.extract_strided_slice %171 {offsets = [1, 0, 0], sizes = [1, 8, 32], strides = [1, 1, 1]} : vector<4x8x32xbf16> to vector<1x8x32xbf16>
    %262 = vector.shape_cast %261 : vector<1x8x32xbf16> to vector<8x32xbf16>
    %cst_102 = arith.constant dense<0.000000e+00> : vector<4x32xf32>
    %263 = tpu.matmul %260, %262, %cst_102 {dimension_numbers = #tpu.dot_dimension_numbers<[1], [0], [0], [1], [0, 0, 1, 1], [], []>} : vector<4x8xbf16>, vector<8x32xbf16>, vector<4x32xf32> -> vector<4x32xf32>
    %264 = arith.addf %257, %263 : vector<4x32xf32>
    %265 = vector.extract_strided_slice %247 {offsets = [2, 0, 0], sizes = [1, 4, 8], strides = [1, 1, 1]} : vector<4x4x8xf32> to vector<1x4x8xf32>
    %266 = vector.shape_cast %265 : vector<1x4x8xf32> to vector<4x8xf32>
    %267 = arith.truncf %266 : vector<4x8xf32> to vector<4x8xbf16>
    %268 = vector.extract_strided_slice %171 {offsets = [2, 0, 0], sizes = [1, 8, 32], strides = [1, 1, 1]} : vector<4x8x32xbf16> to vector<1x8x32xbf16>
    %269 = vector.shape_cast %268 : vector<1x8x32xbf16> to vector<8x32xbf16>
    %cst_103 = arith.constant dense<0.000000e+00> : vector<4x32xf32>
    %270 = tpu.matmul %267, %269, %cst_103 {dimension_numbers = #tpu.dot_dimension_numbers<[1], [0], [0], [1], [0, 0, 1, 1], [], []>} : vector<4x8xbf16>, vector<8x32xbf16>, vector<4x32xf32> -> vector<4x32xf32>
    %271 = arith.addf %264, %270 : vector<4x32xf32>
    %272 = vector.extract_strided_slice %247 {offsets = [3, 0, 0], sizes = [1, 4, 8], strides = [1, 1, 1]} : vector<4x4x8xf32> to vector<1x4x8xf32>
    %273 = vector.shape_cast %272 : vector<1x4x8xf32> to vector<4x8xf32>
    %274 = arith.truncf %273 : vector<4x8xf32> to vector<4x8xbf16>
    %275 = vector.extract_strided_slice %171 {offsets = [3, 0, 0], sizes = [1, 8, 32], strides = [1, 1, 1]} : vector<4x8x32xbf16> to vector<1x8x32xbf16>
    %276 = vector.shape_cast %275 : vector<1x8x32xbf16> to vector<8x32xbf16>
    %cst_104 = arith.constant dense<0.000000e+00> : vector<4x32xf32>
    %277 = tpu.matmul %274, %276, %cst_104 {dimension_numbers = #tpu.dot_dimension_numbers<[1], [0], [0], [1], [0, 0, 1, 1], [], []>} : vector<4x8xbf16>, vector<8x32xbf16>, vector<4x32xf32> -> vector<4x32xf32>
    %278 = arith.addf %271, %277 : vector<4x32xf32>
    %279 = arith.addf %161, %278 : vector<4x32xf32>
    %280 = vector.extract_strided_slice %279 {offsets = [0, 0], sizes = [1, 32], strides = [1, 1]} : vector<4x32xf32> to vector<1x32xf32>
    %c0_105 = arith.constant 0 : index
    %c0_106 = arith.constant 0 : index
    %281 = vector.load %arg14[%c0_105, %c0_106] : memref<32x5xf32, #tpu.memory_space<vmem>>, vector<32x5xf32>
    %cst_107 = arith.constant dense<0.000000e+00> : vector<1x5xf32>
    %282 = tpu.matmul %280, %281, %cst_107 {dimension_numbers = #tpu.dot_dimension_numbers<[1], [0], [0], [1], [0, 0, 1, 1], [], []>} : vector<1x32xf32>, vector<32x5xf32>, vector<1x5xf32> -> vector<1x5xf32>
    %c0_108 = arith.constant 0 : index
    %c0_109 = arith.constant 0 : index
    %283 = vector.load %arg15[%c0_108, %c0_109] : memref<1x5xf32, #tpu.memory_space<vmem>>, vector<1x5xf32>
    %284 = arith.addf %282, %283 : vector<1x5xf32>
    %c0_110 = arith.constant 0 : index
    %c0_111 = arith.constant 0 : index
    %c0_112 = arith.constant 0 : index
    %285 = vector.load %arg16[%c0_110, %c0_111, %c0_112] : memref<1x1x5xf32, #tpu.memory_space<vmem>>, vector<1x1x5xf32>
    %286 = vector.shape_cast %285 : vector<1x1x5xf32> to vector<1x5xf32>
    %287 = vector.shape_cast %284 : vector<1x5xf32> to vector<1x1x5xf32>
    tpu.vector_store %arg16[%c0_110, %c0_111, %c0_112], %287 {strides = array<i32>} : memref<1x1x5xf32, #tpu.memory_space<vmem>>, vector<1x1x5xf32>,
    return
  }
  func.func @transform_0(%arg0: i32) -> (i32, i32, i32) {
    %c0_i32 = arith.constant 0 : i32
    %c0_i32_0 = arith.constant 0 : i32
    %c0_i32_1 = arith.constant 0 : i32
    return %arg0, %c0_i32, %c0_i32_0 : i32, i32, i32
  }
  func.func @transform_1(%arg0: i32) -> (i32, i32) {
    %c0_i32 = arith.constant 0 : i32
    %c0_i32_0 = arith.constant 0 : i32
    %c0_i32_1 = arith.constant 0 : i32
    return %c0_i32, %c0_i32_0 : i32, i32
  }
  func.func @transform_2(%arg0: i32) -> (i32, i32) {
    %c0_i32 = arith.constant 0 : i32
    %c0_i32_0 = arith.constant 0 : i32
    %c0_i32_1 = arith.constant 0 : i32
    return %c0_i32, %c0_i32_0 : i32, i32
  }
  func.func @transform_3(%arg0: i32) -> (i32, i32) {
    %c0_i32 = arith.constant 0 : i32
    %c0_i32_0 = arith.constant 0 : i32
    %c0_i32_1 = arith.constant 0 : i32
    return %c0_i32, %c0_i32_0 : i32, i32
  }
  func.func @transform_4(%arg0: i32) -> (i32, i32) {
    %c0_i32 = arith.constant 0 : i32
    %c0_i32_0 = arith.constant 0 : i32
    %c0_i32_1 = arith.constant 0 : i32
    return %c0_i32, %c0_i32_0 : i32, i32
  }
  func.func @transform_5(%arg0: i32) -> (i32, i32) {
    %c0_i32 = arith.constant 0 : i32
    %c0_i32_0 = arith.constant 0 : i32
    %c0_i32_1 = arith.constant 0 : i32
    return %c0_i32, %c0_i32_0 : i32, i32
  }
  func.func @transform_6(%arg0: i32) -> (i32, i32) {
    %c0_i32 = arith.constant 0 : i32
    %c0_i32_0 = arith.constant 0 : i32
    %c0_i32_1 = arith.constant 0 : i32
    return %c0_i32, %c0_i32_0 : i32, i32
  }
  func.func @transform_7(%arg0: i32) -> (i32, i32, i32) {
    %c0_i32 = arith.constant 0 : i32
    %c0_i32_0 = arith.constant 0 : i32
    %c0_i32_1 = arith.constant 0 : i32
    %c0_i32_2 = arith.constant 0 : i32
    return %c0_i32, %c0_i32_0, %c0_i32_1 : i32, i32, i32
  }
  func.func @transform_8(%arg0: i32) -> (i32, i32, i32) {
    %c0_i32 = arith.constant 0 : i32
    %c0_i32_0 = arith.constant 0 : i32
    %c0_i32_1 = arith.constant 0 : i32
    %c0_i32_2 = arith.constant 0 : i32
    return %c0_i32, %c0_i32_0, %c0_i32_1 : i32, i32, i32
  }
  func.func @transform_9(%arg0: i32) -> (i32, i32, i32) {
    %c0_i32 = arith.constant 0 : i32
    %c0_i32_0 = arith.constant 0 : i32
    %c0_i32_1 = arith.constant 0 : i32
    %c0_i32_2 = arith.constant 0 : i32
    return %c0_i32, %c0_i32_0, %c0_i32_1 : i32, i32, i32
  }
  func.func @transform_10(%arg0: i32) -> (i32, i32, i32) {
    %c0_i32 = arith.constant 0 : i32
    %c0_i32_0 = arith.constant 0 : i32
    %c0_i32_1 = arith.constant 0 : i32
    %c0_i32_2 = arith.constant 0 : i32
    return %c0_i32, %c0_i32_0, %c0_i32_1 : i32, i32, i32
  }
  func.func @transform_11(%arg0: i32) -> (i32, i32, i32, i32) {
    %c0_i32 = arith.constant 0 : i32
    %c0_i32_0 = arith.constant 0 : i32
    %c0_i32_1 = arith.constant 0 : i32
    %c0_i32_2 = arith.constant 0 : i32
    %c0_i32_3 = arith.constant 0 : i32
    return %c0_i32, %c0_i32_0, %c0_i32_1, %c0_i32_2 : i32, i32, i32, i32
  }
  func.func @transform_12(%arg0: i32) -> (i32, i32, i32) {
    %c0_i32 = arith.constant 0 : i32
    %c0_i32_0 = arith.constant 0 : i32
    %c0_i32_1 = arith.constant 0 : i32
    %c0_i32_2 = arith.constant 0 : i32
    return %c0_i32, %c0_i32_0, %c0_i32_1 : i32, i32, i32
  }
  func.func @transform_13(%arg0: i32) -> (i32, i32) {
    %c0_i32 = arith.constant 0 : i32
    %c0_i32_0 = arith.constant 0 : i32
    %c0_i32_1 = arith.constant 0 : i32
    return %c0_i32, %c0_i32_0 : i32, i32
  }
  func.func @transform_14(%arg0: i32) -> (i32, i32) {
    %c0_i32 = arith.constant 0 : i32
    %c0_i32_0 = arith.constant 0 : i32
    %c0_i32_1 = arith.constant 0 : i32
    return %c0_i32, %c0_i32_0 : i32, i32
  }
  func.func @transform_15(%arg0: i32) -> (i32, i32, i32) {
    %c0_i32 = arith.constant 0 : i32
    %c0_i32_0 = arith.constant 0 : i32
    %c0_i32_1 = arith.constant 0 : i32
    return %arg0, %c0_i32, %c0_i32_0 : i32, i32, i32
  }
}

</mosaic_0001>

<llo_original>
// kernel: _lambda_.5
$region0: #{_lambda_.5}
  #allocation0 [shape = 'u32[]', space=smem, size = 0x4, offset = 0x4, fixed_abs, tag = 'smem constant byte address 0x4 - core index']
  #allocation1 [shape = 'u32[72,128]{1,0:T(1,128)}', space=vmem, size = 0x9000, scoped, tag = 'internal scratch']
  %s0 = inlined_call_operand.vmem [shape: f32[2,4,128], index: 0, kind: input, shape index: {}]
  %s1 = inlined_call_operand.vmem [shape: f32[128,32], index: 1, kind: input, shape index: {}]
  %s2 = inlined_call_operand.vmem [shape: f32[1,128], index: 2, kind: input, shape index: {}]
  %s3 = inlined_call_operand.vmem [shape: f32[1,128], index: 3, kind: input, shape index: {}]
  %s4 = inlined_call_operand.vmem [shape: bf16[128,32], index: 4, kind: input, shape index: {}]
  %s5 = inlined_call_operand.vmem [shape: f32[1,32], index: 5, kind: input, shape index: {}]
  %s6 = inlined_call_operand.vmem [shape: f32[32,16], index: 6, kind: input, shape index: {}]
  %s7 = inlined_call_operand.vmem [shape: f32[2,1,32], index: 7, kind: input, shape index: {}]
  %s8 = inlined_call_operand.vmem [shape: f32[2,1,32], index: 8, kind: input, shape index: {}, may-alias: {8,12}]
  %s9 = inlined_call_operand.vmem [shape: bf16[2,32,96], index: 9, kind: input, shape index: {}]
  %s10 = inlined_call_operand.vmem [shape: f32[2,1,96], index: 10, kind: input, shape index: {}]
  %s11 = inlined_call_operand.vmem [shape: bf16[2,4,8,32], index: 11, kind: input, shape index: {}]
  %s12 = inlined_call_operand.vmem [shape: f32[2,1,32], index: 12, kind: input, shape index: {}, may-alias: {8,12}]
  %s13 = inlined_call_operand.vmem [shape: f32[32,5], index: 13, kind: input, shape index: {}]
  %s14 = inlined_call_operand.vmem [shape: f32[1,5], index: 14, kind: input, shape index: {}]
  %s15 = inlined_call_operand.hbm [shape: f32[2,1,5], index: 15, kind: output, shape index: {}]
  %s16 = sld [smem:[#allocation0]]
  $region93: #{_lambda_.5} parent=0
    _
  %s18 = ssub.s32 1, %s16
  %s19 = scalar_select 0, %s18, %s16
  $region1: #{_lambda_.5} parent=0
    #allocation2 [shape = 'u8[1024]{0}', space=vmem, size = 0x400, scoped, tag = 'output window, operand 0']
    #allocation3 [shape = 's32[2]{0}', space=sflag, size = 0x8, scoped, tag = 'scoped memory for _lambda_.5']
    %20 = vsyncpa [#allocation3], 0
    %s21 = scalar_lea.sflag [#allocation3], 1
    %22 = vsyncpa %s21, 0
    loop: start=0, step=1, limit=4
    $region2: #{_lambda_.5} parent=1 // loop_pre_header
      _
    $region3: #{_lambda_.5} parent=1 // loop_header
      %s24 = sphi 0, %s28
      %p25 = scmp.ge.s32.totalorder %s24, 4
      %s34 = sphi 0, %s36
      %s37 = sphi 0, %s34
      %s38 = sphi 0, %s37
      %s54 = sphi 0, %s38
      %s58 = sphi 0, %s58
      %s60 = sphi 0, %s58
      %s61 = sphi 0, %s60
      %s75 = sphi 0, %s61
      %s79 = sphi 0, %s79
      %s81 = sphi 0, %s79
      %s82 = sphi 0, %s81
      %s96 = sphi 0, %s82
      %s100 = sphi 0, %s100
      %s102 = sphi 0, %s100
      %s103 = sphi 0, %s102
      %s117 = sphi 0, %s103
      %s121 = sphi 0, %s121
      %s123 = sphi 0, %s121
      %s124 = sphi 0, %s123
      %s138 = sphi 0, %s124
      %s142 = sphi 0, %s142
      %s144 = sphi 0, %s142
      %s145 = sphi 0, %s144
      %s159 = sphi 0, %s145
      %s163 = sphi 0, %s163
      %s165 = sphi 0, %s163
      %s166 = sphi 0, %s165
      %s180 = sphi 0, %s166
      %s184 = sphi 0, %s184
      %s186 = sphi 0, %s184
      %s187 = sphi 0, %s186
      %s201 = sphi 0, %s187
      %s205 = sphi 0, %s205
      %s207 = sphi 0, %s205
      %s208 = sphi 0, %s207
      %s222 = sphi 0, %s208
      %s226 = sphi 0, %s226
      %s228 = sphi 0, %s226
      %s229 = sphi 0, %s228
      %s243 = sphi 0, %s229
      %s247 = sphi 0, %s247
      %s249 = sphi 0, %s247
      %s250 = sphi 0, %s249
      %s264 = sphi 0, %s250
      %s268 = sphi 0, %s268
      %s270 = sphi 0, %s268
      %s271 = sphi 0, %s270
      %s285 = sphi 0, %s271
      %s289 = sphi 0, %s289
      %s291 = sphi 0, %s289
      %s292 = sphi 0, %s291
      %s306 = sphi 0, %s292
      %s310 = sphi 0, %s310
      %s312 = sphi 0, %s310
      %s313 = sphi 0, %s312
      %s327 = sphi 0, %s313
      %s331 = sphi 0, %s331
      %s333 = sphi 0, %s331
      %s334 = sphi 0, %s333
      %s348 = sphi 0, %s334
      %s354 = sphi 0, %s356
      %s357 = sphi 0, %s354
      %s358 = sphi 0, %s357
      %s374 = sphi 0, %s358
    $region4: #{_lambda_.5} parent=1 // loop_header_branch
      %27 = sbr.rel (%p25) target = $region8
    $region5: #{_lambda_.5} parent=1 // loop_body
      %s29 = ssub.s32 %s24, 1
      %s30 = ssub.s32 %s24, 2
      %s31 = sadd.s32 %s24, 1
      %s32 = ssub.s32 %s24, %s31
      %p33 = scmp.eq.s32.totalorder %s32, 0
      %s35 = sadd.s32 %s34, 1
      %s36 = scalar_select %p33, %s34, %s35
      %p39 = pneg %p33
      %p40 = scmp.eq.s32.totalorder %s24, 1
      %p41 = por %p39, %p40
      %p42 = scmp.ne.s32.totalorder %s34, %s37
      %p43 = scmp.eq.s32.totalorder %s24, 0
      %p44 = por %p42, %p43
      %p45 = scmp.ne.s32.totalorder %s34, %s37
      %p46 = scmp.eq.s32.totalorder %s29, 1
      %p47 = por %p45, %p46
      %p48 = scmp.ne.s32.totalorder %s37, %s38
      %p49 = scmp.eq.s32.totalorder %s29, 0
      %p50 = por %p48, %p49
      %p51 = scmp.ne.s32.totalorder %s37, %s38
      %p52 = scmp.eq.s32.totalorder %s30, 1
      %p53 = por %p51, %p52
      %p55 = scmp.ne.s32.totalorder %s38, %s54
      %p56 = scmp.eq.s32.totalorder %s30, 0
      %p57 = por %p55, %p56
      %s59 = sadd.s32 %s58, 1
      %p62 = scmp.eq.s32.totalorder %s24, 1
      %p63 = scmp.ne.s32.totalorder %s58, %s60
      %p64 = scmp.eq.s32.totalorder %s24, 0
      %p65 = por %p63, %p64
      %p66 = scmp.ne.s32.totalorder %s58, %s60
      %p67 = scmp.eq.s32.totalorder %s29, 1
      %p68 = por %p66, %p67
      %p69 = scmp.ne.s32.totalorder %s60, %s61
      %p70 = scmp.eq.s32.totalorder %s29, 0
      %p71 = por %p69, %p70
      %p72 = scmp.ne.s32.totalorder %s60, %s61
      %p73 = scmp.eq.s32.totalorder %s30, 1
      %p74 = por %p72, %p73
      %p76 = scmp.ne.s32.totalorder %s61, %s75
      %p77 = scmp.eq.s32.totalorder %s30, 0
      %p78 = por %p76, %p77
      %s80 = sadd.s32 %s79, 1
      %p83 = scmp.eq.s32.totalorder %s24, 1
      %p84 = scmp.ne.s32.totalorder %s79, %s81
      %p85 = scmp.eq.s32.totalorder %s24, 0
      %p86 = por %p84, %p85
      %p87 = scmp.ne.s32.totalorder %s79, %s81
      %p88 = scmp.eq.s32.totalorder %s29, 1
      %p89 = por %p87, %p88
      %p90 = scmp.ne.s32.totalorder %s81, %s82
      %p91 = scmp.eq.s32.totalorder %s29, 0
      %p92 = por %p90, %p91
      %p93 = scmp.ne.s32.totalorder %s81, %s82
      %p94 = scmp.eq.s32.totalorder %s30, 1
      %p95 = por %p93, %p94
      %p97 = scmp.ne.s32.totalorder %s82, %s96
      %p98 = scmp.eq.s32.totalorder %s30, 0
      %p99 = por %p97, %p98
      %s101 = sadd.s32 %s100, 1
      %p104 = scmp.eq.s32.totalorder %s24, 1
      %p105 = scmp.ne.s32.totalorder %s100, %s102
      %p106 = scmp.eq.s32.totalorder %s24, 0
      %p107 = por %p105, %p106
      %p108 = scmp.ne.s32.totalorder %s100, %s102
      %p109 = scmp.eq.s32.totalorder %s29, 1
      %p110 = por %p108, %p109
      %p111 = scmp.ne.s32.totalorder %s102, %s103
      %p112 = scmp.eq.s32.totalorder %s29, 0
      %p113 = por %p111, %p112
      %p114 = scmp.ne.s32.totalorder %s102, %s103
      %p115 = scmp.eq.s32.totalorder %s30, 1
      %p116 = por %p114, %p115
      %p118 = scmp.ne.s32.totalorder %s103, %s117
      %p119 = scmp.eq.s32.totalorder %s30, 0
      %p120 = por %p118, %p119
      %s122 = sadd.s32 %s121, 1
      %p125 = scmp.eq.s32.totalorder %s24, 1
      %p126 = scmp.ne.s32.totalorder %s121, %s123
      %p127 = scmp.eq.s32.totalorder %s24, 0
      %p128 = por %p126, %p127
      %p129 = scmp.ne.s32.totalorder %s121, %s123
      %p130 = scmp.eq.s32.totalorder %s29, 1
      %p131 = por %p129, %p130
      %p132 = scmp.ne.s32.totalorder %s123, %s124
      %p133 = scmp.eq.s32.totalorder %s29, 0
      %p134 = por %p132, %p133
      %p135 = scmp.ne.s32.totalorder %s123, %s124
      %p136 = scmp.eq.s32.totalorder %s30, 1
      %p137 = por %p135, %p136
      %p139 = scmp.ne.s32.totalorder %s124, %s138
      %p140 = scmp.eq.s32.totalorder %s30, 0
      %p141 = por %p139, %p140
      %s143 = sadd.s32 %s142, 1
      %p146 = scmp.eq.s32.totalorder %s24, 1
      %p147 = scmp.ne.s32.totalorder %s142, %s144
      %p148 = scmp.eq.s32.totalorder %s24, 0
      %p149 = por %p147, %p148
      %p150 = scmp.ne.s32.totalorder %s142, %s144
      %p151 = scmp.eq.s32.totalorder %s29, 1
      %p152 = por %p150, %p151
      %p153 = scmp.ne.s32.totalorder %s144, %s145
      %p154 = scmp.eq.s32.totalorder %s29, 0
      %p155 = por %p153, %p154
      %p156 = scmp.ne.s32.totalorder %s144, %s145
      %p157 = scmp.eq.s32.totalorder %s30, 1
      %p158 = por %p156, %p157
      %p160 = scmp.ne.s32.totalorder %s145, %s159
      %p161 = scmp.eq.s32.totalorder %s30, 0
      %p162 = por %p160, %p161
      %s164 = sadd.s32 %s163, 1
      %p167 = scmp.eq.s32.totalorder %s24, 1
      %p168 = scmp.ne.s32.totalorder %s163, %s165
      %p169 = scmp.eq.s32.totalorder %s24, 0
      %p170 = por %p168, %p169
      %p171 = scmp.ne.s32.totalorder %s163, %s165
      %p172 = scmp.eq.s32.totalorder %s29, 1
      %p173 = por %p171, %p172
      %p174 = scmp.ne.s32.totalorder %s165, %s166
      %p175 = scmp.eq.s32.totalorder %s29, 0
      %p176 = por %p174, %p175
      %p177 = scmp.ne.s32.totalorder %s165, %s166
      %p178 = scmp.eq.s32.totalorder %s30, 1
      %p179 = por %p177, %p178
      %p181 = scmp.ne.s32.totalorder %s166, %s180
      %p182 = scmp.eq.s32.totalorder %s30, 0
      %p183 = por %p181, %p182
      %s185 = sadd.s32 %s184, 1
      %p188 = scmp.eq.s32.totalorder %s24, 1
      %p189 = scmp.ne.s32.totalorder %s184, %s186
      %p190 = scmp.eq.s32.totalorder %s24, 0
      %p191 = por %p189, %p190
      %p192 = scmp.ne.s32.totalorder %s184, %s186
      %p193 = scmp.eq.s32.totalorder %s29, 1
      %p194 = por %p192, %p193
      %p195 = scmp.ne.s32.totalorder %s186, %s187
      %p196 = scmp.eq.s32.totalorder %s29, 0
      %p197 = por %p195, %p196
      %p198 = scmp.ne.s32.totalorder %s186, %s187
      %p199 = scmp.eq.s32.totalorder %s30, 1
      %p200 = por %p198, %p199
      %p202 = scmp.ne.s32.totalorder %s187, %s201
      %p203 = scmp.eq.s32.totalorder %s30, 0
      %p204 = por %p202, %p203
      %s206 = sadd.s32 %s205, 1
      %p209 = scmp.eq.s32.totalorder %s24, 1
      %p210 = scmp.ne.s32.totalorder %s205, %s207
      %p211 = scmp.eq.s32.totalorder %s24, 0
      %p212 = por %p210, %p211
      %p213 = scmp.ne.s32.totalorder %s205, %s207
      %p214 = scmp.eq.s32.totalorder %s29, 1
      %p215 = por %p213, %p214
      %p216 = scmp.ne.s32.totalorder %s207, %s208
      %p217 = scmp.eq.s32.totalorder %s29, 0
      %p218 = por %p216, %p217
      %p219 = scmp.ne.s32.totalorder %s207, %s208
      %p220 = scmp.eq.s32.totalorder %s30, 1
      %p221 = por %p219, %p220
      %p223 = scmp.ne.s32.totalorder %s208, %s222
      %p224 = scmp.eq.s32.totalorder %s30, 0
      %p225 = por %p223, %p224
      %s227 = sadd.s32 %s226, 1
      %p230 = scmp.eq.s32.totalorder %s24, 1
      %p231 = scmp.ne.s32.totalorder %s226, %s228
      %p232 = scmp.eq.s32.totalorder %s24, 0
      %p233 = por %p231, %p232
      %p234 = scmp.ne.s32.totalorder %s226, %s228
      %p235 = scmp.eq.s32.totalorder %s29, 1
      %p236 = por %p234, %p235
      %p237 = scmp.ne.s32.totalorder %s228, %s229
      %p238 = scmp.eq.s32.totalorder %s29, 0
      %p239 = por %p237, %p238
      %p240 = scmp.ne.s32.totalorder %s228, %s229
      %p241 = scmp.eq.s32.totalorder %s30, 1
      %p242 = por %p240, %p241
      %p244 = scmp.ne.s32.totalorder %s229, %s243
      %p245 = scmp.eq.s32.totalorder %s30, 0
      %p246 = por %p244, %p245
      %s248 = sadd.s32 %s247, 1
      %p251 = scmp.eq.s32.totalorder %s24, 1
      %p252 = scmp.ne.s32.totalorder %s247, %s249
      %p253 = scmp.eq.s32.totalorder %s24, 0
      %p254 = por %p252, %p253
      %p255 = scmp.ne.s32.totalorder %s247, %s249
      %p256 = scmp.eq.s32.totalorder %s29, 1
      %p257 = por %p255, %p256
      %p258 = scmp.ne.s32.totalorder %s249, %s250
      %p259 = scmp.eq.s32.totalorder %s29, 0
      %p260 = por %p258, %p259
      %p261 = scmp.ne.s32.totalorder %s249, %s250
      %p262 = scmp.eq.s32.totalorder %s30, 1
      %p263 = por %p261, %p262
      %p265 = scmp.ne.s32.totalorder %s250, %s264
      %p266 = scmp.eq.s32.totalorder %s30, 0
      %p267 = por %p265, %p266
      %s269 = sadd.s32 %s268, 1
      %p272 = scmp.eq.s32.totalorder %s24, 1
      %p273 = scmp.ne.s32.totalorder %s268, %s270
      %p274 = scmp.eq.s32.totalorder %s24, 0
      %p275 = por %p273, %p274
      %p276 = scmp.ne.s32.totalorder %s268, %s270
      %p277 = scmp.eq.s32.totalorder %s29, 1
      %p278 = por %p276, %p277
      %p279 = scmp.ne.s32.totalorder %s270, %s271
      %p280 = scmp.eq.s32.totalorder %s29, 0
      %p281 = por %p279, %p280
      %p282 = scmp.ne.s32.totalorder %s270, %s271
      %p283 = scmp.eq.s32.totalorder %s30, 1
      %p284 = por %p282, %p283
      %p286 = scmp.ne.s32.totalorder %s271, %s285
      %p287 = scmp.eq.s32.totalorder %s30, 0
      %p288 = por %p286, %p287
      %s290 = sadd.s32 %s289, 1
      %p293 = scmp.eq.s32.totalorder %s24, 1
      %p294 = scmp.ne.s32.totalorder %s289, %s291
      %p295 = scmp.eq.s32.totalorder %s24, 0
      %p296 = por %p294, %p295
      %p297 = scmp.ne.s32.totalorder %s289, %s291
      %p298 = scmp.eq.s32.totalorder %s29, 1
      %p299 = por %p297, %p298
      %p300 = scmp.ne.s32.totalorder %s291, %s292
      %p301 = scmp.eq.s32.totalorder %s29, 0
      %p302 = por %p300, %p301
      %p303 = scmp.ne.s32.totalorder %s291, %s292
      %p304 = scmp.eq.s32.totalorder %s30, 1
      %p305 = por %p303, %p304
      %p307 = scmp.ne.s32.totalorder %s292, %s306
      %p308 = scmp.eq.s32.totalorder %s30, 0
      %p309 = por %p307, %p308
      %s311 = sadd.s32 %s310, 1
      %p314 = scmp.eq.s32.totalorder %s24, 1
      %p315 = scmp.ne.s32.totalorder %s310, %s312
      %p316 = scmp.eq.s32.totalorder %s24, 0
      %p317 = por %p315, %p316
      %p318 = scmp.ne.s32.totalorder %s310, %s312
      %p319 = scmp.eq.s32.totalorder %s29, 1
      %p320 = por %p318, %p319
      %p321 = scmp.ne.s32.totalorder %s312, %s313
      %p322 = scmp.eq.s32.totalorder %s29, 0
      %p323 = por %p321, %p322
      %p324 = scmp.ne.s32.totalorder %s312, %s313
      %p325 = scmp.eq.s32.totalorder %s30, 1
      %p326 = por %p324, %p325
      %p328 = scmp.ne.s32.totalorder %s313, %s327
      %p329 = scmp.eq.s32.totalorder %s30, 0
      %p330 = por %p328, %p329
      %s332 = sadd.s32 %s331, 1
      %p335 = scmp.eq.s32.totalorder %s24, 1
      %p336 = scmp.ne.s32.totalorder %s331, %s333
      %p337 = scmp.eq.s32.totalorder %s24, 0
      %p338 = por %p336, %p337
      %p339 = scmp.ne.s32.totalorder %s331, %s333
      %p340 = scmp.eq.s32.totalorder %s29, 1
      %p341 = por %p339, %p340
      %p342 = scmp.ne.s32.totalorder %s333, %s334
      %p343 = scmp.eq.s32.totalorder %s29, 0
      %p344 = por %p342, %p343
      %p345 = scmp.ne.s32.totalorder %s333, %s334
      %p346 = scmp.eq.s32.totalorder %s30, 1
      %p347 = por %p345, %p346
      %p349 = scmp.ne.s32.totalorder %s334, %s348
      %p350 = scmp.eq.s32.totalorder %s30, 0
      %p351 = por %p349, %p350
      %s352 = ssub.s32 %s24, %s31
      %p353 = scmp.eq.s32.totalorder %s352, 0
      %s355 = sadd.s32 %s354, 1
      %s356 = scalar_select %p353, %s354, %s355
      %p359 = pneg %p353
      %p360 = scmp.eq.s32.totalorder %s24, 1
      %p361 = por %p359, %p360
      %p362 = scmp.ne.s32.totalorder %s354, %s357
      %p363 = scmp.eq.s32.totalorder %s24, 0
      %p364 = por %p362, %p363
      %p365 = scmp.ne.s32.totalorder %s354, %s357
      %p366 = scmp.eq.s32.totalorder %s29, 1
      %p367 = por %p365, %p366
      %p368 = scmp.ne.s32.totalorder %s357, %s358
      %p369 = scmp.eq.s32.totalorder %s29, 0
      %p370 = por %p368, %p369
      %p371 = scmp.ne.s32.totalorder %s357, %s358
      %p372 = scmp.eq.s32.totalorder %s30, 1
      %p373 = por %p371, %p372
      %p375 = scmp.ne.s32.totalorder %s358, %s374
      %p376 = scmp.eq.s32.totalorder %s30, 0
      %p377 = por %p375, %p376
      %p378 = scmp.le.s32.totalorder 1, %s24
      %p379 = scmp.lt.s32.totalorder %s24, 3
      %p380 = pnand %p378, %p379
      %p381 = pneg %p380
      // Predicated region
      $region9: #{_lambda_.5} parent=5 // pred_check
        _
      $region10: #{_lambda_.5} parent=5 // pred_check_branch
        %383 = sbr.rel (%p380) target = $region12
      $region11: #{_lambda_.5} parent=5 // pred_region
        %s384 = ssub.s32 %s24, 1
        // Predicated region
        $region13: #{_lambda_.5} parent=11 // pred_check
          %p385 = pneg %p71
        $region14: #{_lambda_.5} parent=11 // pred_check_branch
          %387 = sbr.rel (%p385) target = $region16
        $region15: #{_lambda_.5} parent=11 // pred_region
          _
        $region16: #{_lambda_.5} parent=11 // pred_fallthru
          _
        // Predicated region
        $region17: #{_lambda_.5} parent=11 // pred_check
          %p388 = pneg %p92
        $region18: #{_lambda_.5} parent=11 // pred_check_branch
          %390 = sbr.rel (%p388) target = $region20
        $region19: #{_lambda_.5} parent=11 // pred_region
          _
        $region20: #{_lambda_.5} parent=11 // pred_fallthru
          _
        // Predicated region
        $region21: #{_lambda_.5} parent=11 // pred_check
          %p391 = pneg %p113
        $region22: #{_lambda_.5} parent=11 // pred_check_branch
          %393 = sbr.rel (%p391) target = $region24
        $region23: #{_lambda_.5} parent=11 // pred_region
          _
        $region24: #{_lambda_.5} parent=11 // pred_fallthru
          _
        // Predicated region
        $region25: #{_lambda_.5} parent=11 // pred_check
          %p394 = pneg %p134
        $region26: #{_lambda_.5} parent=11 // pred_check_branch
          %396 = sbr.rel (%p394) target = $region28
        $region27: #{_lambda_.5} parent=11 // pred_region
          _
        $region28: #{_lambda_.5} parent=11 // pred_fallthru
          _
        // Predicated region
        $region29: #{_lambda_.5} parent=11 // pred_check
          %p397 = pneg %p155
        $region30: #{_lambda_.5} parent=11 // pred_check_branch
          %399 = sbr.rel (%p397) target = $region32
        $region31: #{_lambda_.5} parent=11 // pred_region
          _
        $region32: #{_lambda_.5} parent=11 // pred_fallthru
          _
        // Predicated region
        $region33: #{_lambda_.5} parent=11 // pred_check
          %p400 = pneg %p176
        $region34: #{_lambda_.5} parent=11 // pred_check_branch
          %402 = sbr.rel (%p400) target = $region36
        $region35: #{_lambda_.5} parent=11 // pred_region
          _
        $region36: #{_lambda_.5} parent=11 // pred_fallthru
          _
        // Predicated region
        $region37: #{_lambda_.5} parent=11 // pred_check
          %p403 = pneg %p197
        $region38: #{_lambda_.5} parent=11 // pred_check_branch
          %405 = sbr.rel (%p403) target = $region40
        $region39: #{_lambda_.5} parent=11 // pred_region
          _
        $region40: #{_lambda_.5} parent=11 // pred_fallthru
          _
        // Predicated region
        $region41: #{_lambda_.5} parent=11 // pred_check
          %p406 = pneg %p218
        $region42: #{_lambda_.5} parent=11 // pred_check_branch
          %408 = sbr.rel (%p406) target = $region44
        $region43: #{_lambda_.5} parent=11 // pred_region
          _
        $region44: #{_lambda_.5} parent=11 // pred_fallthru
          _
        // Predicated region
        $region45: #{_lambda_.5} parent=11 // pred_check
          %p409 = pneg %p239
        $region46: #{_lambda_.5} parent=11 // pred_check_branch
          %411 = sbr.rel (%p409) target = $region48
        $region47: #{_lambda_.5} parent=11 // pred_region
          _
        $region48: #{_lambda_.5} parent=11 // pred_fallthru
          _
        // Predicated region
        $region49: #{_lambda_.5} parent=11 // pred_check
          %p412 = pneg %p260
        $region50: #{_lambda_.5} parent=11 // pred_check_branch
          %414 = sbr.rel (%p412) target = $region52
        $region51: #{_lambda_.5} parent=11 // pred_region
          _
        $region52: #{_lambda_.5} parent=11 // pred_fallthru
          _
        // Predicated region
        $region53: #{_lambda_.5} parent=11 // pred_check
          %p415 = pneg %p281
        $region54: #{_lambda_.5} parent=11 // pred_check_branch
          %417 = sbr.rel (%p415) target = $region56
        $region55: #{_lambda_.5} parent=11 // pred_region
          _
        $region56: #{_lambda_.5} parent=11 // pred_fallthru
          _
        // Predicated region
        $region57: #{_lambda_.5} parent=11 // pred_check
          %p418 = pneg %p302
        $region58: #{_lambda_.5} parent=11 // pred_check_branch
          %420 = sbr.rel (%p418) target = $region60
        $region59: #{_lambda_.5} parent=11 // pred_region
          _
        $region60: #{_lambda_.5} parent=11 // pred_fallthru
          _
        // Predicated region
        $region61: #{_lambda_.5} parent=11 // pred_check
          %p421 = pneg %p323
        $region62: #{_lambda_.5} parent=11 // pred_check_branch
          %423 = sbr.rel (%p421) target = $region64
        $region63: #{_lambda_.5} parent=11 // pred_region
          _
        $region64: #{_lambda_.5} parent=11 // pred_fallthru
          _
        // Predicated region
        $region65: #{_lambda_.5} parent=11 // pred_check
          %p424 = pneg %p344
        $region66: #{_lambda_.5} parent=11 // pred_check_branch
          %426 = sbr.rel (%p424) target = $region68
        $region67: #{_lambda_.5} parent=11 // pred_region
          _
        $region68: #{_lambda_.5} parent=11 // pred_fallthru
          _
      $region12: #{_lambda_.5} parent=5 // pred_fallthru
        _
      %p427 = scmp.lt.s32.totalorder %s24, 2
      // Predicated region
      $region69: #{_lambda_.5} parent=5 // pred_check
        %p428 = pneg %p427
      $region70: #{_lambda_.5} parent=5 // pred_check_branch
        %430 = sbr.rel (%p428) target = $region72
      $region71: #{_lambda_.5} parent=5 // pred_region
        // Predicated region
        $region73: #{_lambda_.5} parent=71 // pred_check
          %p431 = pneg %p44
        $region74: #{_lambda_.5} parent=71 // pred_check_branch
          %433 = sbr.rel (%p431) target = $region76
        $region75: #{_lambda_.5} parent=71 // pred_region
          %p434 = scmp.lt.s32.totalorder %s24, 1
          %s435 = scalar_select %p434, %s24, 1
          %s436 = smul.addr %s435, 4
          %s437 = scalar_lea.vmem %s0, %s436
        $region76: #{_lambda_.5} parent=71 // pred_fallthru
          _
      $region72: #{_lambda_.5} parent=5 // pred_fallthru
        _
      %p438 = scmp.le.s32.totalorder 1, %s24
      %p439 = scmp.lt.s32.totalorder %s24, 3
      %p440 = pnand %p438, %p439
      %p441 = pneg %p440
      // Predicated region
      $region77: #{_lambda_.5} parent=5 // pred_check
        _
      $region78: #{_lambda_.5} parent=5 // pred_check_branch
        %443 = sbr.rel (%p440) target = $region80
      $region79: #{_lambda_.5} parent=5 // pred_region
        %s444 = ssub.s32 %s24, 1
        %p445 = scmp.lt.s32.totalorder %s29, 1
        %s446 = scalar_select %p445, %s29, 1
        %s447 = smul.addr %s446, 4
        %s448 = scalar_lea.vmem %s0, %s447
        %p449 = pneg %p50
        %p450 = pneg %p47
        %p451 = pneg %p71
        %p452 = pneg %p68
        %p453 = pneg %p92
        %p454 = pneg %p89
        %p455 = pneg %p113
        %p456 = pneg %p110
        %p457 = pneg %p134
        %p458 = pneg %p131
        %p459 = pneg %p155
        %p460 = pneg %p152
        %p461 = pneg %p176
        %p462 = pneg %p173
        %p463 = pneg %p197
        %p464 = pneg %p194
        %p465 = pneg %p218
        %p466 = pneg %p215
        %p467 = pneg %p239
        %p468 = pneg %p236
        %p469 = pneg %p260
        %p470 = pneg %p257
        %p471 = pneg %p281
        %p472 = pneg %p278
        %p473 = pneg %p302
        %p474 = pneg %p299
        %p475 = pneg %p323
        %p476 = pneg %p320
        %p477 = pneg %p344
        %p478 = pneg %p341
        %p479 = pneg %p370
        %p480 = pneg %p367
        %s481 = sand.u32 %s357, 1
        %s482 = scalar_lea.sflag [#allocation3], %s481
        %s483 = sand.u32 %s357, 1
        %s484 = scalar_lea.vmem [#allocation2], %s483
        %p485 = scmp.lt.s32.totalorder %s29, 1
        %s486 = scalar_select %p485, %s29, 1
        %s487 = smul.addr %s486, 4
        %s488 = scalar_lea.vmem %s0, %s487
        %v490 = vld [vmem:[%s488] sm:$0xf]
        %v491 = vld [vmem:[%s1] sm:$0xff]
        %v492 = vld [vmem:[%s1 + $0x8] sm:$0xff]
        %v493 = vld [vmem:[%s1 + $0x10] sm:$0xff]
        %v494 = vld [vmem:[%s1 + $0x18] sm:$0xff]
        %v495 = vld [vmem:[%s1 + $0x20] sm:$0xff]
        %v496 = vld [vmem:[%s1 + $0x28] sm:$0xff]
        %v497 = vld [vmem:[%s1 + $0x30] sm:$0xff]
        %v498 = vld [vmem:[%s1 + $0x38] sm:$0xff]
        %v499 = vld [vmem:[%s1 + $0x40] sm:$0xff]
        %v500 = vld [vmem:[%s1 + $0x48] sm:$0xff]
        %v501 = vld [vmem:[%s1 + $0x50] sm:$0xff]
        %v502 = vld [vmem:[%s1 + $0x58] sm:$0xff]
        %v503 = vld [vmem:[%s1 + $0x60] sm:$0xff]
        %v504 = vld [vmem:[%s1 + $0x68] sm:$0xff]
        %v505 = vld [vmem:[%s1 + $0x70] sm:$0xff]
        %v506 = vld [vmem:[%s1 + $0x78] sm:$0xff]
        %v507 = vld [vmem:[%s2] sm:$0x1]
        %v508 = vld [vmem:[%s3] sm:$0x1]
        %vm509 = vcmask 1043456
        %v510 = vsel %vm509, %v490, 0.0
        %v511 = vrot.slane %v510, 4
        %v512 = vadd.f32 %v510, %v511
        %v513 = vrot.slane %v512, 2
        %v514 = vadd.f32 %v512, %v513
        %v515 = vrot.slane %v514, 1
        %v516 = vadd.f32 %v514, %v515
        %517 = vmatpush.msra.mxu0 %v506
        %518 = vmatpush.msra.mxu0 %v505
        %519 = vmatpush.msra.mxu0 %v504
        %520 = vmatpush.msra.mxu0 %v503
        %521 = vmatpush.msra.mxu0 %v502
        %522 = vmatpush.msra.mxu0 %v501
        %523 = vmatpush.msra.mxu0 %v500
        %524 = vmatpush.msra.mxu0 %v499
        %525 = vmatpush.msra.mxu0 %v498
        %526 = vmatpush.msra.mxu0 %v497
        %527 = vmatpush.msra.mxu0 %v496
        %528 = vmatpush.msra.mxu0 %v495
        %529 = vmatpush.msra.mxu0 %v494
        %530 = vmatpush.msra.mxu0 %v493
        %531 = vmatpush.msra.mxu0 %v492
        %532 = vmatpush.msra.mxu0 %v491
        %533 = vmatmul.f32.gmra.mxu0 %v516
        %v534 = vpop.f32.mrf.mxu0
        %v535 = vadd.f32 0.0, %v534
        %536 = vdwg.mxu0
        %v537 = vmul.f32 %v535, 0.0625
        %vm538 = vcmask 261120
        %v540 = vsel %vm538, %v537, 0
        %v543 = vsel %vm538, %v491, 0
        %v546 = vsel %vm538, %v492, 0
        %v549 = vsel %vm538, %v493, 0
        %v552 = vsel %vm538, %v494, 0
        %v555 = vsel %vm538, %v495, 0
        %v558 = vsel %vm538, %v496, 0
        %v561 = vsel %vm538, %v497, 0
        %v564 = vsel %vm538, %v498, 0
        %v567 = vsel %vm538, %v499, 0
        %v570 = vsel %vm538, %v500, 0
        %v573 = vsel %vm538, %v501, 0
        %v576 = vsel %vm538, %v502, 0
        %v579 = vsel %vm538, %v503, 0
        %v582 = vsel %vm538, %v504, 0
        %v585 = vsel %vm538, %v505, 0
        %v588 = vsel %vm538, %v506, 0
        %590 = vmatpush.xpose.msra.mxu0 %v588
        %591 = vmatpush.xpose.msra.mxu0 %v585
        %592 = vmatpush.xpose.msra.mxu0 %v582
        %593 = vmatpush.xpose.msra.mxu0 %v579
        %594 = vmatpush.xpose.msra.mxu0 %v576
        %595 = vmatpush.xpose.msra.mxu0 %v573
        %596 = vmatpush.xpose.msra.mxu0 %v570
        %597 = vmatpush.xpose.msra.mxu0 %v567
        %598 = vmatpush.xpose.msra.mxu0 %v564
        %599 = vmatpush.xpose.msra.mxu0 %v561
        %600 = vmatpush.xpose.msra.mxu0 %v558
        %601 = vmatpush.xpose.msra.mxu0 %v555
        %602 = vmatpush.xpose.msra.mxu0 %v552
        %603 = vmatpush.xpose.msra.mxu0 %v549
        %604 = vmatpush.xpose.msra.mxu0 %v546
        %605 = vmatpush.xpose.msra.mxu0 %v543
        %606 = vmatmul.f32.gmra.mxu0 %v540
        %v607 = vpop.f32.mrf.mxu0
        %v608 = vadd.f32 0.0, %v607
        %609 = vdwg.mxu0
        %v610 = vperm.slane %v608, 0
        %v611 = vsub.f32 %v490, %v610
        %v612 = vmul.f32 %v611, %v611
        %v613 = vsel %vm509, %v612, 0.0
        %v614 = vrot.slane %v613, 4
        %v615 = vadd.f32 %v613, %v614
        %v616 = vrot.slane %v615, 2
        %v617 = vadd.f32 %v615, %v616
        %v618 = vrot.slane %v617, 1
        %v619 = vadd.f32 %v617, %v618
        %620 = vmatpush.msra.mxu0 %v506
        %621 = vmatpush.msra.mxu0 %v505
        %622 = vmatpush.msra.mxu0 %v504
        %623 = vmatpush.msra.mxu0 %v503
        %624 = vmatpush.msra.mxu0 %v502
        %625 = vmatpush.msra.mxu0 %v501
        %626 = vmatpush.msra.mxu0 %v500
        %627 = vmatpush.msra.mxu0 %v499
        %628 = vmatpush.msra.mxu0 %v498
        %629 = vmatpush.msra.mxu0 %v497
        %630 = vmatpush.msra.mxu0 %v496
        %631 = vmatpush.msra.mxu0 %v495
        %632 = vmatpush.msra.mxu0 %v494
        %633 = vmatpush.msra.mxu0 %v493
        %634 = vmatpush.msra.mxu0 %v492
        %635 = vmatpush.msra.mxu0 %v491
        %636 = vmatmul.f32.gmra.mxu0 %v619
        %v637 = vpop.f32.mrf.mxu0
        %v638 = vadd.f32 0.0, %v637
        %639 = vdwg.mxu0
        %v640 = vmul.f32 %v638, 0.0625
        %v642 = vsel %vm538, %v640, 0
        %644 = vmatpush.xpose.msra.mxu0 %v588
        %645 = vmatpush.xpose.msra.mxu0 %v585
        %646 = vmatpush.xpose.msra.mxu0 %v582
        %647 = vmatpush.xpose.msra.mxu0 %v579
        %648 = vmatpush.xpose.msra.mxu0 %v576
        %649 = vmatpush.xpose.msra.mxu0 %v573
        %650 = vmatpush.xpose.msra.mxu0 %v570
        %651 = vmatpush.xpose.msra.mxu0 %v567
        %652 = vmatpush.xpose.msra.mxu0 %v564
        %653 = vmatpush.xpose.msra.mxu0 %v561
        %654 = vmatpush.xpose.msra.mxu0 %v558
        %655 = vmatpush.xpose.msra.mxu0 %v555
        %656 = vmatpush.xpose.msra.mxu0 %v552
        %657 = vmatpush.xpose.msra.mxu0 %v549
        %658 = vmatpush.xpose.msra.mxu0 %v546
        %659 = vmatpush.xpose.msra.mxu0 %v543
        %660 = vmatmul.f32.gmra.mxu0 %v642
        %v661 = vpop.f32.mrf.mxu0
        %v662 = vadd.f32 1e-05, %v661
        %663 = vdwg.mxu0
        %v664 = vrsqrt.pop %v662
        %v665 = vmul.f32 %v664, %v662
        %v666 = vmul.f32 %v665, %v664
        %v667 = vmul.f32 0.5, %v666
        %v668 = vsub.f32 1.5, %v667
        %v669 = vmul.f32 %v664, %v668
        %vm670 = vweird.f32 %v662
        %vm671 = vweird.f32 %v664
        %vm672 = vmor %vm670, %vm671
        %v673 = vsel %vm672, %v664, %v669
        %v674 = vperm.slane %v673, 0
        %v675 = vmul.f32 %v611, %v674
        %v677 = vperm.slane %v507, 0
        %v679 = vmul.f32 %v675, %v677
        %v681 = vperm.slane %v508, 0
        %v683 = vadd.f32 %v679, %v681
        %v684 = vsub.f32 0.0, %v683
        %v685 = vmul.f32 %v684, 1.442695
        %v686 = vpow.pop %v685
        %v687 = vadd.f32 %v686, 1.0
        %v688 = vrcp.pop %v687
        %v689 = vmul.f32 %v687, %v688
        %v690 = vsub.f32 1.0, %v689
        %v691 = vmul.f32 %v688, %v690
        %v692 = vadd.f32 %v688, %v691
        %vm693 = vweird.f32 %v687
        %vm694 = vweird.f32 %v688
        %vm695 = vmor %vm693, %vm694
        %v696 = vsel %vm695, %v688, %v692
        %v697 = vand.u32 2147483647, %v687
        %vm698 = vcmp.eq.f32.partialorder %v697, 8.507059e+37
        %v699 = vand.u32 %v687, 2147483648
        %v700 = vor.u32 1.1754944e-38, %v699
        %v701 = vsel %vm698, %v700, %v696
        %v702 = vmul.f32 1.0, %v701
        %v703 = vmul.f32 %v683, %v702
        %v704 = vpack.c.bf16 %v703, %v703
        %v705 = vld [vmem:[%s4] sm:$0xf]
        %v706 = vld [vmem:[%s4 + $0x4] sm:$0xf]
        %v707 = vld [vmem:[%s4 + $0x8] sm:$0xf]
        %v708 = vld [vmem:[%s4 + $0xc] sm:$0xf]
        %v709 = vld [vmem:[%s4 + $0x10] sm:$0xf]
        %v710 = vld [vmem:[%s4 + $0x14] sm:$0xf]
        %v711 = vld [vmem:[%s4 + $0x18] sm:$0xf]
        %v712 = vld [vmem:[%s4 + $0x1c] sm:$0xf]
        %v713 = vld [vmem:[%s4 + $0x20] sm:$0xf]
        %v714 = vld [vmem:[%s4 + $0x24] sm:$0xf]
        %v715 = vld [vmem:[%s4 + $0x28] sm:$0xf]
        %v716 = vld [vmem:[%s4 + $0x2c] sm:$0xf]
        %v717 = vld [vmem:[%s4 + $0x30] sm:$0xf]
        %v718 = vld [vmem:[%s4 + $0x34] sm:$0xf]
        %v719 = vld [vmem:[%s4 + $0x38] sm:$0xf]
        %v720 = vld [vmem:[%s4 + $0x3c] sm:$0xf]
        %v721 = vld [vmem:[%s5] sm:$0x1]
        %v723 = vperm.slane %v721, 0
        %v741 = vunpack.c.l.b16 %v705
        %v742 = vunpack.c.l.b16 %v706
        %v743 = vunpack.c.l.b16 %v707
        %v744 = vunpack.c.l.b16 %v708
        %v745 = vunpack.c.l.b16 %v709
        %v746 = vunpack.c.l.b16 %v710
        %v747 = vunpack.c.l.b16 %v711
        %v748 = vunpack.c.l.b16 %v712
        %v749 = vunpack.c.l.b16 %v713
        %v750 = vunpack.c.l.b16 %v714
        %v751 = vunpack.c.l.b16 %v715
        %v752 = vunpack.c.l.b16 %v716
        %v753 = vunpack.c.l.b16 %v717
        %v754 = vunpack.c.l.b16 %v718
        %v755 = vunpack.c.l.b16 %v719
        %v756 = vunpack.c.l.b16 %v720
        %v757 = vpack.c.b16 %v742, %v741
        %v758 = vpack.c.b16 %v744, %v743
        %v759 = vpack.c.b16 %v746, %v745
        %v760 = vpack.c.b16 %v748, %v747
        %v761 = vpack.c.b16 %v750, %v749
        %v762 = vpack.c.b16 %v752, %v751
        %v763 = vpack.c.b16 %v754, %v753
        %v764 = vpack.c.b16 %v756, %v755
        %773 = vmatpush.bf16.msra.mxu0 %v764
        %774 = vmatpush.bf16.msra.mxu0 %v763
        %775 = vmatpush.bf16.msra.mxu0 %v762
        %776 = vmatpush.bf16.msra.mxu0 %v761
        %777 = vmatpush.bf16.msra.mxu0 %v760
        %778 = vmatpush.bf16.msra.mxu0 %v759
        %779 = vmatpush.bf16.msra.mxu0 %v758
        %780 = vmatpush.bf16.msra.mxu0 %v757
        %781 = vmatmul.bf16.gmra.mxu0 %v704
        %v782 = vpop.f32.mrf.mxu0
        %v783 = vadd.f32 %v723, %v782
        %v784 = vpop.f32.mrf.mxu0
        %785 = vdwg.mxu0
        %v786 = vld [vmem:[%s6] sm:$0xff]
        %v787 = vld [vmem:[%s6 + $0x8] sm:$0xff]
        %v788 = vld [vmem:[%s6 + $0x10] sm:$0xff]
        %v789 = vld [vmem:[%s6 + $0x18] sm:$0xff]
        %v790 = vld [vmem:[%s7] sm:$0x1]
        %v791 = vld [vmem:[%s8] sm:$0x1]
        %v792 = vld [vmem:[%s9] sm:$0xf]
        %v793 = vld [vmem:[%s9 + $0x4] sm:$0xf]
        %v794 = vld [vmem:[%s9 + $0x8] sm:$0xf]
        %v795 = vld [vmem:[%s9 + $0xc] sm:$0xf]
        %v796 = vld [vmem:[%s10] sm:$0x1]
        %v797 = vld [vmem:[%s11] sm:$0xf]
        %v798 = vld [vmem:[%s11 + $0x4] sm:$0xf]
        %v799 = vld [vmem:[%s11 + $0x8] sm:$0xf]
        %v800 = vld [vmem:[%s11 + $0xc] sm:$0xf]
        %v801 = vld [vmem:[%s12] sm:$0x1]
        %vm802 = vcmask 257024
        %v803 = vsel %vm802, %v783, 0.0
        %v804 = vrot.slane %v803, 4
        %v805 = vadd.f32 %v803, %v804
        %v806 = vrot.slane %v805, 2
        %v807 = vadd.f32 %v805, %v806
        %v808 = vrot.slane %v807, 1
        %v809 = vadd.f32 %v807, %v808
        %v811 = vsel %vm538, %v809, 0
        %813 = vmatpush.msra.mxu0 0.0
        %814 = vmatpush.msra.mxu0 0.0
        %815 = vmatpush.msra.mxu0 0.0
        %816 = vmatpush.msra.mxu0 0.0
        %817 = vmatpush.msra.mxu0 0.0
        %818 = vmatpush.msra.mxu0 0.0
        %819 = vmatpush.msra.mxu0 0.0
        %820 = vmatpush.msra.mxu0 0.0
        %821 = vmatpush.msra.mxu0 0.0
        %822 = vmatpush.msra.mxu0 0.0
        %823 = vmatpush.msra.mxu0 0.0
        %824 = vmatpush.msra.mxu0 0.0
        %825 = vmatpush.msra.mxu0 %v789
        %826 = vmatpush.msra.mxu0 %v788
        %827 = vmatpush.msra.mxu0 %v787
        %828 = vmatpush.msra.mxu0 %v786
        %829 = vmatmul.f32.gmra.mxu0 %v811
        %v830 = vpop.f32.mrf.mxu0
        %v831 = vadd.f32 0.0, %v830
        %832 = vdwg.mxu0
        %v833 = vmul.f32 %v831, 0.125
        %vm834 = vcmask 130048
        %v836 = vsel %vm834, %v833, 0
        %v839 = vsel %vm834, %v786, 0
        %v842 = vsel %vm834, %v787, 0
        %v845 = vsel %vm834, %v788, 0
        %v848 = vsel %vm834, %v789, 0
        %850 = vmatpush.xpose.msra.mxu0 0.0
        %851 = vmatpush.xpose.msra.mxu0 0.0
        %852 = vmatpush.xpose.msra.mxu0 0.0
        %853 = vmatpush.xpose.msra.mxu0 0.0
        %854 = vmatpush.xpose.msra.mxu0 0.0
        %855 = vmatpush.xpose.msra.mxu0 0.0
        %856 = vmatpush.xpose.msra.mxu0 0.0
        %857 = vmatpush.xpose.msra.mxu0 0.0
        %858 = vmatpush.xpose.msra.mxu0 0.0
        %859 = vmatpush.xpose.msra.mxu0 0.0
        %860 = vmatpush.xpose.msra.mxu0 0.0
        %861 = vmatpush.xpose.msra.mxu0 0.0
        %862 = vmatpush.xpose.msra.mxu0 %v848
        %863 = vmatpush.xpose.msra.mxu0 %v845
        %864 = vmatpush.xpose.msra.mxu0 %v842
        %865 = vmatpush.xpose.msra.mxu0 %v839
        %866 = vmatmul.f32.gmra.mxu0 %v836
        %v867 = vpop.f32.mrf.mxu0
        %v868 = vadd.f32 0.0, %v867
        %869 = vdwg.mxu0
        %v870 = vperm.slane %v868, 0
        %v871 = vsub.f32 %v783, %v870
        %v872 = vmul.f32 %v871, %v871
        %v873 = vsel %vm802, %v872, 0.0
        %v874 = vrot.slane %v873, 4
        %v875 = vadd.f32 %v873, %v874
        %v876 = vrot.slane %v875, 2
        %v877 = vadd.f32 %v875, %v876
        %v878 = vrot.slane %v877, 1
        %v879 = vadd.f32 %v877, %v878
        %v881 = vsel %vm538, %v879, 0
        %883 = vmatpush.msra.mxu0 0.0
        %884 = vmatpush.msra.mxu0 0.0
        %885 = vmatpush.msra.mxu0 0.0
        %886 = vmatpush.msra.mxu0 0.0
        %887 = vmatpush.msra.mxu0 0.0
        %888 = vmatpush.msra.mxu0 0.0
        %889 = vmatpush.msra.mxu0 0.0
        %890 = vmatpush.msra.mxu0 0.0
        %891 = vmatpush.msra.mxu0 0.0
        %892 = vmatpush.msra.mxu0 0.0
        %893 = vmatpush.msra.mxu0 0.0
        %894 = vmatpush.msra.mxu0 0.0
        %895 = vmatpush.msra.mxu0 %v789
        %896 = vmatpush.msra.mxu0 %v788
        %897 = vmatpush.msra.mxu0 %v787
        %898 = vmatpush.msra.mxu0 %v786
        %899 = vmatmul.f32.gmra.mxu0 %v881
        %v900 = vpop.f32.mrf.mxu0
        %v901 = vadd.f32 0.0, %v900
        %902 = vdwg.mxu0
        %v903 = vmul.f32 %v901, 0.125
        %v905 = vsel %vm834, %v903, 0
        %907 = vmatpush.xpose.msra.mxu0 0.0
        %908 = vmatpush.xpose.msra.mxu0 0.0
        %909 = vmatpush.xpose.msra.mxu0 0.0
        %910 = vmatpush.xpose.msra.mxu0 0.0
        %911 = vmatpush.xpose.msra.mxu0 0.0
        %912 = vmatpush.xpose.msra.mxu0 0.0
        %913 = vmatpush.xpose.msra.mxu0 0.0
        %914 = vmatpush.xpose.msra.mxu0 0.0
        %915 = vmatpush.xpose.msra.mxu0 0.0
        %916 = vmatpush.xpose.msra.mxu0 0.0
        %917 = vmatpush.xpose.msra.mxu0 0.0
        %918 = vmatpush.xpose.msra.mxu0 0.0
        %919 = vmatpush.xpose.msra.mxu0 %v848
        %920 = vmatpush.xpose.msra.mxu0 %v845
        %921 = vmatpush.xpose.msra.mxu0 %v842
        %922 = vmatpush.xpose.msra.mxu0 %v839
        %923 = vmatmul.f32.gmra.mxu0 %v905
        %v924 = vpop.f32.mrf.mxu0
        %v925 = vadd.f32 1e-05, %v924
        %926 = vdwg.mxu0
        %v927 = vrsqrt.pop %v925
        %v928 = vmul.f32 %v927, %v925
        %v929 = vmul.f32 %v928, %v927
        %v930 = vmul.f32 0.5, %v929
        %v931 = vsub.f32 1.5, %v930
        %v932 = vmul.f32 %v927, %v931
        %vm933 = vweird.f32 %v925
        %vm934 = vweird.f32 %v927
        %vm935 = vmor %vm933, %vm934
        %v936 = vsel %vm935, %v927, %v932
        %v937 = vperm.slane %v936, 0
        %v938 = vmul.f32 %v871, %v937
        %v940 = vperm.slane %v790, 0
        %v942 = vmul.f32 %v938, %v940
        %v944 = vperm.slane %v791, 0
        %v946 = vadd.f32 %v942, %v944
        %v947 = vpack.c.bf16 %v946, %v946
        %v949 = vperm.slane %v796, 0
        %v955 = vunpack.c.l.b16 %v792
        %v956 = vunpack.c.l.b16 %v793
        %v957 = vunpack.c.l.b16 %v794
        %v958 = vunpack.c.l.b16 %v795
        %v959 = vpack.c.b16 %v956, %v955
        %v960 = vpack.c.b16 %v958, %v957
        %v964 = vsel %vm538, %v947, 0
        %966 = vmatpush.bf16.msra.mxu0 0
        %967 = vmatpush.bf16.msra.mxu0 0
        %968 = vmatpush.bf16.msra.mxu0 0
        %969 = vmatpush.bf16.msra.mxu0 0
        %970 = vmatpush.bf16.msra.mxu0 0
        %971 = vmatpush.bf16.msra.mxu0 0
        %972 = vmatpush.bf16.msra.mxu0 %v960
        %973 = vmatpush.bf16.msra.mxu0 %v959
        %974 = vmatmul.bf16.gmra.mxu0 %v964
        %v975 = vpop.f32.mrf.mxu0
        %v976 = vadd.f32 %v949, %v975
        %v977 = vpop.f32.mrf.mxu0
        %978 = vdwg.mxu0
        %980 = vrot.lane.b32.xlu0 %v976, 104
        %v981 = vpop.permute.xlu0 %980
        %983 = vrot.lane.b32.xlu0 %v976, 80
        %v984 = vpop.permute.xlu0 %983
        %986 = vrot.lane.b32.xlu0 %v976, 56
        %v987 = vpop.permute.xlu0 %986
        %v989 = vmul.f32 %v976, 0.59460354
        %v990 = vmul.f32 %v981, 0.59460354
        %v991 = vmul.f32 %v984, 0.59460354
        %v992 = vmul.f32 %v987, 0.59460354
        %v993 = vpack.c.bf16 %v989, %v989
        %v994 = vpack.c.bf16 %v990, %v990
        %v995 = vpack.c.bf16 %v991, %v991
        %v996 = vpack.c.bf16 %v992, %v992
        %v998 = vunpack.c.l.b16 %v993
        %v999 = vpack.c.b16 %v998, %v998
        %1000 = vrot.lane.b32.xlu0 %v999, 120
        %v1001 = vpop.permute.xlu0 %1000
        %vm1002 = vcmask 64512
        %v1004 = vsel %vm1002, %v993, 0
        %v1007 = vsel %vm1002, %v1001, 0
        %1009 = vmatpush.bf16.xpose.msra.mxu0 0
        %1010 = vmatpush.bf16.xpose.msra.mxu0 0
        %1011 = vmatpush.bf16.xpose.msra.mxu0 0
        %1012 = vmatpush.bf16.xpose.msra.mxu0 0
        %1013 = vmatpush.bf16.xpose.msra.mxu0 0
        %1014 = vmatpush.bf16.xpose.msra.mxu0 0
        %1015 = vmatpush.bf16.xpose.msra.mxu0 0
        %1016 = vmatpush.bf16.xpose.msra.mxu0 %v1007
        %1017 = vmatmul.bf16.gmra.mxu0 %v1004
        %v1018 = vpop.f32.mrf.mxu0
        %v1019 = vadd.f32 0.0, %v1018
        %v1020 = vpop.f32.mrf.mxu0
        %1021 = vdwg.mxu0
        %v1023 = vunpack.c.l.b16 %v994
        %v1024 = vpack.c.b16 %v1023, %v1023
        %1025 = vrot.lane.b32.xlu0 %v1024, 120
        %v1026 = vpop.permute.xlu0 %1025
        %v1028 = vsel %vm1002, %v994, 0
        %v1031 = vsel %vm1002, %v1026, 0
        %1033 = vmatpush.bf16.xpose.msra.mxu0 0
        %1034 = vmatpush.bf16.xpose.msra.mxu0 0
        %1035 = vmatpush.bf16.xpose.msra.mxu0 0
        %1036 = vmatpush.bf16.xpose.msra.mxu0 0
        %1037 = vmatpush.bf16.xpose.msra.mxu0 0
        %1038 = vmatpush.bf16.xpose.msra.mxu0 0
        %1039 = vmatpush.bf16.xpose.msra.mxu0 0
        %1040 = vmatpush.bf16.xpose.msra.mxu0 %v1031
        %1041 = vmatmul.bf16.gmra.mxu0 %v1028
        %v1042 = vpop.f32.mrf.mxu0
        %v1043 = vadd.f32 0.0, %v1042
        %v1044 = vpop.f32.mrf.mxu0
        %1045 = vdwg.mxu0
        %v1047 = vunpack.c.l.b16 %v995
        %v1048 = vpack.c.b16 %v1047, %v1047
        %1049 = vrot.lane.b32.xlu0 %v1048, 120
        %v1050 = vpop.permute.xlu0 %1049
        %v1052 = vsel %vm1002, %v995, 0
        %v1055 = vsel %vm1002, %v1050, 0
        %1057 = vmatpush.bf16.xpose.msra.mxu0 0
        %1058 = vmatpush.bf16.xpose.msra.mxu0 0
        %1059 = vmatpush.bf16.xpose.msra.mxu0 0
        %1060 = vmatpush.bf16.xpose.msra.mxu0 0
        %1061 = vmatpush.bf16.xpose.msra.mxu0 0
        %1062 = vmatpush.bf16.xpose.msra.mxu0 0
        %1063 = vmatpush.bf16.xpose.msra.mxu0 0
        %1064 = vmatpush.bf16.xpose.msra.mxu0 %v1055
        %1065 = vmatmul.bf16.gmra.mxu0 %v1052
        %v1066 = vpop.f32.mrf.mxu0
        %v1067 = vadd.f32 0.0, %v1066
        %v1068 = vpop.f32.mrf.mxu0
        %1069 = vdwg.mxu0
        %v1071 = vunpack.c.l.b16 %v996
        %v1072 = vpack.c.b16 %v1071, %v1071
        %1073 = vrot.lane.b32.xlu0 %v1072, 120
        %v1074 = vpop.permute.xlu0 %1073
        %v1076 = vsel %vm1002, %v996, 0
        %v1079 = vsel %vm1002, %v1074, 0
        %1081 = vmatpush.bf16.xpose.msra.mxu0 0
        %1082 = vmatpush.bf16.xpose.msra.mxu0 0
        %1083 = vmatpush.bf16.xpose.msra.mxu0 0
        %1084 = vmatpush.bf16.xpose.msra.mxu0 0
        %1085 = vmatpush.bf16.xpose.msra.mxu0 0
        %1086 = vmatpush.bf16.xpose.msra.mxu0 0
        %1087 = vmatpush.bf16.xpose.msra.mxu0 0
        %1088 = vmatpush.bf16.xpose.msra.mxu0 %v1079
        %1089 = vmatmul.bf16.gmra.mxu0 %v1076
        %v1090 = vpop.f32.mrf.mxu0
        %v1091 = vadd.f32 0.0, %v1090
        %v1092 = vpop.f32.mrf.mxu0
        %1093 = vdwg.mxu0
        %vm1094 = vcmask 27648
        %v1095 = vsel %vm1094, %v1019, -inf
        %1096 = vmax.xlane.f32.xlu0 %v1095
        %v1097 = vpop.xlane.xlu0 %1096
        %v1098 = vsel %vm1094, %v1043, -inf
        %1099 = vmax.xlane.f32.xlu0 %v1098
        %v1100 = vpop.xlane.xlu0 %1099
        %v1101 = vsel %vm1094, %v1067, -inf
        %1102 = vmax.xlane.f32.xlu0 %v1101
        %v1103 = vpop.xlane.xlu0 %1102
        %v1104 = vsel %vm1094, %v1091, -inf
        %1105 = vmax.xlane.f32.xlu0 %v1104
        %v1106 = vpop.xlane.xlu0 %1105
        %v1107 = vsub.f32 %v1019, %v1097
        %v1108 = vsub.f32 %v1043, %v1100
        %v1109 = vsub.f32 %v1067, %v1103
        %v1110 = vsub.f32 %v1091, %v1106
        %v1111 = vmul.f32 %v1107, 1.442695
        %v1112 = vpow.pop %v1111
        %v1113 = vmul.f32 %v1108, 1.442695
        %v1114 = vpow.pop %v1113
        %v1115 = vmul.f32 %v1109, 1.442695
        %v1116 = vpow.pop %v1115
        %v1117 = vmul.f32 %v1110, 1.442695
        %v1118 = vpow.pop %v1117
        %v1119 = vsel %vm1094, %v1112, 0.0
        %1120 = vadd.xlane.f32.xlu0 %v1119
        %v1121 = vpop.xlane.xlu0 %1120
        %v1122 = vsel %vm1094, %v1114, 0.0
        %1123 = vadd.xlane.f32.xlu0 %v1122
        %v1124 = vpop.xlane.xlu0 %1123
        %v1125 = vsel %vm1094, %v1116, 0.0
        %1126 = vadd.xlane.f32.xlu0 %v1125
        %v1127 = vpop.xlane.xlu0 %1126
        %v1128 = vsel %vm1094, %v1118, 0.0
        %1129 = vadd.xlane.f32.xlu0 %v1128
        %v1130 = vpop.xlane.xlu0 %1129
        %v1131 = vrcp.pop %v1121
        %v1132 = vmul.f32 %v1121, %v1131
        %v1133 = vsub.f32 1.0, %v1132
        %v1134 = vmul.f32 %v1131, %v1133
        %v1135 = vadd.f32 %v1131, %v1134
        %vm1136 = vweird.f32 %v1121
        %vm1137 = vweird.f32 %v1131
        %vm1138 = vmor %vm1136, %vm1137
        %v1139 = vsel %vm1138, %v1131, %v1135
        %v1140 = vand.u32 2147483647, %v1121
        %vm1141 = vcmp.eq.f32.partialorder %v1140, 8.507059e+37
        %v1142 = vand.u32 %v1121, 2147483648
        %v1143 = vor.u32 1.1754944e-38, %v1142
        %v1144 = vsel %vm1141, %v1143, %v1139
        %v1145 = vmul.f32 %v1112, %v1144
        %v1146 = vrcp.pop %v1124
        %v1147 = vmul.f32 %v1124, %v1146
        %v1148 = vsub.f32 1.0, %v1147
        %v1149 = vmul.f32 %v1146, %v1148
        %v1150 = vadd.f32 %v1146, %v1149
        %vm1151 = vweird.f32 %v1124
        %vm1152 = vweird.f32 %v1146
        %vm1153 = vmor %vm1151, %vm1152
        %v1154 = vsel %vm1153, %v1146, %v1150
        %v1155 = vand.u32 2147483647, %v1124
        %vm1156 = vcmp.eq.f32.partialorder %v1155, 8.507059e+37
        %v1157 = vand.u32 %v1124, 2147483648
        %v1158 = vor.u32 1.1754944e-38, %v1157
        %v1159 = vsel %vm1156, %v1158, %v1154
        %v1160 = vmul.f32 %v1114, %v1159
        %v1161 = vrcp.pop %v1127
        %v1162 = vmul.f32 %v1127, %v1161
        %v1163 = vsub.f32 1.0, %v1162
        %v1164 = vmul.f32 %v1161, %v1163
        %v1165 = vadd.f32 %v1161, %v1164
        %vm1166 = vweird.f32 %v1127
        %vm1167 = vweird.f32 %v1161
        %vm1168 = vmor %vm1166, %vm1167
        %v1169 = vsel %vm1168, %v1161, %v1165
        %v1170 = vand.u32 2147483647, %v1127
        %vm1171 = vcmp.eq.f32.partialorder %v1170, 8.507059e+37
        %v1172 = vand.u32 %v1127, 2147483648
        %v1173 = vor.u32 1.1754944e-38, %v1172
        %v1174 = vsel %vm1171, %v1173, %v1169
        %v1175 = vmul.f32 %v1116, %v1174
        %v1176 = vrcp.pop %v1130
        %v1177 = vmul.f32 %v1130, %v1176
        %v1178 = vsub.f32 1.0, %v1177
        %v1179 = vmul.f32 %v1176, %v1178
        %v1180 = vadd.f32 %v1176, %v1179
        %vm1181 = vweird.f32 %v1130
        %vm1182 = vweird.f32 %v1176
        %vm1183 = vmor %vm1181, %vm1182
        %v1184 = vsel %vm1183, %v1176, %v1180
        %v1185 = vand.u32 2147483647, %v1130
        %vm1186 = vcmp.eq.f32.partialorder %v1185, 8.507059e+37
        %v1187 = vand.u32 %v1130, 2147483648
        %v1188 = vor.u32 1.1754944e-38, %v1187
        %v1189 = vsel %vm1186, %v1188, %v1184
        %v1190 = vmul.f32 %v1118, %v1189
        %v1191 = vpack.c.bf16 %v1145, %v1145
        %v1192 = vpack.c.bf16 %v1160, %v1160
        %v1193 = vpack.c.bf16 %v1175, %v1175
        %v1194 = vpack.c.bf16 %v1190, %v1190
        %v1195 = vpack.c.bf16 %v976, %v976
        %v1196 = vpack.c.bf16 %v981, %v981
        %v1197 = vpack.c.bf16 %v984, %v984
        %v1198 = vpack.c.bf16 %v987, %v987
        %v1200 = vunpack.c.l.b16 %v1195
        %v1201 = vpack.c.b16 %v1200, %v1200
        %1202 = vrot.lane.b32.xlu0 %v1201, 112
        %v1203 = vpop.permute.xlu0 %1202
        %vm1204 = vcmask 31744
        %v1206 = vsel %vm1204, %v1191, 0
        %vm1208 = vcmask 1041408
        %v1210 = vsel %vm1208, %v1203, 0
        %1212 = vmatpush.bf16.msra.mxu0 0
        %1213 = vmatpush.bf16.msra.mxu0 0
        %1214 = vmatpush.bf16.msra.mxu0 0
        %1215 = vmatpush.bf16.msra.mxu0 0
        %1216 = vmatpush.bf16.msra.mxu0 0
        %1217 = vmatpush.bf16.msra.mxu0 0
        %1218 = vmatpush.bf16.msra.mxu0 0
        %1219 = vmatpush.bf16.msra.mxu0 %v1210
        %1220 = vmatmul.bf16.gmra.mxu0 %v1206
        %v1221 = vpop.f32.mrf.mxu0
        %v1222 = vadd.f32 0.0, %v1221
        %v1223 = vpop.f32.mrf.mxu0
        %1224 = vdwg.mxu0
        %v1226 = vunpack.c.l.b16 %v1196
        %v1227 = vpack.c.b16 %v1226, %v1226
        %1228 = vrot.lane.b32.xlu0 %v1227, 112
        %v1229 = vpop.permute.xlu0 %1228
        %v1231 = vsel %vm1204, %v1192, 0
        %v1234 = vsel %vm1208, %v1229, 0
        %1236 = vmatpush.bf16.msra.mxu0 0
        %1237 = vmatpush.bf16.msra.mxu0 0
        %1238 = vmatpush.bf16.msra.mxu0 0
        %1239 = vmatpush.bf16.msra.mxu0 0
        %1240 = vmatpush.bf16.msra.mxu0 0
        %1241 = vmatpush.bf16.msra.mxu0 0
        %1242 = vmatpush.bf16.msra.mxu0 0
        %1243 = vmatpush.bf16.msra.mxu0 %v1234
        %1244 = vmatmul.bf16.gmra.mxu0 %v1231
        %v1245 = vpop.f32.mrf.mxu0
        %v1246 = vadd.f32 0.0, %v1245
        %v1247 = vpop.f32.mrf.mxu0
        %1248 = vdwg.mxu0
        %v1250 = vunpack.c.l.b16 %v1197
        %v1251 = vpack.c.b16 %v1250, %v1250
        %1252 = vrot.lane.b32.xlu0 %v1251, 112
        %v1253 = vpop.permute.xlu0 %1252
        %v1255 = vsel %vm1204, %v1193, 0
        %v1258 = vsel %vm1208, %v1253, 0
        %1260 = vmatpush.bf16.msra.mxu0 0
        %1261 = vmatpush.bf16.msra.mxu0 0
        %1262 = vmatpush.bf16.msra.mxu0 0
        %1263 = vmatpush.bf16.msra.mxu0 0
        %1264 = vmatpush.bf16.msra.mxu0 0
        %1265 = vmatpush.bf16.msra.mxu0 0
        %1266 = vmatpush.bf16.msra.mxu0 0
        %1267 = vmatpush.bf16.msra.mxu0 %v1258
        %1268 = vmatmul.bf16.gmra.mxu0 %v1255
        %v1269 = vpop.f32.mrf.mxu0
        %v1270 = vadd.f32 0.0, %v1269
        %v1271 = vpop.f32.mrf.mxu0
        %1272 = vdwg.mxu0
        %v1274 = vunpack.c.l.b16 %v1198
        %v1275 = vpack.c.b16 %v1274, %v1274
        %1276 = vrot.lane.b32.xlu0 %v1275, 112
        %v1277 = vpop.permute.xlu0 %1276
        %v1279 = vsel %vm1204, %v1194, 0
        %v1282 = vsel %vm1208, %v1277, 0
        %1284 = vmatpush.bf16.msra.mxu0 0
        %1285 = vmatpush.bf16.msra.mxu0 0
        %1286 = vmatpush.bf16.msra.mxu0 0
        %1287 = vmatpush.bf16.msra.mxu0 0
        %1288 = vmatpush.bf16.msra.mxu0 0
        %1289 = vmatpush.bf16.msra.mxu0 0
        %1290 = vmatpush.bf16.msra.mxu0 0
        %1291 = vmatpush.bf16.msra.mxu0 %v1282
        %1292 = vmatmul.bf16.gmra.mxu0 %v1279
        %v1293 = vpop.f32.mrf.mxu0
        %v1294 = vadd.f32 0.0, %v1293
        %v1295 = vpop.f32.mrf.mxu0
        %1296 = vdwg.mxu0
        %v1298 = vperm.slane %v801, 0
        %v1300 = vadd.f32 %v1298, 0.0
        %v1301 = vpack.c.bf16 %v1222, %v1222
        %v1303 = vsel %vm1002, %v1301, 0
        %v1306 = vsel %vm509, %v797, 0
        %1308 = vmatpush.bf16.msra.mxu0 0
        %1309 = vmatpush.bf16.msra.mxu0 0
        %1310 = vmatpush.bf16.msra.mxu0 0
        %1311 = vmatpush.bf16.msra.mxu0 0
        %1312 = vmatpush.bf16.msra.mxu0 0
        %1313 = vmatpush.bf16.msra.mxu0 0
        %1314 = vmatpush.bf16.msra.mxu0 0
        %1315 = vmatpush.bf16.msra.mxu0 %v1306
        %1316 = vmatmul.bf16.gmra.mxu0 %v1303
        %v1317 = vpop.f32.mrf.mxu0
        %v1318 = vadd.f32 0.0, %v1317
        %v1319 = vpop.f32.mrf.mxu0
        %1320 = vdwg.mxu0
        %v1321 = vadd.f32 %v1300, %v1318
        %v1322 = vpack.c.bf16 %v1246, %v1246
        %v1324 = vsel %vm1002, %v1322, 0
        %v1327 = vsel %vm509, %v798, 0
        %1329 = vmatpush.bf16.msra.mxu0 0
        %1330 = vmatpush.bf16.msra.mxu0 0
        %1331 = vmatpush.bf16.msra.mxu0 0
        %1332 = vmatpush.bf16.msra.mxu0 0
        %1333 = vmatpush.bf16.msra.mxu0 0
        %1334 = vmatpush.bf16.msra.mxu0 0
        %1335 = vmatpush.bf16.msra.mxu0 0
        %1336 = vmatpush.bf16.msra.mxu0 %v1327
        %1337 = vmatmul.bf16.gmra.mxu0 %v1324
        %v1338 = vpop.f32.mrf.mxu0
        %v1339 = vadd.f32 0.0, %v1338
        %v1340 = vpop.f32.mrf.mxu0
        %1341 = vdwg.mxu0
        %v1342 = vadd.f32 %v1321, %v1339
        %v1343 = vpack.c.bf16 %v1270, %v1270
        %v1345 = vsel %vm1002, %v1343, 0
        %v1348 = vsel %vm509, %v799, 0
        %1350 = vmatpush.bf16.msra.mxu0 0
        %1351 = vmatpush.bf16.msra.mxu0 0
        %1352 = vmatpush.bf16.msra.mxu0 0
        %1353 = vmatpush.bf16.msra.mxu0 0
        %1354 = vmatpush.bf16.msra.mxu0 0
        %1355 = vmatpush.bf16.msra.mxu0 0
        %1356 = vmatpush.bf16.msra.mxu0 0
        %1357 = vmatpush.bf16.msra.mxu0 %v1348
        %1358 = vmatmul.bf16.gmra.mxu0 %v1345
        %v1359 = vpop.f32.mrf.mxu0
        %v1360 = vadd.f32 0.0, %v1359
        %v1361 = vpop.f32.mrf.mxu0
        %1362 = vdwg.mxu0
        %v1363 = vadd.f32 %v1342, %v1360
        %v1364 = vpack.c.bf16 %v1294, %v1294
        %v1366 = vsel %vm1002, %v1364, 0
        %v1369 = vsel %vm509, %v800, 0
        %1371 = vmatpush.bf16.msra.mxu0 0
        %1372 = vmatpush.bf16.msra.mxu0 0
        %1373 = vmatpush.bf16.msra.mxu0 0
        %1374 = vmatpush.bf16.msra.mxu0 0
        %1375 = vmatpush.bf16.msra.mxu0 0
        %1376 = vmatpush.bf16.msra.mxu0 0
        %1377 = vmatpush.bf16.msra.mxu0 0
        %1378 = vmatpush.bf16.msra.mxu0 %v1369
        %1379 = vmatmul.bf16.gmra.mxu0 %v1366
        %v1380 = vpop.f32.mrf.mxu0
        %v1381 = vadd.f32 0.0, %v1380
        %v1382 = vpop.f32.mrf.mxu0
        %1383 = vdwg.mxu0
        %v1384 = vadd.f32 %v1363, %v1381
        %v1385 = vadd.f32 %v783, %v1384
        %s1386 = scalar_lea.vmem %s7, 1
        %v1387 = vld [vmem:[%s1386] sm:$0x1]
        %s1388 = scalar_lea.vmem %s8, 1
        %v1389 = vld [vmem:[%s1388] sm:$0x1]
        %s1390 = scalar_lea.vmem %s9, 16
        %v1391 = vld [vmem:[%s1390] sm:$0xf]
        %v1392 = vld [vmem:[%s1390 + $0x4] sm:$0xf]
        %v1393 = vld [vmem:[%s1390 + $0x8] sm:$0xf]
        %v1394 = vld [vmem:[%s1390 + $0xc] sm:$0xf]
        %s1395 = scalar_lea.vmem %s10, 1
        %v1396 = vld [vmem:[%s1395] sm:$0x1]
        %s1397 = scalar_lea.vmem %s11, 16
        %v1398 = vld [vmem:[%s1397] sm:$0xf]
        %v1399 = vld [vmem:[%s1397 + $0x4] sm:$0xf]
        %v1400 = vld [vmem:[%s1397 + $0x8] sm:$0xf]
        %v1401 = vld [vmem:[%s1397 + $0xc] sm:$0xf]
        %s1402 = scalar_lea.vmem %s12, 1
        %v1403 = vld [vmem:[%s1402] sm:$0x1]
        %v1404 = vsel %vm802, %v1385, 0.0
        %v1405 = vrot.slane %v1404, 4
        %v1406 = vadd.f32 %v1404, %v1405
        %v1407 = vrot.slane %v1406, 2
        %v1408 = vadd.f32 %v1406, %v1407
        %v1409 = vrot.slane %v1408, 1
        %v1410 = vadd.f32 %v1408, %v1409
        %v1412 = vsel %vm538, %v1410, 0
        %1414 = vmatpush.msra.mxu0 0.0
        %1415 = vmatpush.msra.mxu0 0.0
        %1416 = vmatpush.msra.mxu0 0.0
        %1417 = vmatpush.msra.mxu0 0.0
        %1418 = vmatpush.msra.mxu0 0.0
        %1419 = vmatpush.msra.mxu0 0.0
        %1420 = vmatpush.msra.mxu0 0.0
        %1421 = vmatpush.msra.mxu0 0.0
        %1422 = vmatpush.msra.mxu0 0.0
        %1423 = vmatpush.msra.mxu0 0.0
        %1424 = vmatpush.msra.mxu0 0.0
        %1425 = vmatpush.msra.mxu0 0.0
        %1426 = vmatpush.msra.mxu0 %v789
        %1427 = vmatpush.msra.mxu0 %v788
        %1428 = vmatpush.msra.mxu0 %v787
        %1429 = vmatpush.msra.mxu0 %v786
        %1430 = vmatmul.f32.gmra.mxu0 %v1412
        %v1431 = vpop.f32.mrf.mxu0
        %v1432 = vadd.f32 0.0, %v1431
        %1433 = vdwg.mxu0
        %v1434 = vmul.f32 %v1432, 0.125
        %v1436 = vsel %vm834, %v1434, 0
        %1438 = vmatpush.xpose.msra.mxu0 0.0
        %1439 = vmatpush.xpose.msra.mxu0 0.0
        %1440 = vmatpush.xpose.msra.mxu0 0.0
        %1441 = vmatpush.xpose.msra.mxu0 0.0
        %1442 = vmatpush.xpose.msra.mxu0 0.0
        %1443 = vmatpush.xpose.msra.mxu0 0.0
        %1444 = vmatpush.xpose.msra.mxu0 0.0
        %1445 = vmatpush.xpose.msra.mxu0 0.0
        %1446 = vmatpush.xpose.msra.mxu0 0.0
        %1447 = vmatpush.xpose.msra.mxu0 0.0
        %1448 = vmatpush.xpose.msra.mxu0 0.0
        %1449 = vmatpush.xpose.msra.mxu0 0.0
        %1450 = vmatpush.xpose.msra.mxu0 %v848
        %1451 = vmatpush.xpose.msra.mxu0 %v845
        %1452 = vmatpush.xpose.msra.mxu0 %v842
        %1453 = vmatpush.xpose.msra.mxu0 %v839
        %1454 = vmatmul.f32.gmra.mxu0 %v1436
        %v1455 = vpop.f32.mrf.mxu0
        %v1456 = vadd.f32 0.0, %v1455
        %1457 = vdwg.mxu0
        %v1458 = vperm.slane %v1456, 0
        %v1459 = vsub.f32 %v1385, %v1458
        %v1460 = vmul.f32 %v1459, %v1459
        %v1461 = vsel %vm802, %v1460, 0.0
        %v1462 = vrot.slane %v1461, 4
        %v1463 = vadd.f32 %v1461, %v1462
        %v1464 = vrot.slane %v1463, 2
        %v1465 = vadd.f32 %v1463, %v1464
        %v1466 = vrot.slane %v1465, 1
        %v1467 = vadd.f32 %v1465, %v1466
        %v1469 = vsel %vm538, %v1467, 0
        %1471 = vmatpush.msra.mxu0 0.0
        %1472 = vmatpush.msra.mxu0 0.0
        %1473 = vmatpush.msra.mxu0 0.0
        %1474 = vmatpush.msra.mxu0 0.0
        %1475 = vmatpush.msra.mxu0 0.0
        %1476 = vmatpush.msra.mxu0 0.0
        %1477 = vmatpush.msra.mxu0 0.0
        %1478 = vmatpush.msra.mxu0 0.0
        %1479 = vmatpush.msra.mxu0 0.0
        %1480 = vmatpush.msra.mxu0 0.0
        %1481 = vmatpush.msra.mxu0 0.0
        %1482 = vmatpush.msra.mxu0 0.0
        %1483 = vmatpush.msra.mxu0 %v789
        %1484 = vmatpush.msra.mxu0 %v788
        %1485 = vmatpush.msra.mxu0 %v787
        %1486 = vmatpush.msra.mxu0 %v786
        %1487 = vmatmul.f32.gmra.mxu0 %v1469
        %v1488 = vpop.f32.mrf.mxu0
        %v1489 = vadd.f32 0.0, %v1488
        %1490 = vdwg.mxu0
        %v1491 = vmul.f32 %v1489, 0.125
        %v1493 = vsel %vm834, %v1491, 0
        %1495 = vmatpush.xpose.msra.mxu0 0.0
        %1496 = vmatpush.xpose.msra.mxu0 0.0
        %1497 = vmatpush.xpose.msra.mxu0 0.0
        %1498 = vmatpush.xpose.msra.mxu0 0.0
        %1499 = vmatpush.xpose.msra.mxu0 0.0
        %1500 = vmatpush.xpose.msra.mxu0 0.0
        %1501 = vmatpush.xpose.msra.mxu0 0.0
        %1502 = vmatpush.xpose.msra.mxu0 0.0
        %1503 = vmatpush.xpose.msra.mxu0 0.0
        %1504 = vmatpush.xpose.msra.mxu0 0.0
        %1505 = vmatpush.xpose.msra.mxu0 0.0
        %1506 = vmatpush.xpose.msra.mxu0 0.0
        %1507 = vmatpush.xpose.msra.mxu0 %v848
        %1508 = vmatpush.xpose.msra.mxu0 %v845
        %1509 = vmatpush.xpose.msra.mxu0 %v842
        %1510 = vmatpush.xpose.msra.mxu0 %v839
        %1511 = vmatmul.f32.gmra.mxu0 %v1493
        %v1512 = vpop.f32.mrf.mxu0
        %v1513 = vadd.f32 1e-05, %v1512
        %1514 = vdwg.mxu0
        %v1515 = vrsqrt.pop %v1513
        %v1516 = vmul.f32 %v1515, %v1513
        %v1517 = vmul.f32 %v1516, %v1515
        %v1518 = vmul.f32 0.5, %v1517
        %v1519 = vsub.f32 1.5, %v1518
        %v1520 = vmul.f32 %v1515, %v1519
        %vm1521 = vweird.f32 %v1513
        %vm1522 = vweird.f32 %v1515
        %vm1523 = vmor %vm1521, %vm1522
        %v1524 = vsel %vm1523, %v1515, %v1520
        %v1525 = vperm.slane %v1524, 0
        %v1526 = vmul.f32 %v1459, %v1525
        %v1528 = vperm.slane %v1387, 0
        %v1530 = vmul.f32 %v1526, %v1528
        %v1532 = vperm.slane %v1389, 0
        %v1534 = vadd.f32 %v1530, %v1532
        %v1535 = vpack.c.bf16 %v1534, %v1534
        %v1537 = vperm.slane %v1396, 0
        %v1543 = vunpack.c.l.b16 %v1391
        %v1544 = vunpack.c.l.b16 %v1392
        %v1545 = vunpack.c.l.b16 %v1393
        %v1546 = vunpack.c.l.b16 %v1394
        %v1547 = vpack.c.b16 %v1544, %v1543
        %v1548 = vpack.c.b16 %v1546, %v1545
        %v1552 = vsel %vm538, %v1535, 0
        %1554 = vmatpush.bf16.msra.mxu0 0
        %1555 = vmatpush.bf16.msra.mxu0 0
        %1556 = vmatpush.bf16.msra.mxu0 0
        %1557 = vmatpush.bf16.msra.mxu0 0
        %1558 = vmatpush.bf16.msra.mxu0 0
        %1559 = vmatpush.bf16.msra.mxu0 0
        %1560 = vmatpush.bf16.msra.mxu0 %v1548
        %1561 = vmatpush.bf16.msra.mxu0 %v1547
        %1562 = vmatmul.bf16.gmra.mxu0 %v1552
        %v1563 = vpop.f32.mrf.mxu0
        %v1564 = vadd.f32 %v1537, %v1563
        %v1565 = vpop.f32.mrf.mxu0
        %1566 = vdwg.mxu0
        %1568 = vrot.lane.b32.xlu0 %v1564, 104
        %v1569 = vpop.permute.xlu0 %1568
        %1571 = vrot.lane.b32.xlu0 %v1564, 80
        %v1572 = vpop.permute.xlu0 %1571
        %1574 = vrot.lane.b32.xlu0 %v1564, 56
        %v1575 = vpop.permute.xlu0 %1574
        %v1577 = vmul.f32 %v1564, 0.59460354
        %v1578 = vmul.f32 %v1569, 0.59460354
        %v1579 = vmul.f32 %v1572, 0.59460354
        %v1580 = vmul.f32 %v1575, 0.59460354
        %v1581 = vpack.c.bf16 %v1577, %v1577
        %v1582 = vpack.c.bf16 %v1578, %v1578
        %v1583 = vpack.c.bf16 %v1579, %v1579
        %v1584 = vpack.c.bf16 %v1580, %v1580
        %v1586 = vunpack.c.l.b16 %v1581
        %v1587 = vpack.c.b16 %v1586, %v1586
        %1588 = vrot.lane.b32.xlu0 %v1587, 120
        %v1589 = vpop.permute.xlu0 %1588
        %v1591 = vsel %vm1002, %v1581, 0
        %v1594 = vsel %vm1002, %v1589, 0
        %1596 = vmatpush.bf16.xpose.msra.mxu0 0
        %1597 = vmatpush.bf16.xpose.msra.mxu0 0
        %1598 = vmatpush.bf16.xpose.msra.mxu0 0
        %1599 = vmatpush.bf16.xpose.msra.mxu0 0
        %1600 = vmatpush.bf16.xpose.msra.mxu0 0
        %1601 = vmatpush.bf16.xpose.msra.mxu0 0
        %1602 = vmatpush.bf16.xpose.msra.mxu0 0
        %1603 = vmatpush.bf16.xpose.msra.mxu0 %v1594
        %1604 = vmatmul.bf16.gmra.mxu0 %v1591
        %v1605 = vpop.f32.mrf.mxu0
        %v1606 = vadd.f32 0.0, %v1605
        %v1607 = vpop.f32.mrf.mxu0
        %1608 = vdwg.mxu0
        %v1610 = vunpack.c.l.b16 %v1582
        %v1611 = vpack.c.b16 %v1610, %v1610
        %1612 = vrot.lane.b32.xlu0 %v1611, 120
        %v1613 = vpop.permute.xlu0 %1612
        %v1615 = vsel %vm1002, %v1582, 0
        %v1618 = vsel %vm1002, %v1613, 0
        %1620 = vmatpush.bf16.xpose.msra.mxu0 0
        %1621 = vmatpush.bf16.xpose.msra.mxu0 0
        %1622 = vmatpush.bf16.xpose.msra.mxu0 0
        %1623 = vmatpush.bf16.xpose.msra.mxu0 0
        %1624 = vmatpush.bf16.xpose.msra.mxu0 0
        %1625 = vmatpush.bf16.xpose.msra.mxu0 0
        %1626 = vmatpush.bf16.xpose.msra.mxu0 0
        %1627 = vmatpush.bf16.xpose.msra.mxu0 %v1618
        %1628 = vmatmul.bf16.gmra.mxu0 %v1615
        %v1629 = vpop.f32.mrf.mxu0
        %v1630 = vadd.f32 0.0, %v1629
        %v1631 = vpop.f32.mrf.mxu0
        %1632 = vdwg.mxu0
        %v1634 = vunpack.c.l.b16 %v1583
        %v1635 = vpack.c.b16 %v1634, %v1634
        %1636 = vrot.lane.b32.xlu0 %v1635, 120
        %v1637 = vpop.permute.xlu0 %1636
        %v1639 = vsel %vm1002, %v1583, 0
        %v1642 = vsel %vm1002, %v1637, 0
        %1644 = vmatpush.bf16.xpose.msra.mxu0 0
        %1645 = vmatpush.bf16.xpose.msra.mxu0 0
        %1646 = vmatpush.bf16.xpose.msra.mxu0 0
        %1647 = vmatpush.bf16.xpose.msra.mxu0 0
        %1648 = vmatpush.bf16.xpose.msra.mxu0 0
        %1649 = vmatpush.bf16.xpose.msra.mxu0 0
        %1650 = vmatpush.bf16.xpose.msra.mxu0 0
        %1651 = vmatpush.bf16.xpose.msra.mxu0 %v1642
        %1652 = vmatmul.bf16.gmra.mxu0 %v1639
        %v1653 = vpop.f32.mrf.mxu0
        %v1654 = vadd.f32 0.0, %v1653
        %v1655 = vpop.f32.mrf.mxu0
        %1656 = vdwg.mxu0
        %v1658 = vunpack.c.l.b16 %v1584
        %v1659 = vpack.c.b16 %v1658, %v1658
        %1660 = vrot.lane.b32.xlu0 %v1659, 120
        %v1661 = vpop.permute.xlu0 %1660
        %v1663 = vsel %vm1002, %v1584, 0
        %v1666 = vsel %vm1002, %v1661, 0
        %1668 = vmatpush.bf16.xpose.msra.mxu0 0
        %1669 = vmatpush.bf16.xpose.msra.mxu0 0
        %1670 = vmatpush.bf16.xpose.msra.mxu0 0
        %1671 = vmatpush.bf16.xpose.msra.mxu0 0
        %1672 = vmatpush.bf16.xpose.msra.mxu0 0
        %1673 = vmatpush.bf16.xpose.msra.mxu0 0
        %1674 = vmatpush.bf16.xpose.msra.mxu0 0
        %1675 = vmatpush.bf16.xpose.msra.mxu0 %v1666
        %1676 = vmatmul.bf16.gmra.mxu0 %v1663
        %v1677 = vpop.f32.mrf.mxu0
        %v1678 = vadd.f32 0.0, %v1677
        %v1679 = vpop.f32.mrf.mxu0
        %1680 = vdwg.mxu0
        %v1681 = vsel %vm1094, %v1606, -inf
        %1682 = vmax.xlane.f32.xlu0 %v1681
        %v1683 = vpop.xlane.xlu0 %1682
        %v1684 = vsel %vm1094, %v1630, -inf
        %1685 = vmax.xlane.f32.xlu0 %v1684
        %v1686 = vpop.xlane.xlu0 %1685
        %v1687 = vsel %vm1094, %v1654, -inf
        %1688 = vmax.xlane.f32.xlu0 %v1687
        %v1689 = vpop.xlane.xlu0 %1688
        %v1690 = vsel %vm1094, %v1678, -inf
        %1691 = vmax.xlane.f32.xlu0 %v1690
        %v1692 = vpop.xlane.xlu0 %1691
        %v1693 = vsub.f32 %v1606, %v1683
        %v1694 = vsub.f32 %v1630, %v1686
        %v1695 = vsub.f32 %v1654, %v1689
        %v1696 = vsub.f32 %v1678, %v1692
        %v1697 = vmul.f32 %v1693, 1.442695
        %v1698 = vpow.pop %v1697
        %v1699 = vmul.f32 %v1694, 1.442695
        %v1700 = vpow.pop %v1699
        %v1701 = vmul.f32 %v1695, 1.442695
        %v1702 = vpow.pop %v1701
        %v1703 = vmul.f32 %v1696, 1.442695
        %v1704 = vpow.pop %v1703
        %v1705 = vsel %vm1094, %v1698, 0.0
        %1706 = vadd.xlane.f32.xlu0 %v1705
        %v1707 = vpop.xlane.xlu0 %1706
        %v1708 = vsel %vm1094, %v1700, 0.0
        %1709 = vadd.xlane.f32.xlu0 %v1708
        %v1710 = vpop.xlane.xlu0 %1709
        %v1711 = vsel %vm1094, %v1702, 0.0
        %1712 = vadd.xlane.f32.xlu0 %v1711
        %v1713 = vpop.xlane.xlu0 %1712
        %v1714 = vsel %vm1094, %v1704, 0.0
        %1715 = vadd.xlane.f32.xlu0 %v1714
        %v1716 = vpop.xlane.xlu0 %1715
        %v1717 = vrcp.pop %v1707
        %v1718 = vmul.f32 %v1707, %v1717
        %v1719 = vsub.f32 1.0, %v1718
        %v1720 = vmul.f32 %v1717, %v1719
        %v1721 = vadd.f32 %v1717, %v1720
        %vm1722 = vweird.f32 %v1707
        %vm1723 = vweird.f32 %v1717
        %vm1724 = vmor %vm1722, %vm1723
        %v1725 = vsel %vm1724, %v1717, %v1721
        %v1726 = vand.u32 2147483647, %v1707
        %vm1727 = vcmp.eq.f32.partialorder %v1726, 8.507059e+37
        %v1728 = vand.u32 %v1707, 2147483648
        %v1729 = vor.u32 1.1754944e-38, %v1728
        %v1730 = vsel %vm1727, %v1729, %v1725
        %v1731 = vmul.f32 %v1698, %v1730
        %v1732 = vrcp.pop %v1710
        %v1733 = vmul.f32 %v1710, %v1732
        %v1734 = vsub.f32 1.0, %v1733
        %v1735 = vmul.f32 %v1732, %v1734
        %v1736 = vadd.f32 %v1732, %v1735
        %vm1737 = vweird.f32 %v1710
        %vm1738 = vweird.f32 %v1732
        %vm1739 = vmor %vm1737, %vm1738
        %v1740 = vsel %vm1739, %v1732, %v1736
        %v1741 = vand.u32 2147483647, %v1710
        %vm1742 = vcmp.eq.f32.partialorder %v1741, 8.507059e+37
        %v1743 = vand.u32 %v1710, 2147483648
        %v1744 = vor.u32 1.1754944e-38, %v1743
        %v1745 = vsel %vm1742, %v1744, %v1740
        %v1746 = vmul.f32 %v1700, %v1745
        %v1747 = vrcp.pop %v1713
        %v1748 = vmul.f32 %v1713, %v1747
        %v1749 = vsub.f32 1.0, %v1748
        %v1750 = vmul.f32 %v1747, %v1749
        %v1751 = vadd.f32 %v1747, %v1750
        %vm1752 = vweird.f32 %v1713
        %vm1753 = vweird.f32 %v1747
        %vm1754 = vmor %vm1752, %vm1753
        %v1755 = vsel %vm1754, %v1747, %v1751
        %v1756 = vand.u32 2147483647, %v1713
        %vm1757 = vcmp.eq.f32.partialorder %v1756, 8.507059e+37
        %v1758 = vand.u32 %v1713, 2147483648
        %v1759 = vor.u32 1.1754944e-38, %v1758
        %v1760 = vsel %vm1757, %v1759, %v1755
        %v1761 = vmul.f32 %v1702, %v1760
        %v1762 = vrcp.pop %v1716
        %v1763 = vmul.f32 %v1716, %v1762
        %v1764 = vsub.f32 1.0, %v1763
        %v1765 = vmul.f32 %v1762, %v1764
        %v1766 = vadd.f32 %v1762, %v1765
        %vm1767 = vweird.f32 %v1716
        %vm1768 = vweird.f32 %v1762
        %vm1769 = vmor %vm1767, %vm1768
        %v1770 = vsel %vm1769, %v1762, %v1766
        %v1771 = vand.u32 2147483647, %v1716
        %vm1772 = vcmp.eq.f32.partialorder %v1771, 8.507059e+37
        %v1773 = vand.u32 %v1716, 2147483648
        %v1774 = vor.u32 1.1754944e-38, %v1773
        %v1775 = vsel %vm1772, %v1774, %v1770
        %v1776 = vmul.f32 %v1704, %v1775
        %v1777 = vpack.c.bf16 %v1731, %v1731
        %v1778 = vpack.c.bf16 %v1746, %v1746
        %v1779 = vpack.c.bf16 %v1761, %v1761
        %v1780 = vpack.c.bf16 %v1776, %v1776
        %v1781 = vpack.c.bf16 %v1564, %v1564
        %v1782 = vpack.c.bf16 %v1569, %v1569
        %v1783 = vpack.c.bf16 %v1572, %v1572
        %v1784 = vpack.c.bf16 %v1575, %v1575
        %v1786 = vunpack.c.l.b16 %v1781
        %v1787 = vpack.c.b16 %v1786, %v1786
        %1788 = vrot.lane.b32.xlu0 %v1787, 112
        %v1789 = vpop.permute.xlu0 %1788
        %v1791 = vsel %vm1204, %v1777, 0
        %v1794 = vsel %vm1208, %v1789, 0
        %1796 = vmatpush.bf16.msra.mxu0 0
        %1797 = vmatpush.bf16.msra.mxu0 0
        %1798 = vmatpush.bf16.msra.mxu0 0
        %1799 = vmatpush.bf16.msra.mxu0 0
        %1800 = vmatpush.bf16.msra.mxu0 0
        %1801 = vmatpush.bf16.msra.mxu0 0
        %1802 = vmatpush.bf16.msra.mxu0 0
        %1803 = vmatpush.bf16.msra.mxu0 %v1794
        %1804 = vmatmul.bf16.gmra.mxu0 %v1791
        %v1805 = vpop.f32.mrf.mxu0
        %v1806 = vadd.f32 0.0, %v1805
        %v1807 = vpop.f32.mrf.mxu0
        %1808 = vdwg.mxu0
        %v1810 = vunpack.c.l.b16 %v1782
        %v1811 = vpack.c.b16 %v1810, %v1810
        %1812 = vrot.lane.b32.xlu0 %v1811, 112
        %v1813 = vpop.permute.xlu0 %1812
        %v1815 = vsel %vm1204, %v1778, 0
        %v1818 = vsel %vm1208, %v1813, 0
        %1820 = vmatpush.bf16.msra.mxu0 0
        %1821 = vmatpush.bf16.msra.mxu0 0
        %1822 = vmatpush.bf16.msra.mxu0 0
        %1823 = vmatpush.bf16.msra.mxu0 0
        %1824 = vmatpush.bf16.msra.mxu0 0
        %1825 = vmatpush.bf16.msra.mxu0 0
        %1826 = vmatpush.bf16.msra.mxu0 0
        %1827 = vmatpush.bf16.msra.mxu0 %v1818
        %1828 = vmatmul.bf16.gmra.mxu0 %v1815
        %v1829 = vpop.f32.mrf.mxu0
        %v1830 = vadd.f32 0.0, %v1829
        %v1831 = vpop.f32.mrf.mxu0
        %1832 = vdwg.mxu0
        %v1834 = vunpack.c.l.b16 %v1783
        %v1835 = vpack.c.b16 %v1834, %v1834
        %1836 = vrot.lane.b32.xlu0 %v1835, 112
        %v1837 = vpop.permute.xlu0 %1836
        %v1839 = vsel %vm1204, %v1779, 0
        %v1842 = vsel %vm1208, %v1837, 0
        %1844 = vmatpush.bf16.msra.mxu0 0
        %1845 = vmatpush.bf16.msra.mxu0 0
        %1846 = vmatpush.bf16.msra.mxu0 0
        %1847 = vmatpush.bf16.msra.mxu0 0
        %1848 = vmatpush.bf16.msra.mxu0 0
        %1849 = vmatpush.bf16.msra.mxu0 0
        %1850 = vmatpush.bf16.msra.mxu0 0
        %1851 = vmatpush.bf16.msra.mxu0 %v1842
        %1852 = vmatmul.bf16.gmra.mxu0 %v1839
        %v1853 = vpop.f32.mrf.mxu0
        %v1854 = vadd.f32 0.0, %v1853
        %v1855 = vpop.f32.mrf.mxu0
        %1856 = vdwg.mxu0
        %v1858 = vunpack.c.l.b16 %v1784
        %v1859 = vpack.c.b16 %v1858, %v1858
        %1860 = vrot.lane.b32.xlu0 %v1859, 112
        %v1861 = vpop.permute.xlu0 %1860
        %v1863 = vsel %vm1204, %v1780, 0
        %v1866 = vsel %vm1208, %v1861, 0
        %1868 = vmatpush.bf16.msra.mxu0 0
        %1869 = vmatpush.bf16.msra.mxu0 0
        %1870 = vmatpush.bf16.msra.mxu0 0
        %1871 = vmatpush.bf16.msra.mxu0 0
        %1872 = vmatpush.bf16.msra.mxu0 0
        %1873 = vmatpush.bf16.msra.mxu0 0
        %1874 = vmatpush.bf16.msra.mxu0 0
        %1875 = vmatpush.bf16.msra.mxu0 %v1866
        %1876 = vmatmul.bf16.gmra.mxu0 %v1863
        %v1877 = vpop.f32.mrf.mxu0
        %v1878 = vadd.f32 0.0, %v1877
        %v1879 = vpop.f32.mrf.mxu0
        %1880 = vdwg.mxu0
        %v1882 = vperm.slane %v1403, 0
        %v1884 = vadd.f32 %v1882, 0.0
        %v1885 = vpack.c.bf16 %v1806, %v1806
        %v1887 = vsel %vm1002, %v1885, 0
        %v1890 = vsel %vm509, %v1398, 0
        %1892 = vmatpush.bf16.msra.mxu0 0
        %1893 = vmatpush.bf16.msra.mxu0 0
        %1894 = vmatpush.bf16.msra.mxu0 0
        %1895 = vmatpush.bf16.msra.mxu0 0
        %1896 = vmatpush.bf16.msra.mxu0 0
        %1897 = vmatpush.bf16.msra.mxu0 0
        %1898 = vmatpush.bf16.msra.mxu0 0
        %1899 = vmatpush.bf16.msra.mxu0 %v1890
        %1900 = vmatmul.bf16.gmra.mxu0 %v1887
        %v1901 = vpop.f32.mrf.mxu0
        %v1902 = vadd.f32 0.0, %v1901
        %v1903 = vpop.f32.mrf.mxu0
        %1904 = vdwg.mxu0
        %v1905 = vadd.f32 %v1884, %v1902
        %v1906 = vpack.c.bf16 %v1830, %v1830
        %v1908 = vsel %vm1002, %v1906, 0
        %v1911 = vsel %vm509, %v1399, 0
        %1913 = vmatpush.bf16.msra.mxu0 0
        %1914 = vmatpush.bf16.msra.mxu0 0
        %1915 = vmatpush.bf16.msra.mxu0 0
        %1916 = vmatpush.bf16.msra.mxu0 0
        %1917 = vmatpush.bf16.msra.mxu0 0
        %1918 = vmatpush.bf16.msra.mxu0 0
        %1919 = vmatpush.bf16.msra.mxu0 0
        %1920 = vmatpush.bf16.msra.mxu0 %v1911
        %1921 = vmatmul.bf16.gmra.mxu0 %v1908
        %v1922 = vpop.f32.mrf.mxu0
        %v1923 = vadd.f32 0.0, %v1922
        %v1924 = vpop.f32.mrf.mxu0
        %1925 = vdwg.mxu0
        %v1926 = vadd.f32 %v1905, %v1923
        %v1927 = vpack.c.bf16 %v1854, %v1854
        %v1929 = vsel %vm1002, %v1927, 0
        %v1932 = vsel %vm509, %v1400, 0
        %1934 = vmatpush.bf16.msra.mxu0 0
        %1935 = vmatpush.bf16.msra.mxu0 0
        %1936 = vmatpush.bf16.msra.mxu0 0
        %1937 = vmatpush.bf16.msra.mxu0 0
        %1938 = vmatpush.bf16.msra.mxu0 0
        %1939 = vmatpush.bf16.msra.mxu0 0
        %1940 = vmatpush.bf16.msra.mxu0 0
        %1941 = vmatpush.bf16.msra.mxu0 %v1932
        %1942 = vmatmul.bf16.gmra.mxu0 %v1929
        %v1943 = vpop.f32.mrf.mxu0
        %v1944 = vadd.f32 0.0, %v1943
        %v1945 = vpop.f32.mrf.mxu0
        %1946 = vdwg.mxu0
        %v1947 = vadd.f32 %v1926, %v1944
        %v1948 = vpack.c.bf16 %v1878, %v1878
        %v1950 = vsel %vm1002, %v1948, 0
        %v1953 = vsel %vm509, %v1401, 0
        %1955 = vmatpush.bf16.msra.mxu0 0
        %1956 = vmatpush.bf16.msra.mxu0 0
        %1957 = vmatpush.bf16.msra.mxu0 0
        %1958 = vmatpush.bf16.msra.mxu0 0
        %1959 = vmatpush.bf16.msra.mxu0 0
        %1960 = vmatpush.bf16.msra.mxu0 0
        %1961 = vmatpush.bf16.msra.mxu0 0
        %1962 = vmatpush.bf16.msra.mxu0 %v1953
        %1963 = vmatmul.bf16.gmra.mxu0 %v1950
        %v1964 = vpop.f32.mrf.mxu0
        %v1965 = vadd.f32 0.0, %v1964
        %v1966 = vpop.f32.mrf.mxu0
        %1967 = vdwg.mxu0
        %v1968 = vadd.f32 %v1947, %v1965
        %v1969 = vadd.f32 %v1385, %v1968
        %v1970 = vld [vmem:[%s13] sm:$0xff]
        %v1971 = vld [vmem:[%s13 + $0x8] sm:$0xff]
        %v1972 = vld [vmem:[%s13 + $0x10] sm:$0xff]
        %v1973 = vld [vmem:[%s13 + $0x18] sm:$0xff]
        %v1974 = vld [vmem:[%s14] sm:$0x1]
        %v1976 = vsel %vm538, %v1969, 0
        %1978 = vmatpush.msra.mxu0 0.0
        %1979 = vmatpush.msra.mxu0 0.0
        %1980 = vmatpush.msra.mxu0 0.0
        %1981 = vmatpush.msra.mxu0 0.0
        %1982 = vmatpush.msra.mxu0 0.0
        %1983 = vmatpush.msra.mxu0 0.0
        %1984 = vmatpush.msra.mxu0 0.0
        %1985 = vmatpush.msra.mxu0 0.0
        %1986 = vmatpush.msra.mxu0 0.0
        %1987 = vmatpush.msra.mxu0 0.0
        %1988 = vmatpush.msra.mxu0 0.0
        %1989 = vmatpush.msra.mxu0 0.0
        %1990 = vmatpush.msra.mxu0 %v1973
        %1991 = vmatpush.msra.mxu0 %v1972
        %1992 = vmatpush.msra.mxu0 %v1971
        %1993 = vmatpush.msra.mxu0 %v1970
        %1994 = vmatmul.f32.gmra.mxu0 %v1976
        %v1995 = vpop.f32.mrf.mxu0
        %v1996 = vadd.f32 %v1974, %v1995
        %1997 = vdwg.mxu0
        %vm1998 = vcmask 32768
        %1999 = vst.msk [vmem:[%s484] sm:$0x1] %vm1998, %v1996
        %s2000 = sand.u32 %s357, 1
        %s2001 = scalar_lea.sflag [#allocation3], %s2000
        %s2002 = sand.u32 %s357, 1
        %s2003 = scalar_lea.vmem [#allocation2], %s2002
        // Predicated region
        $region81: #{_lambda_.5} parent=79 // pred_check
          %p2004 = pneg %p367
        $region82: #{_lambda_.5} parent=79 // pred_check_branch
          %2006 = sbr.rel (%p2004) target = $region84
        $region83: #{_lambda_.5} parent=79 // pred_region
          %2008 = vsyncadd %s2001, 0
          %s2009 = scalar_lea.hbm %s15, %s29
          %s2011 = sshll.u32 %s2003, 4
          %s2012 = int_to_ptr.vmem [resolvable:$true] %s2011
          %s2013 = sshll.u32 %s2009, 4
          %s2014 = int_to_ptr.hbm [resolvable:$true] %s2013
          %2016 = dma.vmem_to_hbm [thread:$0]  %s2012, 16, %s2014, %s2001
        $region84: #{_lambda_.5} parent=79 // pred_fallthru
          _
      $region80: #{_lambda_.5} parent=5 // pred_fallthru
        _
      %p2017 = scmp.le.s32.totalorder 2, %s24
      // Predicated region
      $region85: #{_lambda_.5} parent=5 // pred_check
        %p2018 = pneg %p2017
      $region86: #{_lambda_.5} parent=5 // pred_check_branch
        %2020 = sbr.rel (%p2018) target = $region88
      $region87: #{_lambda_.5} parent=5 // pred_region
        %s2021 = ssub.s32 %s24, 2
        // Predicated region
        $region89: #{_lambda_.5} parent=87 // pred_check
          %p2022 = pneg %p373
        $region90: #{_lambda_.5} parent=87 // pred_check_branch
          %2024 = sbr.rel (%p2022) target = $region92
        $region91: #{_lambda_.5} parent=87 // pred_region
          %s2025 = sand.u32 %s358, 1
          %s2026 = scalar_lea.sflag [#allocation3], %s2025
          %s2027 = sand.u32 %s358, 1
          %s2028 = scalar_lea.vmem [#allocation2], %s2027
          %2030 = dma.done %s2026, 16
        $region92: #{_lambda_.5} parent=87 // pred_fallthru
          _
      $region88: #{_lambda_.5} parent=5 // pred_fallthru
        _
    $region6: #{_lambda_.5} parent=1 // loop_footer
      %s28 = sadd.s32 1, %s24
    $region7: #{_lambda_.5} parent=1 // loop_footer_branch
      %23 = sbr.rel target = $region3
    $region8: #{_lambda_.5} parent=1 // loop_exit
      _
    %2031 = vsyncpa [#allocation3], 1
    %s2032 = scalar_lea.sflag [#allocation3], 1
    %2033 = vsyncpa %s2032, 1

// kernel: _lambda_.3
$region0: #{_lambda_.3}
  #allocation0 [shape = 'u32[]', space=smem, size = 0x4, offset = 0x4, fixed_abs, tag = 'smem constant byte address 0x4 - core index']
  #allocation1 [shape = 'u32[72,128]{1,0:T(1,128)}', space=vmem, size = 0x9000, scoped, tag = 'internal scratch']
  %s0 = inlined_call_operand.hbm [shape: f32[2,16,16], index: 0, kind: input, shape index: {}]
  %s1 = inlined_call_operand.hbm [shape: bf16[48,32], index: 1, kind: input, shape index: {}]
  %s2 = inlined_call_operand.vmem [shape: f32[1,32], index: 2, kind: input, shape index: {}]
  %s3 = inlined_call_operand.vmem [shape: f32[32,16], index: 3, kind: input, shape index: {}]
  %s4 = inlined_call_operand.vmem [shape: f32[1,1,32], index: 4, kind: input, shape index: {}, may-alias: {4,8}]
  %s5 = inlined_call_operand.vmem [shape: f32[1,1,32], index: 5, kind: input, shape index: {}, may-alias: {5,9,11}]
  %s6 = inlined_call_operand.hbm [shape: bf16[1,96,32], index: 6, kind: input, shape index: {}]
  %s7 = inlined_call_operand.vmem [shape: f32[1,1,32], index: 7, kind: input, shape index: {}]
  %s8 = inlined_call_operand.vmem [shape: f32[1,1,32], index: 8, kind: input, shape index: {}, may-alias: {4,8}]
  %s9 = inlined_call_operand.vmem [shape: f32[1,1,32], index: 9, kind: input, shape index: {}, may-alias: {5,9,11}]
  %s10 = inlined_call_operand.vmem [shape: bf16[1,96,32], index: 10, kind: input, shape index: {}]
  %s11 = inlined_call_operand.vmem [shape: f32[1,1,32], index: 11, kind: input, shape index: {}, may-alias: {5,9,11}]
  %s12 = inlined_call_operand.hbm [shape: bf16[160,64], index: 12, kind: input, shape index: {}]
  %s13 = inlined_call_operand.vmem [shape: f32[1,64], index: 13, kind: input, shape index: {}]
  %s14 = inlined_call_operand.vmem [shape: f32[2,8,64], index: 14, kind: output, shape index: {}]
  %s15 = sld [smem:[#allocation0]]
  $region105: #{_lambda_.3} parent=0
    _
  %s17 = ssub.s32 1, %s15
  %s18 = scalar_select 0, %s17, %s15
  $region1: #{_lambda_.3} parent=0
    #allocation2 [shape = 'u8[16384]{0}', space=vmem, size = 0x4000, scoped, tag = 'input window, operand 0']
    #allocation3 [shape = 's32[2]{0}', space=sflag, size = 0x8, scoped, tag = 'scoped memory for _lambda_.3']
    #allocation4 [shape = 'u8[12288]{0}', space=vmem, size = 0x3000, scoped, tag = 'input window, operand 1, single buffered']
    #allocation5 [shape = 's32[1]{0}', space=sflag, size = 0x4, scoped, tag = 'scoped memory for _lambda_.3']
    #allocation6 [shape = 'u8[24576]{0}', space=vmem, size = 0x6000, scoped, tag = 'input window, operand 6, single buffered']
    #allocation7 [shape = 'u8[40960]{0}', space=vmem, size = 0xa000, scoped, tag = 'input window, operand 12, single buffered']
    #allocation8 [shape = 's32[1]{0}', space=sflag, size = 0x4, scoped, tag = 'scoped memory for _lambda_.3']
    %19 = vsyncpa [#allocation3], 0
    %s20 = scalar_lea.sflag [#allocation3], 1
    %21 = vsyncpa %s20, 0
    %22 = vsyncpa [#allocation5], 0
    %23 = vsyncpa [#allocation8], 0
    loop: start=0, step=1, limit=4
    $region2: #{_lambda_.3} parent=1 // loop_pre_header
      _
    $region3: #{_lambda_.3} parent=1 // loop_header
      %s25 = sphi 0, %s29
      %p26 = scmp.ge.s32.totalorder %s25, 4
      %s35 = sphi 0, %s37
      %s38 = sphi 0, %s35
      %s39 = sphi 0, %s38
      %s55 = sphi 0, %s39
      %s59 = sphi 0, %s59
      %s61 = sphi 0, %s59
      %s62 = sphi 0, %s61
      %s76 = sphi 0, %s62
      %s80 = sphi 0, %s80
      %s82 = sphi 0, %s80
      %s83 = sphi 0, %s82
      %s97 = sphi 0, %s83
      %s101 = sphi 0, %s101
      %s103 = sphi 0, %s101
      %s104 = sphi 0, %s103
      %s118 = sphi 0, %s104
      %s122 = sphi 0, %s122
      %s124 = sphi 0, %s122
      %s125 = sphi 0, %s124
      %s139 = sphi 0, %s125
      %s143 = sphi 0, %s143
      %s145 = sphi 0, %s143
      %s146 = sphi 0, %s145
      %s160 = sphi 0, %s146
      %s164 = sphi 0, %s164
      %s166 = sphi 0, %s164
      %s167 = sphi 0, %s166
      %s181 = sphi 0, %s167
      %s185 = sphi 0, %s185
      %s187 = sphi 0, %s185
      %s188 = sphi 0, %s187
      %s202 = sphi 0, %s188
      %s206 = sphi 0, %s206
      %s208 = sphi 0, %s206
      %s209 = sphi 0, %s208
      %s223 = sphi 0, %s209
      %s227 = sphi 0, %s227
      %s229 = sphi 0, %s227
      %s230 = sphi 0, %s229
      %s244 = sphi 0, %s230
      %s248 = sphi 0, %s248
      %s250 = sphi 0, %s248
      %s251 = sphi 0, %s250
      %s265 = sphi 0, %s251
      %s269 = sphi 0, %s269
      %s271 = sphi 0, %s269
      %s272 = sphi 0, %s271
      %s286 = sphi 0, %s272
      %s290 = sphi 0, %s290
      %s292 = sphi 0, %s290
      %s293 = sphi 0, %s292
      %s307 = sphi 0, %s293
      %s311 = sphi 0, %s311
      %s313 = sphi 0, %s311
      %s314 = sphi 0, %s313
      %s328 = sphi 0, %s314
      %s334 = sphi 0, %s336
      %s337 = sphi 0, %s334
      %s338 = sphi 0, %s337
      %s354 = sphi 0, %s338
    $region4: #{_lambda_.3} parent=1 // loop_header_branch
      %28 = sbr.rel (%p26) target = $region8
    $region5: #{_lambda_.3} parent=1 // loop_body
      %s30 = ssub.s32 %s25, 1
      %s31 = ssub.s32 %s25, 2
      %s32 = sadd.s32 %s25, 1
      %s33 = ssub.s32 %s25, %s32
      %p34 = scmp.eq.s32.totalorder %s33, 0
      %s36 = sadd.s32 %s35, 1
      %s37 = scalar_select %p34, %s35, %s36
      %p40 = pneg %p34
      %p41 = scmp.eq.s32.totalorder %s25, 1
      %p42 = por %p40, %p41
      %p43 = scmp.ne.s32.totalorder %s35, %s38
      %p44 = scmp.eq.s32.totalorder %s25, 0
      %p45 = por %p43, %p44
      %p46 = scmp.ne.s32.totalorder %s35, %s38
      %p47 = scmp.eq.s32.totalorder %s30, 1
      %p48 = por %p46, %p47
      %p49 = scmp.ne.s32.totalorder %s38, %s39
      %p50 = scmp.eq.s32.totalorder %s30, 0
      %p51 = por %p49, %p50
      %p52 = scmp.ne.s32.totalorder %s38, %s39
      %p53 = scmp.eq.s32.totalorder %s31, 1
      %p54 = por %p52, %p53
      %p56 = scmp.ne.s32.totalorder %s39, %s55
      %p57 = scmp.eq.s32.totalorder %s31, 0
      %p58 = por %p56, %p57
      %s60 = sadd.s32 %s59, 1
      %p63 = scmp.eq.s32.totalorder %s25, 1
      %p64 = scmp.ne.s32.totalorder %s59, %s61
      %p65 = scmp.eq.s32.totalorder %s25, 0
      %p66 = por %p64, %p65
      %p67 = scmp.ne.s32.totalorder %s59, %s61
      %p68 = scmp.eq.s32.totalorder %s30, 1
      %p69 = por %p67, %p68
      %p70 = scmp.ne.s32.totalorder %s61, %s62
      %p71 = scmp.eq.s32.totalorder %s30, 0
      %p72 = por %p70, %p71
      %p73 = scmp.ne.s32.totalorder %s61, %s62
      %p74 = scmp.eq.s32.totalorder %s31, 1
      %p75 = por %p73, %p74
      %p77 = scmp.ne.s32.totalorder %s62, %s76
      %p78 = scmp.eq.s32.totalorder %s31, 0
      %p79 = por %p77, %p78
      %s81 = sadd.s32 %s80, 1
      %p84 = scmp.eq.s32.totalorder %s25, 1
      %p85 = scmp.ne.s32.totalorder %s80, %s82
      %p86 = scmp.eq.s32.totalorder %s25, 0
      %p87 = por %p85, %p86
      %p88 = scmp.ne.s32.totalorder %s80, %s82
      %p89 = scmp.eq.s32.totalorder %s30, 1
      %p90 = por %p88, %p89
      %p91 = scmp.ne.s32.totalorder %s82, %s83
      %p92 = scmp.eq.s32.totalorder %s30, 0
      %p93 = por %p91, %p92
      %p94 = scmp.ne.s32.totalorder %s82, %s83
      %p95 = scmp.eq.s32.totalorder %s31, 1
      %p96 = por %p94, %p95
      %p98 = scmp.ne.s32.totalorder %s83, %s97
      %p99 = scmp.eq.s32.totalorder %s31, 0
      %p100 = por %p98, %p99
      %s102 = sadd.s32 %s101, 1
      %p105 = scmp.eq.s32.totalorder %s25, 1
      %p106 = scmp.ne.s32.totalorder %s101, %s103
      %p107 = scmp.eq.s32.totalorder %s25, 0
      %p108 = por %p106, %p107
      %p109 = scmp.ne.s32.totalorder %s101, %s103
      %p110 = scmp.eq.s32.totalorder %s30, 1
      %p111 = por %p109, %p110
      %p112 = scmp.ne.s32.totalorder %s103, %s104
      %p113 = scmp.eq.s32.totalorder %s30, 0
      %p114 = por %p112, %p113
      %p115 = scmp.ne.s32.totalorder %s103, %s104
      %p116 = scmp.eq.s32.totalorder %s31, 1
      %p117 = por %p115, %p116
      %p119 = scmp.ne.s32.totalorder %s104, %s118
      %p120 = scmp.eq.s32.totalorder %s31, 0
      %p121 = por %p119, %p120
      %s123 = sadd.s32 %s122, 1
      %p126 = scmp.eq.s32.totalorder %s25, 1
      %p127 = scmp.ne.s32.totalorder %s122, %s124
      %p128 = scmp.eq.s32.totalorder %s25, 0
      %p129 = por %p127, %p128
      %p130 = scmp.ne.s32.totalorder %s122, %s124
      %p131 = scmp.eq.s32.totalorder %s30, 1
      %p132 = por %p130, %p131
      %p133 = scmp.ne.s32.totalorder %s124, %s125
      %p134 = scmp.eq.s32.totalorder %s30, 0
      %p135 = por %p133, %p134
      %p136 = scmp.ne.s32.totalorder %s124, %s125
      %p137 = scmp.eq.s32.totalorder %s31, 1
      %p138 = por %p136, %p137
      %p140 = scmp.ne.s32.totalorder %s125, %s139
      %p141 = scmp.eq.s32.totalorder %s31, 0
      %p142 = por %p140, %p141
      %s144 = sadd.s32 %s143, 1
      %p147 = scmp.eq.s32.totalorder %s25, 1
      %p148 = scmp.ne.s32.totalorder %s143, %s145
      %p149 = scmp.eq.s32.totalorder %s25, 0
      %p150 = por %p148, %p149
      %p151 = scmp.ne.s32.totalorder %s143, %s145
      %p152 = scmp.eq.s32.totalorder %s30, 1
      %p153 = por %p151, %p152
      %p154 = scmp.ne.s32.totalorder %s145, %s146
      %p155 = scmp.eq.s32.totalorder %s30, 0
      %p156 = por %p154, %p155
      %p157 = scmp.ne.s32.totalorder %s145, %s146
      %p158 = scmp.eq.s32.totalorder %s31, 1
      %p159 = por %p157, %p158
      %p161 = scmp.ne.s32.totalorder %s146, %s160
      %p162 = scmp.eq.s32.totalorder %s31, 0
      %p163 = por %p161, %p162
      %s165 = sadd.s32 %s164, 1
      %p168 = scmp.eq.s32.totalorder %s25, 1
      %p169 = scmp.ne.s32.totalorder %s164, %s166
      %p170 = scmp.eq.s32.totalorder %s25, 0
      %p171 = por %p169, %p170
      %p172 = scmp.ne.s32.totalorder %s164, %s166
      %p173 = scmp.eq.s32.totalorder %s30, 1
      %p174 = por %p172, %p173
      %p175 = scmp.ne.s32.totalorder %s166, %s167
      %p176 = scmp.eq.s32.totalorder %s30, 0
      %p177 = por %p175, %p176
      %p178 = scmp.ne.s32.totalorder %s166, %s167
      %p179 = scmp.eq.s32.totalorder %s31, 1
      %p180 = por %p178, %p179
      %p182 = scmp.ne.s32.totalorder %s167, %s181
      %p183 = scmp.eq.s32.totalorder %s31, 0
      %p184 = por %p182, %p183
      %s186 = sadd.s32 %s185, 1
      %p189 = scmp.eq.s32.totalorder %s25, 1
      %p190 = scmp.ne.s32.totalorder %s185, %s187
      %p191 = scmp.eq.s32.totalorder %s25, 0
      %p192 = por %p190, %p191
      %p193 = scmp.ne.s32.totalorder %s185, %s187
      %p194 = scmp.eq.s32.totalorder %s30, 1
      %p195 = por %p193, %p194
      %p196 = scmp.ne.s32.totalorder %s187, %s188
      %p197 = scmp.eq.s32.totalorder %s30, 0
      %p198 = por %p196, %p197
      %p199 = scmp.ne.s32.totalorder %s187, %s188
      %p200 = scmp.eq.s32.totalorder %s31, 1
      %p201 = por %p199, %p200
      %p203 = scmp.ne.s32.totalorder %s188, %s202
      %p204 = scmp.eq.s32.totalorder %s31, 0
      %p205 = por %p203, %p204
      %s207 = sadd.s32 %s206, 1
      %p210 = scmp.eq.s32.totalorder %s25, 1
      %p211 = scmp.ne.s32.totalorder %s206, %s208
      %p212 = scmp.eq.s32.totalorder %s25, 0
      %p213 = por %p211, %p212
      %p214 = scmp.ne.s32.totalorder %s206, %s208
      %p215 = scmp.eq.s32.totalorder %s30, 1
      %p216 = por %p214, %p215
      %p217 = scmp.ne.s32.totalorder %s208, %s209
      %p218 = scmp.eq.s32.totalorder %s30, 0
      %p219 = por %p217, %p218
      %p220 = scmp.ne.s32.totalorder %s208, %s209
      %p221 = scmp.eq.s32.totalorder %s31, 1
      %p222 = por %p220, %p221
      %p224 = scmp.ne.s32.totalorder %s209, %s223
      %p225 = scmp.eq.s32.totalorder %s31, 0
      %p226 = por %p224, %p225
      %s228 = sadd.s32 %s227, 1
      %p231 = scmp.eq.s32.totalorder %s25, 1
      %p232 = scmp.ne.s32.totalorder %s227, %s229
      %p233 = scmp.eq.s32.totalorder %s25, 0
      %p234 = por %p232, %p233
      %p235 = scmp.ne.s32.totalorder %s227, %s229
      %p236 = scmp.eq.s32.totalorder %s30, 1
      %p237 = por %p235, %p236
      %p238 = scmp.ne.s32.totalorder %s229, %s230
      %p239 = scmp.eq.s32.totalorder %s30, 0
      %p240 = por %p238, %p239
      %p241 = scmp.ne.s32.totalorder %s229, %s230
      %p242 = scmp.eq.s32.totalorder %s31, 1
      %p243 = por %p241, %p242
      %p245 = scmp.ne.s32.totalorder %s230, %s244
      %p246 = scmp.eq.s32.totalorder %s31, 0
      %p247 = por %p245, %p246
      %s249 = sadd.s32 %s248, 1
      %p252 = scmp.eq.s32.totalorder %s25, 1
      %p253 = scmp.ne.s32.totalorder %s248, %s250
      %p254 = scmp.eq.s32.totalorder %s25, 0
      %p255 = por %p253, %p254
      %p256 = scmp.ne.s32.totalorder %s248, %s250
      %p257 = scmp.eq.s32.totalorder %s30, 1
      %p258 = por %p256, %p257
      %p259 = scmp.ne.s32.totalorder %s250, %s251
      %p260 = scmp.eq.s32.totalorder %s30, 0
      %p261 = por %p259, %p260
      %p262 = scmp.ne.s32.totalorder %s250, %s251
      %p263 = scmp.eq.s32.totalorder %s31, 1
      %p264 = por %p262, %p263
      %p266 = scmp.ne.s32.totalorder %s251, %s265
      %p267 = scmp.eq.s32.totalorder %s31, 0
      %p268 = por %p266, %p267
      %s270 = sadd.s32 %s269, 1
      %p273 = scmp.eq.s32.totalorder %s25, 1
      %p274 = scmp.ne.s32.totalorder %s269, %s271
      %p275 = scmp.eq.s32.totalorder %s25, 0
      %p276 = por %p274, %p275
      %p277 = scmp.ne.s32.totalorder %s269, %s271
      %p278 = scmp.eq.s32.totalorder %s30, 1
      %p279 = por %p277, %p278
      %p280 = scmp.ne.s32.totalorder %s271, %s272
      %p281 = scmp.eq.s32.totalorder %s30, 0
      %p282 = por %p280, %p281
      %p283 = scmp.ne.s32.totalorder %s271, %s272
      %p284 = scmp.eq.s32.totalorder %s31, 1
      %p285 = por %p283, %p284
      %p287 = scmp.ne.s32.totalorder %s272, %s286
      %p288 = scmp.eq.s32.totalorder %s31, 0
      %p289 = por %p287, %p288
      %s291 = sadd.s32 %s290, 1
      %p294 = scmp.eq.s32.totalorder %s25, 1
      %p295 = scmp.ne.s32.totalorder %s290, %s292
      %p296 = scmp.eq.s32.totalorder %s25, 0
      %p297 = por %p295, %p296
      %p298 = scmp.ne.s32.totalorder %s290, %s292
      %p299 = scmp.eq.s32.totalorder %s30, 1
      %p300 = por %p298, %p299
      %p301 = scmp.ne.s32.totalorder %s292, %s293
      %p302 = scmp.eq.s32.totalorder %s30, 0
      %p303 = por %p301, %p302
      %p304 = scmp.ne.s32.totalorder %s292, %s293
      %p305 = scmp.eq.s32.totalorder %s31, 1
      %p306 = por %p304, %p305
      %p308 = scmp.ne.s32.totalorder %s293, %s307
      %p309 = scmp.eq.s32.totalorder %s31, 0
      %p310 = por %p308, %p309
      %s312 = sadd.s32 %s311, 1
      %p315 = scmp.eq.s32.totalorder %s25, 1
      %p316 = scmp.ne.s32.totalorder %s311, %s313
      %p317 = scmp.eq.s32.totalorder %s25, 0
      %p318 = por %p316, %p317
      %p319 = scmp.ne.s32.totalorder %s311, %s313
      %p320 = scmp.eq.s32.totalorder %s30, 1
      %p321 = por %p319, %p320
      %p322 = scmp.ne.s32.totalorder %s313, %s314
      %p323 = scmp.eq.s32.totalorder %s30, 0
      %p324 = por %p322, %p323
      %p325 = scmp.ne.s32.totalorder %s313, %s314
      %p326 = scmp.eq.s32.totalorder %s31, 1
      %p327 = por %p325, %p326
      %p329 = scmp.ne.s32.totalorder %s314, %s328
      %p330 = scmp.eq.s32.totalorder %s31, 0
      %p331 = por %p329, %p330
      %s332 = ssub.s32 %s25, %s32
      %p333 = scmp.eq.s32.totalorder %s332, 0
      %s335 = sadd.s32 %s334, 1
      %s336 = scalar_select %p333, %s334, %s335
      %p339 = pneg %p333
      %p340 = scmp.eq.s32.totalorder %s25, 1
      %p341 = por %p339, %p340
      %p342 = scmp.ne.s32.totalorder %s334, %s337
      %p343 = scmp.eq.s32.totalorder %s25, 0
      %p344 = por %p342, %p343
      %p345 = scmp.ne.s32.totalorder %s334, %s337
      %p346 = scmp.eq.s32.totalorder %s30, 1
      %p347 = por %p345, %p346
      %p348 = scmp.ne.s32.totalorder %s337, %s338
      %p349 = scmp.eq.s32.totalorder %s30, 0
      %p350 = por %p348, %p349
      %p351 = scmp.ne.s32.totalorder %s337, %s338
      %p352 = scmp.eq.s32.totalorder %s31, 1
      %p353 = por %p351, %p352
      %p355 = scmp.ne.s32.totalorder %s338, %s354
      %p356 = scmp.eq.s32.totalorder %s31, 0
      %p357 = por %p355, %p356
      %p358 = scmp.le.s32.totalorder 1, %s25
      %p359 = scmp.lt.s32.totalorder %s25, 3
      %p360 = pnand %p358, %p359
      %p361 = pneg %p360
      // Predicated region
      $region9: #{_lambda_.3} parent=5 // pred_check
        _
      $region10: #{_lambda_.3} parent=5 // pred_check_branch
        %363 = sbr.rel (%p360) target = $region12
      $region11: #{_lambda_.3} parent=5 // pred_region
        %s364 = ssub.s32 %s25, 1
        // Predicated region
        $region13: #{_lambda_.3} parent=11 // pred_check
          %p365 = pneg %p72
        $region14: #{_lambda_.3} parent=11 // pred_check_branch
          %367 = sbr.rel (%p365) target = $region16
        $region15: #{_lambda_.3} parent=11 // pred_region
          %369 = vsyncadd [#allocation5], 0
          %s370 = sshll.u32 %s1, 4
          %s371 = int_to_ptr.hbm [resolvable:$true] %s370
          %s372 = sshll.u32 [#allocation4], 4
          %s373 = int_to_ptr.vmem [resolvable:$true] %s372
          %378 = dma.hbm_to_vmem [thread:$0]  %s371, 384, %s373, [#allocation5], 64, 64, 4
        $region16: #{_lambda_.3} parent=11 // pred_fallthru
          _
        // Predicated region
        $region17: #{_lambda_.3} parent=11 // pred_check
          %p379 = pneg %p93
        $region18: #{_lambda_.3} parent=11 // pred_check_branch
          %381 = sbr.rel (%p379) target = $region20
        $region19: #{_lambda_.3} parent=11 // pred_region
          _
        $region20: #{_lambda_.3} parent=11 // pred_fallthru
          _
        // Predicated region
        $region21: #{_lambda_.3} parent=11 // pred_check
          %p382 = pneg %p114
        $region22: #{_lambda_.3} parent=11 // pred_check_branch
          %384 = sbr.rel (%p382) target = $region24
        $region23: #{_lambda_.3} parent=11 // pred_region
          _
        $region24: #{_lambda_.3} parent=11 // pred_fallthru
          _
        // Predicated region
        $region25: #{_lambda_.3} parent=11 // pred_check
          %p385 = pneg %p135
        $region26: #{_lambda_.3} parent=11 // pred_check_branch
          %387 = sbr.rel (%p385) target = $region28
        $region27: #{_lambda_.3} parent=11 // pred_region
          _
        $region28: #{_lambda_.3} parent=11 // pred_fallthru
          _
        // Predicated region
        $region29: #{_lambda_.3} parent=11 // pred_check
          %p388 = pneg %p156
        $region30: #{_lambda_.3} parent=11 // pred_check_branch
          %390 = sbr.rel (%p388) target = $region32
        $region31: #{_lambda_.3} parent=11 // pred_region
          _
        $region32: #{_lambda_.3} parent=11 // pred_fallthru
          _
        // Predicated region
        $region33: #{_lambda_.3} parent=11 // pred_check
          %p391 = pneg %p177
        $region34: #{_lambda_.3} parent=11 // pred_check_branch
          %393 = sbr.rel (%p391) target = $region36
        $region35: #{_lambda_.3} parent=11 // pred_region
          %395 = vsyncadd [#allocation5], 0
          %s396 = sshll.u32 %s6, 4
          %s397 = int_to_ptr.hbm [resolvable:$true] %s396
          %s398 = sshll.u32 [#allocation6], 4
          %s399 = int_to_ptr.vmem [resolvable:$true] %s398
          %404 = dma.hbm_to_vmem [thread:$0]  %s397, 768, %s399, [#allocation5], 64, 64, 4
        $region36: #{_lambda_.3} parent=11 // pred_fallthru
          _
        // Predicated region
        $region37: #{_lambda_.3} parent=11 // pred_check
          %p405 = pneg %p198
        $region38: #{_lambda_.3} parent=11 // pred_check_branch
          %407 = sbr.rel (%p405) target = $region40
        $region39: #{_lambda_.3} parent=11 // pred_region
          _
        $region40: #{_lambda_.3} parent=11 // pred_fallthru
          _
        // Predicated region
        $region41: #{_lambda_.3} parent=11 // pred_check
          %p408 = pneg %p219
        $region42: #{_lambda_.3} parent=11 // pred_check_branch
          %410 = sbr.rel (%p408) target = $region44
        $region43: #{_lambda_.3} parent=11 // pred_region
          _
        $region44: #{_lambda_.3} parent=11 // pred_fallthru
          _
        // Predicated region
        $region45: #{_lambda_.3} parent=11 // pred_check
          %p411 = pneg %p240
        $region46: #{_lambda_.3} parent=11 // pred_check_branch
          %413 = sbr.rel (%p411) target = $region48
        $region47: #{_lambda_.3} parent=11 // pred_region
          _
        $region48: #{_lambda_.3} parent=11 // pred_fallthru
          _
        // Predicated region
        $region49: #{_lambda_.3} parent=11 // pred_check
          %p414 = pneg %p261
        $region50: #{_lambda_.3} parent=11 // pred_check_branch
          %416 = sbr.rel (%p414) target = $region52
        $region51: #{_lambda_.3} parent=11 // pred_region
          _
        $region52: #{_lambda_.3} parent=11 // pred_fallthru
          _
        // Predicated region
        $region53: #{_lambda_.3} parent=11 // pred_check
          %p417 = pneg %p282
        $region54: #{_lambda_.3} parent=11 // pred_check_branch
          %419 = sbr.rel (%p417) target = $region56
        $region55: #{_lambda_.3} parent=11 // pred_region
          _
        $region56: #{_lambda_.3} parent=11 // pred_fallthru
          _
        // Predicated region
        $region57: #{_lambda_.3} parent=11 // pred_check
          %p420 = pneg %p303
        $region58: #{_lambda_.3} parent=11 // pred_check_branch
          %422 = sbr.rel (%p420) target = $region60
        $region59: #{_lambda_.3} parent=11 // pred_region
          %424 = vsyncadd [#allocation8], 0
          %s425 = sshll.u32 %s12, 4
          %s426 = int_to_ptr.hbm [resolvable:$true] %s425
          %s427 = sshll.u32 [#allocation7], 4
          %s428 = int_to_ptr.vmem [resolvable:$true] %s427
          %433 = dma.hbm_to_vmem [thread:$0]  %s426, 1280, %s428, [#allocation8], 64, 64, 4
        $region60: #{_lambda_.3} parent=11 // pred_fallthru
          _
        // Predicated region
        $region61: #{_lambda_.3} parent=11 // pred_check
          %p434 = pneg %p324
        $region62: #{_lambda_.3} parent=11 // pred_check_branch
          %436 = sbr.rel (%p434) target = $region64
        $region63: #{_lambda_.3} parent=11 // pred_region
          _
        $region64: #{_lambda_.3} parent=11 // pred_fallthru
          _
      $region12: #{_lambda_.3} parent=5 // pred_fallthru
        _
      %p437 = scmp.lt.s32.totalorder %s25, 2
      // Predicated region
      $region65: #{_lambda_.3} parent=5 // pred_check
        %p438 = pneg %p437
      $region66: #{_lambda_.3} parent=5 // pred_check_branch
        %440 = sbr.rel (%p438) target = $region68
      $region67: #{_lambda_.3} parent=5 // pred_region
        // Predicated region
        $region69: #{_lambda_.3} parent=67 // pred_check
          %p441 = pneg %p45
        $region70: #{_lambda_.3} parent=67 // pred_check_branch
          %443 = sbr.rel (%p441) target = $region72
        $region71: #{_lambda_.3} parent=67 // pred_region
          %s444 = sand.u32 %s35, 1
          %s445 = scalar_lea.sflag [#allocation3], %s444
          %s446 = sand.u32 %s35, 1
          %s447 = smul.addr %s446, 16
          %s448 = scalar_lea.vmem [#allocation2], %s447
          %450 = vsyncadd %s445, 0
          %s451 = smul.addr %s25, 2
          %s452 = smul.addr %s451, 8
          %s453 = scalar_lea.hbm %s0, %s452
          %s454 = sshll.u32 %s453, 4
          %s455 = int_to_ptr.hbm [resolvable:$true] %s454
          %s456 = sshll.u32 %s448, 4
          %s457 = int_to_ptr.vmem [resolvable:$true] %s456
          %462 = dma.hbm_to_vmem [thread:$0]  %s455, 256, %s457, %s445, 128, 128, 8
        $region72: #{_lambda_.3} parent=67 // pred_fallthru
          _
      $region68: #{_lambda_.3} parent=5 // pred_fallthru
        _
      %p463 = scmp.le.s32.totalorder 1, %s25
      %p464 = scmp.lt.s32.totalorder %s25, 3
      %p465 = pnand %p463, %p464
      %p466 = pneg %p465
      // Predicated region
      $region73: #{_lambda_.3} parent=5 // pred_check
        _
      $region74: #{_lambda_.3} parent=5 // pred_check_branch
        %468 = sbr.rel (%p465) target = $region76
      $region75: #{_lambda_.3} parent=5 // pred_region
        %s469 = ssub.s32 %s25, 1
        %s470 = sand.u32 %s38, 1
        %s471 = scalar_lea.sflag [#allocation3], %s470
        %s472 = sand.u32 %s38, 1
        %s473 = smul.addr %s472, 16
        %s474 = scalar_lea.vmem [#allocation2], %s473
        // Predicated region
        $region77: #{_lambda_.3} parent=75 // pred_check
          %p475 = pneg %p51
        $region78: #{_lambda_.3} parent=75 // pred_check_branch
          %477 = sbr.rel (%p475) target = $region80
        $region79: #{_lambda_.3} parent=75 // pred_region
          %479 = dma.done %s471, 256
        $region80: #{_lambda_.3} parent=75 // pred_fallthru
          _
        // Predicated region
        $region81: #{_lambda_.3} parent=75 // pred_check
          %p480 = pneg %p72
        $region82: #{_lambda_.3} parent=75 // pred_check_branch
          %482 = sbr.rel (%p480) target = $region84
        $region83: #{_lambda_.3} parent=75 // pred_region
          %484 = dma.done [#allocation5], 384
        $region84: #{_lambda_.3} parent=75 // pred_fallthru
          _
        // Predicated region
        $region85: #{_lambda_.3} parent=75 // pred_check
          %p485 = pneg %p177
        $region86: #{_lambda_.3} parent=75 // pred_check_branch
          %487 = sbr.rel (%p485) target = $region88
        $region87: #{_lambda_.3} parent=75 // pred_region
          %489 = dma.done [#allocation5], 768
        $region88: #{_lambda_.3} parent=75 // pred_fallthru
          _
        // Predicated region
        $region89: #{_lambda_.3} parent=75 // pred_check
          %p490 = pneg %p303
        $region90: #{_lambda_.3} parent=75 // pred_check_branch
          %492 = sbr.rel (%p490) target = $region92
        $region91: #{_lambda_.3} parent=75 // pred_region
          %494 = dma.done [#allocation8], 1280
        $region92: #{_lambda_.3} parent=75 // pred_fallthru
          _
        %s495 = sand.u32 %s38, 1
        %s496 = scalar_lea.sflag [#allocation3], %s495
        %s497 = sand.u32 %s38, 1
        %s498 = smul.addr %s497, 16
        %s499 = scalar_lea.vmem [#allocation2], %s498
        %p500 = pneg %p51
        %p501 = pneg %p48
        %p502 = pneg %p72
        %p503 = pneg %p69
        %p504 = pneg %p93
        %p505 = pneg %p90
        %p506 = pneg %p114
        %p507 = pneg %p111
        %p508 = pneg %p135
        %p509 = pneg %p132
        %p510 = pneg %p156
        %p511 = pneg %p153
        %p512 = pneg %p177
        %p513 = pneg %p174
        %p514 = pneg %p198
        %p515 = pneg %p195
        %p516 = pneg %p219
        %p517 = pneg %p216
        %p518 = pneg %p240
        %p519 = pneg %p237
        %p520 = pneg %p261
        %p521 = pneg %p258
        %p522 = pneg %p282
        %p523 = pneg %p279
        %p524 = pneg %p303
        %p525 = pneg %p300
        %p526 = pneg %p324
        %p527 = pneg %p321
        %p528 = pneg %p350
        %p529 = pneg %p347
        %p530 = scmp.lt.s32.totalorder %s30, 1
        %s531 = scalar_select %p530, %s30, 1
        %s532 = smul.addr %s531, 8
        %s533 = scalar_lea.vmem %s14, %s532
        %p534 = scmp.lt.s32.totalorder %s30, 1
        %s535 = scalar_select %p534, %s30, 1
        %s536 = smul.addr %s535, 8
        %s537 = scalar_lea.vmem %s14, %s536
        %v539 = vld [vmem:[%s474] sm:$0xff]
        %v540 = vld [vmem:[%s474 + $0x8] sm:$0xff]
        %v541 = vld [vmem:[#allocation4] sm:$0xf]
        %v542 = vld [vmem:[#allocation4 + $0x4] sm:$0xf]
        %v543 = vld [vmem:[#allocation4 + $0x8] sm:$0xf]
        %v544 = vld [vmem:[#allocation4 + $0xc] sm:$0xf]
        %v545 = vld [vmem:[#allocation4 + $0x10] sm:$0xf]
        %v546 = vld [vmem:[#allocation4 + $0x14] sm:$0xf]
        %v547 = vld [vmem:[%s2] sm:$0x1]
        %vm550 = vcmask 1040384
        %v551 = vrot.slane %v539, 7
        %v552 = vrot.slane %v540, 7
        %v553 = vsel %vm550, %v551, %v552
        %v557 = vsel %vm550, 0.0, %v551
        %v558 = vsel %vm550, %v552, 0.0
        %vm561 = vcmask 1046528
        %v562 = vrot.slane %v557, 1
        %v563 = vrot.slane %v553, 1
        %v564 = vsel %vm561, %v562, %v563
        %v565 = vrot.slane %v558, 1
        %v566 = vsel %vm561, %v563, %v565
        %567 = vrot.lane.b32.xlu0 %v564, 16
        %v568 = vpop.permute.xlu0 %567
        %569 = vrot.lane.b32.xlu0 %v566, 16
        %v570 = vpop.permute.xlu0 %569
        %vm573 = vcmask 1045504
        %v574 = vrot.slane %v557, 2
        %v575 = vrot.slane %v553, 2
        %v576 = vsel %vm573, %v574, %v575
        %v577 = vrot.slane %v558, 2
        %v578 = vsel %vm573, %v575, %v577
        %579 = vrot.lane.b32.xlu0 %v576, 32
        %v580 = vpop.permute.xlu0 %579
        %581 = vrot.lane.b32.xlu0 %v578, 32
        %v582 = vpop.permute.xlu0 %581
        %vm585 = vcmask 130048
        %v586 = vsel %vm585, %v557, %v568
        %v587 = vsel %vm585, %v553, %v570
        %vm588 = vcmask 261120
        %v589 = vsel %vm588, %v586, %v580
        %v590 = vsel %vm588, %v587, %v582
        %v591 = vpack.c.bf16 %v590, %v589
        %v593 = vperm.slane %v547, 0
        %v601 = vunpack.c.l.b16 %v541
        %v602 = vunpack.c.l.b16 %v542
        %v603 = vunpack.c.l.b16 %v543
        %v604 = vunpack.c.l.b16 %v544
        %v605 = vunpack.c.l.b16 %v545
        %v606 = vunpack.c.l.b16 %v546
        %v607 = vpack.c.b16 %v602, %v601
        %v608 = vpack.c.b16 %v604, %v603
        %v609 = vpack.c.b16 %v606, %v605
        %vm613 = vcmask 392192
        %v615 = vsel %vm613, %v591, 0
        %617 = vmatpush.bf16.msra.mxu0 0
        %618 = vmatpush.bf16.msra.mxu0 0
        %619 = vmatpush.bf16.msra.mxu0 0
        %620 = vmatpush.bf16.msra.mxu0 0
        %621 = vmatpush.bf16.msra.mxu0 0
        %622 = vmatpush.bf16.msra.mxu0 %v609
        %623 = vmatpush.bf16.msra.mxu0 %v608
        %624 = vmatpush.bf16.msra.mxu0 %v607
        %625 = vmatmul.bf16.gmra.mxu0 %v615
        %v626 = vpop.f32.mrf.mxu0
        %v627 = vadd.f32 %v593, %v626
        %v628 = vpop.f32.mrf.mxu0
        %v629 = vadd.f32 %v593, %v628
        %630 = vdwg.mxu0
        %v631 = vld [vmem:[%s3] sm:$0xff]
        %v632 = vld [vmem:[%s3 + $0x8] sm:$0xff]
        %v633 = vld [vmem:[%s3 + $0x10] sm:$0xff]
        %v634 = vld [vmem:[%s3 + $0x18] sm:$0xff]
        %v635 = vld [vmem:[%s4] sm:$0x1]
        %v636 = vld [vmem:[%s5] sm:$0x1]
        %v637 = vsel %vm588, %v627, 0.0
        %v638 = vsel %vm588, %v629, 0.0
        %v639 = vadd.f32 %v637, %v638
        %v640 = vrot.slane %v639, 4
        %v641 = vadd.f32 %v639, %v640
        %v642 = vrot.slane %v641, 2
        %v643 = vadd.f32 %v641, %v642
        %v644 = vrot.slane %v643, 1
        %v645 = vadd.f32 %v643, %v644
        %v647 = vsel %vm588, %v645, 0
        %649 = vmatpush.msra.mxu0 0.0
        %650 = vmatpush.msra.mxu0 0.0
        %651 = vmatpush.msra.mxu0 0.0
        %652 = vmatpush.msra.mxu0 0.0
        %653 = vmatpush.msra.mxu0 0.0
        %654 = vmatpush.msra.mxu0 0.0
        %655 = vmatpush.msra.mxu0 0.0
        %656 = vmatpush.msra.mxu0 0.0
        %657 = vmatpush.msra.mxu0 0.0
        %658 = vmatpush.msra.mxu0 0.0
        %659 = vmatpush.msra.mxu0 0.0
        %660 = vmatpush.msra.mxu0 0.0
        %661 = vmatpush.msra.mxu0 %v634
        %662 = vmatpush.msra.mxu0 %v633
        %663 = vmatpush.msra.mxu0 %v632
        %664 = vmatpush.msra.mxu0 %v631
        %665 = vmatmul.f32.gmra.mxu0 %v647
        %v666 = vpop.f32.mrf.mxu0
        %v667 = vadd.f32 0.0, %v666
        %668 = vdwg.mxu0
        %v669 = vmul.f32 %v667, 0.03125
        %v671 = vsel %vm585, %v669, 0
        %v674 = vsel %vm585, %v631, 0
        %v677 = vsel %vm585, %v632, 0
        %v680 = vsel %vm585, %v633, 0
        %v683 = vsel %vm585, %v634, 0
        %685 = vmatpush.xpose.msra.mxu0 0.0
        %686 = vmatpush.xpose.msra.mxu0 0.0
        %687 = vmatpush.xpose.msra.mxu0 0.0
        %688 = vmatpush.xpose.msra.mxu0 0.0
        %689 = vmatpush.xpose.msra.mxu0 0.0
        %690 = vmatpush.xpose.msra.mxu0 0.0
        %691 = vmatpush.xpose.msra.mxu0 0.0
        %692 = vmatpush.xpose.msra.mxu0 0.0
        %693 = vmatpush.xpose.msra.mxu0 0.0
        %694 = vmatpush.xpose.msra.mxu0 0.0
        %695 = vmatpush.xpose.msra.mxu0 0.0
        %696 = vmatpush.xpose.msra.mxu0 0.0
        %697 = vmatpush.xpose.msra.mxu0 %v683
        %698 = vmatpush.xpose.msra.mxu0 %v680
        %699 = vmatpush.xpose.msra.mxu0 %v677
        %700 = vmatpush.xpose.msra.mxu0 %v674
        %701 = vmatmul.f32.gmra.mxu0 %v671
        %v702 = vpop.f32.mrf.mxu0
        %v703 = vadd.f32 0.0, %v702
        %704 = vdwg.mxu0
        %v705 = vperm.slane %v703, 0
        %v706 = vsub.f32 %v627, %v705
        %v707 = vsub.f32 %v629, %v705
        %v708 = vmul.f32 %v706, %v706
        %v709 = vmul.f32 %v707, %v707
        %v710 = vsel %vm588, %v708, 0.0
        %v711 = vsel %vm588, %v709, 0.0
        %v712 = vadd.f32 %v710, %v711
        %v713 = vrot.slane %v712, 4
        %v714 = vadd.f32 %v712, %v713
        %v715 = vrot.slane %v714, 2
        %v716 = vadd.f32 %v714, %v715
        %v717 = vrot.slane %v716, 1
        %v718 = vadd.f32 %v716, %v717
        %v720 = vsel %vm588, %v718, 0
        %722 = vmatpush.msra.mxu0 0.0
        %723 = vmatpush.msra.mxu0 0.0
        %724 = vmatpush.msra.mxu0 0.0
        %725 = vmatpush.msra.mxu0 0.0
        %726 = vmatpush.msra.mxu0 0.0
        %727 = vmatpush.msra.mxu0 0.0
        %728 = vmatpush.msra.mxu0 0.0
        %729 = vmatpush.msra.mxu0 0.0
        %730 = vmatpush.msra.mxu0 0.0
        %731 = vmatpush.msra.mxu0 0.0
        %732 = vmatpush.msra.mxu0 0.0
        %733 = vmatpush.msra.mxu0 0.0
        %734 = vmatpush.msra.mxu0 %v634
        %735 = vmatpush.msra.mxu0 %v633
        %736 = vmatpush.msra.mxu0 %v632
        %737 = vmatpush.msra.mxu0 %v631
        %738 = vmatmul.f32.gmra.mxu0 %v720
        %v739 = vpop.f32.mrf.mxu0
        %v740 = vadd.f32 0.0, %v739
        %741 = vdwg.mxu0
        %v742 = vmul.f32 %v740, 0.03125
        %v744 = vsel %vm585, %v742, 0
        %746 = vmatpush.xpose.msra.mxu0 0.0
        %747 = vmatpush.xpose.msra.mxu0 0.0
        %748 = vmatpush.xpose.msra.mxu0 0.0
        %749 = vmatpush.xpose.msra.mxu0 0.0
        %750 = vmatpush.xpose.msra.mxu0 0.0
        %751 = vmatpush.xpose.msra.mxu0 0.0
        %752 = vmatpush.xpose.msra.mxu0 0.0
        %753 = vmatpush.xpose.msra.mxu0 0.0
        %754 = vmatpush.xpose.msra.mxu0 0.0
        %755 = vmatpush.xpose.msra.mxu0 0.0
        %756 = vmatpush.xpose.msra.mxu0 0.0
        %757 = vmatpush.xpose.msra.mxu0 0.0
        %758 = vmatpush.xpose.msra.mxu0 %v683
        %759 = vmatpush.xpose.msra.mxu0 %v680
        %760 = vmatpush.xpose.msra.mxu0 %v677
        %761 = vmatpush.xpose.msra.mxu0 %v674
        %762 = vmatmul.f32.gmra.mxu0 %v744
        %v763 = vpop.f32.mrf.mxu0
        %v764 = vadd.f32 1e-05, %v763
        %765 = vdwg.mxu0
        %v766 = vrsqrt.pop %v764
        %v767 = vmul.f32 %v766, %v764
        %v768 = vmul.f32 %v767, %v766
        %v769 = vmul.f32 0.5, %v768
        %v770 = vsub.f32 1.5, %v769
        %v771 = vmul.f32 %v766, %v770
        %vm772 = vweird.f32 %v764
        %vm773 = vweird.f32 %v766
        %vm774 = vmor %vm772, %vm773
        %v775 = vsel %vm774, %v766, %v771
        %v776 = vperm.slane %v775, 0
        %v777 = vmul.f32 %v706, %v776
        %v778 = vmul.f32 %v707, %v776
        %v780 = vperm.slane %v635, 0
        %v782 = vmul.f32 %v777, %v780
        %v783 = vmul.f32 %v778, %v780
        %v785 = vperm.slane %v636, 0
        %v787 = vadd.f32 %v782, %v785
        %v788 = vadd.f32 %v783, %v785
        %v789 = vsub.f32 0.0, %v787
        %v790 = vsub.f32 0.0, %v788
        %v791 = vmul.f32 %v789, 1.442695
        %v792 = vpow.pop %v791
        %v793 = vmul.f32 %v790, 1.442695
        %v794 = vpow.pop %v793
        %v795 = vadd.f32 %v792, 1.0
        %v796 = vadd.f32 %v794, 1.0
        %v797 = vrcp.pop %v795
        %v798 = vmul.f32 %v795, %v797
        %v799 = vsub.f32 1.0, %v798
        %v800 = vmul.f32 %v797, %v799
        %v801 = vadd.f32 %v797, %v800
        %vm802 = vweird.f32 %v795
        %vm803 = vweird.f32 %v797
        %vm804 = vmor %vm802, %vm803
        %v805 = vsel %vm804, %v797, %v801
        %v806 = vand.u32 2147483647, %v795
        %vm807 = vcmp.eq.f32.partialorder %v806, 8.507059e+37
        %v808 = vand.u32 %v795, 2147483648
        %v809 = vor.u32 1.1754944e-38, %v808
        %v810 = vsel %vm807, %v809, %v805
        %v811 = vmul.f32 1.0, %v810
        %v812 = vrcp.pop %v796
        %v813 = vmul.f32 %v796, %v812
        %v814 = vsub.f32 1.0, %v813
        %v815 = vmul.f32 %v812, %v814
        %v816 = vadd.f32 %v812, %v815
        %vm817 = vweird.f32 %v796
        %vm818 = vweird.f32 %v812
        %vm819 = vmor %vm817, %vm818
        %v820 = vsel %vm819, %v812, %v816
        %v821 = vand.u32 2147483647, %v796
        %vm822 = vcmp.eq.f32.partialorder %v821, 8.507059e+37
        %v823 = vand.u32 %v796, 2147483648
        %v824 = vor.u32 1.1754944e-38, %v823
        %v825 = vsel %vm822, %v824, %v820
        %v826 = vmul.f32 1.0, %v825
        %v827 = vmul.f32 %v787, %v811
        %v828 = vmul.f32 %v788, %v826
        %v829 = vld [vmem:[#allocation6] sm:$0xf]
        %v830 = vld [vmem:[#allocation6 + $0x4] sm:$0xf]
        %v831 = vld [vmem:[#allocation6 + $0x8] sm:$0xf]
        %v832 = vld [vmem:[#allocation6 + $0xc] sm:$0xf]
        %v833 = vld [vmem:[#allocation6 + $0x10] sm:$0xf]
        %v834 = vld [vmem:[#allocation6 + $0x14] sm:$0xf]
        %v835 = vld [vmem:[#allocation6 + $0x18] sm:$0xf]
        %v836 = vld [vmem:[#allocation6 + $0x1c] sm:$0xf]
        %v837 = vld [vmem:[#allocation6 + $0x20] sm:$0xf]
        %v838 = vld [vmem:[#allocation6 + $0x24] sm:$0xf]
        %v839 = vld [vmem:[#allocation6 + $0x28] sm:$0xf]
        %v840 = vld [vmem:[#allocation6 + $0x2c] sm:$0xf]
        %v841 = vld [vmem:[%s7] sm:$0x1]
        %v844 = vrot.slane %v827, 7
        %v845 = vrot.slane %v828, 7
        %v846 = vsel %vm550, %v844, %v845
        %v850 = vsel %vm550, 0.0, %v844
        %v851 = vsel %vm550, %v845, 0.0
        %v854 = vrot.slane %v850, 1
        %v855 = vrot.slane %v846, 1
        %v856 = vsel %vm561, %v854, %v855
        %v857 = vrot.slane %v851, 1
        %v858 = vsel %vm561, %v855, %v857
        %859 = vrot.lane.b32.xlu0 %v856, 32
        %v860 = vpop.permute.xlu0 %859
        %861 = vrot.lane.b32.xlu0 %v858, 32
        %v862 = vpop.permute.xlu0 %861
        %v865 = vrot.slane %v850, 2
        %v866 = vrot.slane %v846, 2
        %v867 = vsel %vm573, %v865, %v866
        %v868 = vrot.slane %v851, 2
        %v869 = vsel %vm573, %v866, %v868
        %870 = vrot.lane.b32.xlu0 %v867, 64
        %v871 = vpop.permute.xlu0 %870
        %872 = vrot.lane.b32.xlu0 %v869, 64
        %v873 = vpop.permute.xlu0 %872
        %v876 = vsel %vm588, %v850, %v860
        %v877 = vsel %vm588, %v846, %v862
        %vm878 = vcmask 523264
        %v879 = vsel %vm878, %v876, %v871
        %v880 = vsel %vm878, %v877, %v873
        %v881 = vpack.c.bf16 %v880, %v879
        %v883 = vperm.slane %v841, 0
        %v897 = vunpack.c.l.b16 %v829
        %v898 = vunpack.c.l.b16 %v830
        %v899 = vunpack.c.l.b16 %v831
        %v900 = vunpack.c.l.b16 %v832
        %v901 = vunpack.c.l.b16 %v833
        %v902 = vunpack.c.l.b16 %v834
        %v903 = vunpack.c.l.b16 %v835
        %v904 = vunpack.c.l.b16 %v836
        %v905 = vunpack.c.l.b16 %v837
        %v906 = vunpack.c.l.b16 %v838
        %v907 = vunpack.c.l.b16 %v839
        %v908 = vunpack.c.l.b16 %v840
        %v909 = vpack.c.b16 %v898, %v897
        %v910 = vpack.c.b16 %v900, %v899
        %v911 = vpack.c.b16 %v902, %v901
        %v912 = vpack.c.b16 %v904, %v903
        %v913 = vpack.c.b16 %v906, %v905
        %v914 = vpack.c.b16 %v908, %v907
        %vm921 = vcmask 785408
        %v923 = vsel %vm921, %v881, 0
        %925 = vmatpush.bf16.msra.mxu0 0
        %926 = vmatpush.bf16.msra.mxu0 0
        %927 = vmatpush.bf16.msra.mxu0 %v914
        %928 = vmatpush.bf16.msra.mxu0 %v913
        %929 = vmatpush.bf16.msra.mxu0 %v912
        %930 = vmatpush.bf16.msra.mxu0 %v911
        %931 = vmatpush.bf16.msra.mxu0 %v910
        %932 = vmatpush.bf16.msra.mxu0 %v909
        %933 = vmatmul.bf16.gmra.mxu0 %v923
        %v934 = vpop.f32.mrf.mxu0
        %v935 = vadd.f32 %v883, %v934
        %v936 = vpop.f32.mrf.mxu0
        %v937 = vadd.f32 %v883, %v936
        %938 = vdwg.mxu0
        %v939 = vld [vmem:[%s8] sm:$0x1]
        %v940 = vld [vmem:[%s9] sm:$0x1]
        %v941 = vsel %vm588, %v935, 0.0
        %v942 = vsel %vm588, %v937, 0.0
        %v943 = vadd.f32 %v941, %v942
        %v944 = vrot.slane %v943, 4
        %v945 = vadd.f32 %v943, %v944
        %v946 = vrot.slane %v945, 2
        %v947 = vadd.f32 %v945, %v946
        %v948 = vrot.slane %v947, 1
        %v949 = vadd.f32 %v947, %v948
        %v951 = vsel %vm588, %v949, 0
        %953 = vmatpush.msra.mxu0 0.0
        %954 = vmatpush.msra.mxu0 0.0
        %955 = vmatpush.msra.mxu0 0.0
        %956 = vmatpush.msra.mxu0 0.0
        %957 = vmatpush.msra.mxu0 0.0
        %958 = vmatpush.msra.mxu0 0.0
        %959 = vmatpush.msra.mxu0 0.0
        %960 = vmatpush.msra.mxu0 0.0
        %961 = vmatpush.msra.mxu0 0.0
        %962 = vmatpush.msra.mxu0 0.0
        %963 = vmatpush.msra.mxu0 0.0
        %964 = vmatpush.msra.mxu0 0.0
        %965 = vmatpush.msra.mxu0 %v634
        %966 = vmatpush.msra.mxu0 %v633
        %967 = vmatpush.msra.mxu0 %v632
        %968 = vmatpush.msra.mxu0 %v631
        %969 = vmatmul.f32.gmra.mxu0 %v951
        %v970 = vpop.f32.mrf.mxu0
        %v971 = vadd.f32 0.0, %v970
        %972 = vdwg.mxu0
        %v973 = vmul.f32 %v971, 0.03125
        %v975 = vsel %vm585, %v973, 0
        %977 = vmatpush.xpose.msra.mxu0 0.0
        %978 = vmatpush.xpose.msra.mxu0 0.0
        %979 = vmatpush.xpose.msra.mxu0 0.0
        %980 = vmatpush.xpose.msra.mxu0 0.0
        %981 = vmatpush.xpose.msra.mxu0 0.0
        %982 = vmatpush.xpose.msra.mxu0 0.0
        %983 = vmatpush.xpose.msra.mxu0 0.0
        %984 = vmatpush.xpose.msra.mxu0 0.0
        %985 = vmatpush.xpose.msra.mxu0 0.0
        %986 = vmatpush.xpose.msra.mxu0 0.0
        %987 = vmatpush.xpose.msra.mxu0 0.0
        %988 = vmatpush.xpose.msra.mxu0 0.0
        %989 = vmatpush.xpose.msra.mxu0 %v683
        %990 = vmatpush.xpose.msra.mxu0 %v680
        %991 = vmatpush.xpose.msra.mxu0 %v677
        %992 = vmatpush.xpose.msra.mxu0 %v674
        %993 = vmatmul.f32.gmra.mxu0 %v975
        %v994 = vpop.f32.mrf.mxu0
        %v995 = vadd.f32 0.0, %v994
        %996 = vdwg.mxu0
        %v997 = vperm.slane %v995, 0
        %v998 = vsub.f32 %v935, %v997
        %v999 = vsub.f32 %v937, %v997
        %v1000 = vmul.f32 %v998, %v998
        %v1001 = vmul.f32 %v999, %v999
        %v1002 = vsel %vm588, %v1000, 0.0
        %v1003 = vsel %vm588, %v1001, 0.0
        %v1004 = vadd.f32 %v1002, %v1003
        %v1005 = vrot.slane %v1004, 4
        %v1006 = vadd.f32 %v1004, %v1005
        %v1007 = vrot.slane %v1006, 2
        %v1008 = vadd.f32 %v1006, %v1007
        %v1009 = vrot.slane %v1008, 1
        %v1010 = vadd.f32 %v1008, %v1009
        %v1012 = vsel %vm588, %v1010, 0
        %1014 = vmatpush.msra.mxu0 0.0
        %1015 = vmatpush.msra.mxu0 0.0
        %1016 = vmatpush.msra.mxu0 0.0
        %1017 = vmatpush.msra.mxu0 0.0
        %1018 = vmatpush.msra.mxu0 0.0
        %1019 = vmatpush.msra.mxu0 0.0
        %1020 = vmatpush.msra.mxu0 0.0
        %1021 = vmatpush.msra.mxu0 0.0
        %1022 = vmatpush.msra.mxu0 0.0
        %1023 = vmatpush.msra.mxu0 0.0
        %1024 = vmatpush.msra.mxu0 0.0
        %1025 = vmatpush.msra.mxu0 0.0
        %1026 = vmatpush.msra.mxu0 %v634
        %1027 = vmatpush.msra.mxu0 %v633
        %1028 = vmatpush.msra.mxu0 %v632
        %1029 = vmatpush.msra.mxu0 %v631
        %1030 = vmatmul.f32.gmra.mxu0 %v1012
        %v1031 = vpop.f32.mrf.mxu0
        %v1032 = vadd.f32 0.0, %v1031
        %1033 = vdwg.mxu0
        %v1034 = vmul.f32 %v1032, 0.03125
        %v1036 = vsel %vm585, %v1034, 0
        %1038 = vmatpush.xpose.msra.mxu0 0.0
        %1039 = vmatpush.xpose.msra.mxu0 0.0
        %1040 = vmatpush.xpose.msra.mxu0 0.0
        %1041 = vmatpush.xpose.msra.mxu0 0.0
        %1042 = vmatpush.xpose.msra.mxu0 0.0
        %1043 = vmatpush.xpose.msra.mxu0 0.0
        %1044 = vmatpush.xpose.msra.mxu0 0.0
        %1045 = vmatpush.xpose.msra.mxu0 0.0
        %1046 = vmatpush.xpose.msra.mxu0 0.0
        %1047 = vmatpush.xpose.msra.mxu0 0.0
        %1048 = vmatpush.xpose.msra.mxu0 0.0
        %1049 = vmatpush.xpose.msra.mxu0 0.0
        %1050 = vmatpush.xpose.msra.mxu0 %v683
        %1051 = vmatpush.xpose.msra.mxu0 %v680
        %1052 = vmatpush.xpose.msra.mxu0 %v677
        %1053 = vmatpush.xpose.msra.mxu0 %v674
        %1054 = vmatmul.f32.gmra.mxu0 %v1036
        %v1055 = vpop.f32.mrf.mxu0
        %v1056 = vadd.f32 1e-05, %v1055
        %1057 = vdwg.mxu0
        %v1058 = vrsqrt.pop %v1056
        %v1059 = vmul.f32 %v1058, %v1056
        %v1060 = vmul.f32 %v1059, %v1058
        %v1061 = vmul.f32 0.5, %v1060
        %v1062 = vsub.f32 1.5, %v1061
        %v1063 = vmul.f32 %v1058, %v1062
        %vm1064 = vweird.f32 %v1056
        %vm1065 = vweird.f32 %v1058
        %vm1066 = vmor %vm1064, %vm1065
        %v1067 = vsel %vm1066, %v1058, %v1063
        %v1068 = vperm.slane %v1067, 0
        %v1069 = vmul.f32 %v998, %v1068
        %v1070 = vmul.f32 %v999, %v1068
        %v1072 = vperm.slane %v939, 0
        %v1074 = vmul.f32 %v1069, %v1072
        %v1075 = vmul.f32 %v1070, %v1072
        %v1077 = vperm.slane %v940, 0
        %v1079 = vadd.f32 %v1074, %v1077
        %v1080 = vadd.f32 %v1075, %v1077
        %v1081 = vsub.f32 0.0, %v1079
        %v1082 = vsub.f32 0.0, %v1080
        %v1083 = vmul.f32 %v1081, 1.442695
        %v1084 = vpow.pop %v1083
        %v1085 = vmul.f32 %v1082, 1.442695
        %v1086 = vpow.pop %v1085
        %v1087 = vadd.f32 %v1084, 1.0
        %v1088 = vadd.f32 %v1086, 1.0
        %v1089 = vrcp.pop %v1087
        %v1090 = vmul.f32 %v1087, %v1089
        %v1091 = vsub.f32 1.0, %v1090
        %v1092 = vmul.f32 %v1089, %v1091
        %v1093 = vadd.f32 %v1089, %v1092
        %vm1094 = vweird.f32 %v1087
        %vm1095 = vweird.f32 %v1089
        %vm1096 = vmor %vm1094, %vm1095
        %v1097 = vsel %vm1096, %v1089, %v1093
        %v1098 = vand.u32 2147483647, %v1087
        %vm1099 = vcmp.eq.f32.partialorder %v1098, 8.507059e+37
        %v1100 = vand.u32 %v1087, 2147483648
        %v1101 = vor.u32 1.1754944e-38, %v1100
        %v1102 = vsel %vm1099, %v1101, %v1097
        %v1103 = vmul.f32 1.0, %v1102
        %v1104 = vrcp.pop %v1088
        %v1105 = vmul.f32 %v1088, %v1104
        %v1106 = vsub.f32 1.0, %v1105
        %v1107 = vmul.f32 %v1104, %v1106
        %v1108 = vadd.f32 %v1104, %v1107
        %vm1109 = vweird.f32 %v1088
        %vm1110 = vweird.f32 %v1104
        %vm1111 = vmor %vm1109, %vm1110
        %v1112 = vsel %vm1111, %v1104, %v1108
        %v1113 = vand.u32 2147483647, %v1088
        %vm1114 = vcmp.eq.f32.partialorder %v1113, 8.507059e+37
        %v1115 = vand.u32 %v1088, 2147483648
        %v1116 = vor.u32 1.1754944e-38, %v1115
        %v1117 = vsel %vm1114, %v1116, %v1112
        %v1118 = vmul.f32 1.0, %v1117
        %v1119 = vmul.f32 %v1079, %v1103
        %v1120 = vmul.f32 %v1080, %v1118
        %v1121 = vld [vmem:[%s10] sm:$0xf]
        %v1122 = vld [vmem:[%s10 + $0x4] sm:$0xf]
        %v1123 = vld [vmem:[%s10 + $0x8] sm:$0xf]
        %v1124 = vld [vmem:[%s10 + $0xc] sm:$0xf]
        %v1125 = vld [vmem:[%s10 + $0x10] sm:$0xf]
        %v1126 = vld [vmem:[%s10 + $0x14] sm:$0xf]
        %v1127 = vld [vmem:[%s10 + $0x18] sm:$0xf]
        %v1128 = vld [vmem:[%s10 + $0x1c] sm:$0xf]
        %v1129 = vld [vmem:[%s10 + $0x20] sm:$0xf]
        %v1130 = vld [vmem:[%s10 + $0x24] sm:$0xf]
        %v1131 = vld [vmem:[%s10 + $0x28] sm:$0xf]
        %v1132 = vld [vmem:[%s10 + $0x2c] sm:$0xf]
        %v1133 = vld [vmem:[%s11] sm:$0x1]
        %v1136 = vrot.slane %v1119, 7
        %v1137 = vrot.slane %v1120, 7
        %v1138 = vsel %vm550, %v1136, %v1137
        %v1142 = vsel %vm550, 0.0, %v1136
        %v1143 = vsel %vm550, %v1137, 0.0
        %v1146 = vrot.slane %v1142, 1
        %v1147 = vrot.slane %v1138, 1
        %v1148 = vsel %vm561, %v1146, %v1147
        %v1149 = vrot.slane %v1143, 1
        %v1150 = vsel %vm561, %v1147, %v1149
        %1151 = vrot.lane.b32.xlu0 %v1148, 32
        %v1152 = vpop.permute.xlu0 %1151
        %1153 = vrot.lane.b32.xlu0 %v1150, 32
        %v1154 = vpop.permute.xlu0 %1153
        %v1157 = vrot.slane %v1142, 2
        %v1158 = vrot.slane %v1138, 2
        %v1159 = vsel %vm573, %v1157, %v1158
        %v1160 = vrot.slane %v1143, 2
        %v1161 = vsel %vm573, %v1158, %v1160
        %1162 = vrot.lane.b32.xlu0 %v1159, 64
        %v1163 = vpop.permute.xlu0 %1162
        %1164 = vrot.lane.b32.xlu0 %v1161, 64
        %v1165 = vpop.permute.xlu0 %1164
        %v1168 = vsel %vm588, %v1142, %v1152
        %v1169 = vsel %vm588, %v1138, %v1154
        %v1170 = vsel %vm878, %v1168, %v1163
        %v1171 = vsel %vm878, %v1169, %v1165
        %v1172 = vpack.c.bf16 %v1171, %v1170
        %v1174 = vperm.slane %v1133, 0
        %v1188 = vunpack.c.l.b16 %v1121
        %v1189 = vunpack.c.l.b16 %v1122
        %v1190 = vunpack.c.l.b16 %v1123
        %v1191 = vunpack.c.l.b16 %v1124
        %v1192 = vunpack.c.l.b16 %v1125
        %v1193 = vunpack.c.l.b16 %v1126
        %v1194 = vunpack.c.l.b16 %v1127
        %v1195 = vunpack.c.l.b16 %v1128
        %v1196 = vunpack.c.l.b16 %v1129
        %v1197 = vunpack.c.l.b16 %v1130
        %v1198 = vunpack.c.l.b16 %v1131
        %v1199 = vunpack.c.l.b16 %v1132
        %v1200 = vpack.c.b16 %v1189, %v1188
        %v1201 = vpack.c.b16 %v1191, %v1190
        %v1202 = vpack.c.b16 %v1193, %v1192
        %v1203 = vpack.c.b16 %v1195, %v1194
        %v1204 = vpack.c.b16 %v1197, %v1196
        %v1205 = vpack.c.b16 %v1199, %v1198
        %v1213 = vsel %vm921, %v1172, 0
        %1215 = vmatpush.bf16.msra.mxu0 0
        %1216 = vmatpush.bf16.msra.mxu0 0
        %1217 = vmatpush.bf16.msra.mxu0 %v1205
        %1218 = vmatpush.bf16.msra.mxu0 %v1204
        %1219 = vmatpush.bf16.msra.mxu0 %v1203
        %1220 = vmatpush.bf16.msra.mxu0 %v1202
        %1221 = vmatpush.bf16.msra.mxu0 %v1201
        %1222 = vmatpush.bf16.msra.mxu0 %v1200
        %1223 = vmatmul.bf16.gmra.mxu0 %v1213
        %v1224 = vpop.f32.mrf.mxu0
        %v1225 = vadd.f32 %v1174, %v1224
        %v1226 = vpop.f32.mrf.mxu0
        %v1227 = vadd.f32 %v1174, %v1226
        %1228 = vdwg.mxu0
        %v1229 = vadd.f32 %v627, %v1225
        %v1230 = vadd.f32 %v629, %v1227
        %v1231 = vld [vmem:[#allocation7] sm:$0xf]
        %v1232 = vld [vmem:[#allocation7 + $0x4] sm:$0xf]
        %v1233 = vld [vmem:[#allocation7 + $0x8] sm:$0xf]
        %v1234 = vld [vmem:[#allocation7 + $0xc] sm:$0xf]
        %v1235 = vld [vmem:[#allocation7 + $0x10] sm:$0xf]
        %v1236 = vld [vmem:[#allocation7 + $0x14] sm:$0xf]
        %v1237 = vld [vmem:[#allocation7 + $0x18] sm:$0xf]
        %v1238 = vld [vmem:[#allocation7 + $0x1c] sm:$0xf]
        %v1239 = vld [vmem:[#allocation7 + $0x20] sm:$0xf]
        %v1240 = vld [vmem:[#allocation7 + $0x24] sm:$0xf]
        %v1241 = vld [vmem:[#allocation7 + $0x28] sm:$0xf]
        %v1242 = vld [vmem:[#allocation7 + $0x2c] sm:$0xf]
        %v1243 = vld [vmem:[#allocation7 + $0x30] sm:$0xf]
        %v1244 = vld [vmem:[#allocation7 + $0x34] sm:$0xf]
        %v1245 = vld [vmem:[#allocation7 + $0x38] sm:$0xf]
        %v1246 = vld [vmem:[#allocation7 + $0x3c] sm:$0xf]
        %v1247 = vld [vmem:[#allocation7 + $0x40] sm:$0xf]
        %v1248 = vld [vmem:[#allocation7 + $0x44] sm:$0xf]
        %v1249 = vld [vmem:[#allocation7 + $0x48] sm:$0xf]
        %v1250 = vld [vmem:[#allocation7 + $0x4c] sm:$0xf]
        %v1251 = vld [vmem:[%s13] sm:$0x1]
        %vm1254 = vcmask 1041408
        %v1255 = vrot.slane %v1229, 6
        %v1256 = vrot.slane %v1230, 6
        %v1257 = vsel %vm1254, %v1255, %v1256
        %v1261 = vsel %vm1254, 0.0, %v1255
        %v1262 = vsel %vm1254, %v1256, 0.0
        %v1265 = vrot.slane %v1261, 1
        %v1266 = vrot.slane %v1257, 1
        %v1267 = vsel %vm561, %v1265, %v1266
        %v1268 = vrot.slane %v1262, 1
        %v1269 = vsel %vm561, %v1266, %v1268
        %1270 = vrot.lane.b32.xlu0 %v1267, 32
        %v1271 = vpop.permute.xlu0 %1270
        %1272 = vrot.lane.b32.xlu0 %v1269, 32
        %v1273 = vpop.permute.xlu0 %1272
        %v1276 = vrot.slane %v1261, 2
        %v1277 = vrot.slane %v1257, 2
        %v1278 = vsel %vm573, %v1276, %v1277
        %v1279 = vrot.slane %v1262, 2
        %v1280 = vsel %vm573, %v1277, %v1279
        %1281 = vrot.lane.b32.xlu0 %v1278, 64
        %v1282 = vpop.permute.xlu0 %1281
        %1283 = vrot.lane.b32.xlu0 %v1280, 64
        %v1284 = vpop.permute.xlu0 %1283
        %vm1287 = vcmask 1044480
        %v1288 = vrot.slane %v1261, 3
        %v1289 = vrot.slane %v1257, 3
        %v1290 = vsel %vm1287, %v1288, %v1289
        %v1291 = vrot.slane %v1262, 3
        %v1292 = vsel %vm1287, %v1289, %v1291
        %1293 = vrot.lane.b32.xlu0 %v1290, 96
        %v1294 = vpop.permute.xlu0 %1293
        %1295 = vrot.lane.b32.xlu0 %v1292, 96
        %v1296 = vpop.permute.xlu0 %1295
        %vm1299 = vcmask 1043456
        %v1300 = vrot.slane %v1261, 4
        %v1301 = vrot.slane %v1257, 4
        %v1302 = vsel %vm1299, %v1300, %v1301
        %v1303 = vrot.slane %v1262, 4
        %v1304 = vsel %vm1299, %v1301, %v1303
        %v1307 = vsel %vm588, %v1261, %v1271
        %v1308 = vsel %vm588, %v1257, %v1273
        %v1309 = vsel %vm878, %v1307, %v1282
        %v1310 = vsel %vm878, %v1308, %v1284
        %v1311 = vsel %vm921, %v1309, %v1294
        %v1312 = vsel %vm921, %v1310, %v1296
        %v1313 = vpack.c.bf16 %v1312, %v1311
        %v1314 = vpack.c.bf16 %v1304, %v1302
        %v1316 = vperm.slane %v1251, 0
        %v1338 = vunpack.c.l.b16 %v1231
        %v1339 = vunpack.c.l.b16 %v1232
        %v1340 = vunpack.c.l.b16 %v1233
        %v1341 = vunpack.c.l.b16 %v1234
        %v1342 = vunpack.c.l.b16 %v1235
        %v1343 = vunpack.c.l.b16 %v1236
        %v1344 = vunpack.c.l.b16 %v1237
        %v1345 = vunpack.c.l.b16 %v1238
        %v1346 = vunpack.c.l.b16 %v1239
        %v1347 = vunpack.c.l.b16 %v1240
        %v1348 = vunpack.c.l.b16 %v1241
        %v1349 = vunpack.c.l.b16 %v1242
        %v1350 = vunpack.c.l.b16 %v1243
        %v1351 = vunpack.c.l.b16 %v1244
        %v1352 = vunpack.c.l.b16 %v1245
        %v1353 = vunpack.c.l.b16 %v1246
        %v1354 = vunpack.c.l.b16 %v1247
        %v1355 = vunpack.c.l.b16 %v1248
        %v1356 = vunpack.c.l.b16 %v1249
        %v1357 = vunpack.c.l.b16 %v1250
        %v1358 = vpack.c.b16 %v1339, %v1338
        %v1359 = vpack.c.b16 %v1341, %v1340
        %v1360 = vpack.c.b16 %v1343, %v1342
        %v1361 = vpack.c.b16 %v1345, %v1344
        %v1362 = vpack.c.b16 %v1347, %v1346
        %v1363 = vpack.c.b16 %v1349, %v1348
        %v1364 = vpack.c.b16 %v1351, %v1350
        %v1365 = vpack.c.b16 %v1353, %v1352
        %v1366 = vpack.c.b16 %v1355, %v1354
        %v1367 = vpack.c.b16 %v1357, %v1356
        %v1379 = vsel %vm588, %v1314, 0
        %1381 = vmatpush.bf16.msra.mxu0 %v1365
        %1382 = vmatpush.bf16.msra.mxu0 %v1364
        %1383 = vmatpush.bf16.msra.mxu0 %v1363
        %1384 = vmatpush.bf16.msra.mxu0 %v1362
        %1385 = vmatpush.bf16.msra.mxu0 %v1361
        %1386 = vmatpush.bf16.msra.mxu0 %v1360
        %1387 = vmatpush.bf16.msra.mxu0 %v1359
        %1388 = vmatpush.bf16.msra.mxu0 %v1358
        %1389 = vmatmul.bf16.gmra.mxu0 %v1313
        %v1390 = vpop.f32.mrf.mxu0
        %v1391 = vadd.f32 %v1316, %v1390
        %v1392 = vpop.f32.mrf.mxu0
        %v1393 = vadd.f32 %v1316, %v1392
        %1394 = vdwg.mxu0
        %1395 = vmatpush.bf16.msra.mxu0 0
        %1396 = vmatpush.bf16.msra.mxu0 0
        %1397 = vmatpush.bf16.msra.mxu0 0
        %1398 = vmatpush.bf16.msra.mxu0 0
        %1399 = vmatpush.bf16.msra.mxu0 0
        %1400 = vmatpush.bf16.msra.mxu0 0
        %1401 = vmatpush.bf16.msra.mxu0 %v1367
        %1402 = vmatpush.bf16.msra.mxu0 %v1366
        %1403 = vmatmul.bf16.gmra.mxu0 %v1379
        %v1404 = vpop.f32.mrf.mxu0
        %v1405 = vadd.f32 %v1391, %v1404
        %v1406 = vpop.f32.mrf.mxu0
        %v1407 = vadd.f32 %v1393, %v1406
        %1408 = vdwg.mxu0
        %v1409 = vlaneseq
        %v1410 = vshrl.u32 %v1409, 7
        %v1411 = vlaneseq
        %v1412 = vand.u32 %v1411, 127
        %v1413 = vmul.u32 %v1410, 2
        %vm1414 = vcmp.eq.s32.totalorder %v1412, %v1413
        %v1415 = vsel %vm1414, 1, 0
        %v1416 = vcvt.s32.f32 %v1415
        %v1418 = vsel %vm585, %v1416, 0
        %1420 = vmatpush.msra.mxu0 0.0
        %1421 = vmatpush.msra.mxu0 0.0
        %1422 = vmatpush.msra.mxu0 0.0
        %1423 = vmatpush.msra.mxu0 0.0
        %1424 = vmatpush.msra.mxu0 0.0
        %1425 = vmatpush.msra.mxu0 0.0
        %1426 = vmatpush.msra.mxu0 0.0
        %1427 = vmatpush.msra.mxu0 0.0
        %1428 = vmatpush.msra.mxu0 0.0
        %1429 = vmatpush.msra.mxu0 0.0
        %1430 = vmatpush.msra.mxu0 0.0
        %1431 = vmatpush.msra.mxu0 0.0
        %1432 = vmatpush.msra.mxu0 0.0
        %1433 = vmatpush.msra.mxu0 0.0
        %1434 = vmatpush.msra.mxu0 %v1407
        %1435 = vmatpush.msra.mxu0 %v1405
        %1436 = vmatmul.f32.gmra.mxu0 %v1418
        %v1437 = vpop.f32.mrf.mxu0
        %v1438 = vadd.f32 0.0, %v1437
        %1439 = vdwg.mxu0
        %1440 = vst.msk [vmem:[%s537] sm:$0xff] %vm878, %v1438
        %p1441 = scmp.lt.s32.totalorder %s30, 1
        %s1442 = scalar_select %p1441, %s30, 1
        %s1443 = smul.addr %s1442, 8
        %s1444 = scalar_lea.vmem %s14, %s1443
        // Predicated region
        $region93: #{_lambda_.3} parent=75 // pred_check
          %p1445 = pneg %p347
        $region94: #{_lambda_.3} parent=75 // pred_check_branch
          %1447 = sbr.rel (%p1445) target = $region96
        $region95: #{_lambda_.3} parent=75 // pred_region
          _
        $region96: #{_lambda_.3} parent=75 // pred_fallthru
          _
      $region76: #{_lambda_.3} parent=5 // pred_fallthru
        _
      %p1448 = scmp.le.s32.totalorder 2, %s25
      // Predicated region
      $region97: #{_lambda_.3} parent=5 // pred_check
        %p1449 = pneg %p1448
      $region98: #{_lambda_.3} parent=5 // pred_check_branch
        %1451 = sbr.rel (%p1449) target = $region100
      $region99: #{_lambda_.3} parent=5 // pred_region
        %s1452 = ssub.s32 %s25, 2
        // Predicated region
        $region101: #{_lambda_.3} parent=99 // pred_check
          %p1453 = pneg %p353
        $region102: #{_lambda_.3} parent=99 // pred_check_branch
          %1455 = sbr.rel (%p1453) target = $region104
        $region103: #{_lambda_.3} parent=99 // pred_region
          %p1456 = scmp.lt.s32.totalorder %s31, 1
          %s1457 = scalar_select %p1456, %s31, 1
          %s1458 = smul.addr %s1457, 8
          %s1459 = scalar_lea.vmem %s14, %s1458
        $region104: #{_lambda_.3} parent=99 // pred_fallthru
          _
      $region100: #{_lambda_.3} parent=5 // pred_fallthru
        _
    $region6: #{_lambda_.3} parent=1 // loop_footer
      %s29 = sadd.s32 1, %s25
    $region7: #{_lambda_.3} parent=1 // loop_footer_branch
      %24 = sbr.rel target = $region3
    $region8: #{_lambda_.3} parent=1 // loop_exit
      _
    %1460 = vsyncpa [#allocation3], 1
    %s1461 = scalar_lea.sflag [#allocation3], 1
    %1462 = vsyncpa %s1461, 1
    %1463 = vsyncpa [#allocation5], 1
    %1464 = vsyncpa [#allocation8], 1

// kernel: _lambda_.4
$region0: #{_lambda_.4}
  #allocation0 [shape = 'u32[]', space=smem, size = 0x4, offset = 0x4, fixed_abs, tag = 'smem constant byte address 0x4 - core index']
  #allocation1 [shape = 'u32[72,128]{1,0:T(1,128)}', space=vmem, size = 0x9000, scoped, tag = 'internal scratch']
  %s0 = inlined_call_operand.vmem [shape: f32[2,8,64], index: 0, kind: input, shape index: {}]
  %s1 = inlined_call_operand.vmem [shape: f32[64,16], index: 1, kind: input, shape index: {}]
  %s2 = inlined_call_operand.vmem [shape: f32[1,1,64], index: 2, kind: input, shape index: {}, may-alias: {2,6}]
  %s3 = inlined_call_operand.vmem [shape: f32[1,1,64], index: 3, kind: input, shape index: {}, may-alias: {3,7,9}]
  %s4 = inlined_call_operand.vmem [shape: bf16[1,192,64], index: 4, kind: input, shape index: {}]
  %s5 = inlined_call_operand.vmem [shape: f32[1,1,64], index: 5, kind: input, shape index: {}]
  %s6 = inlined_call_operand.vmem [shape: f32[1,1,64], index: 6, kind: input, shape index: {}, may-alias: {2,6}]
  %s7 = inlined_call_operand.vmem [shape: f32[1,1,64], index: 7, kind: input, shape index: {}, may-alias: {3,7,9}]
  %s8 = inlined_call_operand.vmem [shape: bf16[1,192,64], index: 8, kind: input, shape index: {}]
  %s9 = inlined_call_operand.vmem [shape: f32[1,1,64], index: 9, kind: input, shape index: {}, may-alias: {3,7,9}]
  %s10 = inlined_call_operand.vmem [shape: bf16[320,128], index: 10, kind: input, shape index: {}]
  %s11 = inlined_call_operand.vmem [shape: f32[1,128], index: 11, kind: input, shape index: {}]
  %s12 = inlined_call_operand.vmem [shape: f32[2,4,128], index: 12, kind: output, shape index: {}]
  %s13 = sld [smem:[#allocation0]]
  $region81: #{_lambda_.4} parent=0
    _
  %s15 = ssub.s32 1, %s13
  %s16 = scalar_select 0, %s15, %s13
  loop: start=0, step=1, limit=4
  $region2: #{_lambda_.4} parent=0 // loop_pre_header
    _
  $region3: #{_lambda_.4} parent=0 // loop_header
    %s18 = sphi 0, %s22
    %p19 = scmp.ge.s32.totalorder %s18, 4
    %s28 = sphi 0, %s30
    %s31 = sphi 0, %s28
    %s32 = sphi 0, %s31
    %s48 = sphi 0, %s32
    %s52 = sphi 0, %s52
    %s54 = sphi 0, %s52
    %s55 = sphi 0, %s54
    %s69 = sphi 0, %s55
    %s73 = sphi 0, %s73
    %s75 = sphi 0, %s73
    %s76 = sphi 0, %s75
    %s90 = sphi 0, %s76
    %s94 = sphi 0, %s94
    %s96 = sphi 0, %s94
    %s97 = sphi 0, %s96
    %s111 = sphi 0, %s97
    %s115 = sphi 0, %s115
    %s117 = sphi 0, %s115
    %s118 = sphi 0, %s117
    %s132 = sphi 0, %s118
    %s136 = sphi 0, %s136
    %s138 = sphi 0, %s136
    %s139 = sphi 0, %s138
    %s153 = sphi 0, %s139
    %s157 = sphi 0, %s157
    %s159 = sphi 0, %s157
    %s160 = sphi 0, %s159
    %s174 = sphi 0, %s160
    %s178 = sphi 0, %s178
    %s180 = sphi 0, %s178
    %s181 = sphi 0, %s180
    %s195 = sphi 0, %s181
    %s199 = sphi 0, %s199
    %s201 = sphi 0, %s199
    %s202 = sphi 0, %s201
    %s216 = sphi 0, %s202
    %s220 = sphi 0, %s220
    %s222 = sphi 0, %s220
    %s223 = sphi 0, %s222
    %s237 = sphi 0, %s223
    %s241 = sphi 0, %s241
    %s243 = sphi 0, %s241
    %s244 = sphi 0, %s243
    %s258 = sphi 0, %s244
    %s262 = sphi 0, %s262
    %s264 = sphi 0, %s262
    %s265 = sphi 0, %s264
    %s279 = sphi 0, %s265
    %s285 = sphi 0, %s287
    %s288 = sphi 0, %s285
    %s289 = sphi 0, %s288
    %s305 = sphi 0, %s289
  $region4: #{_lambda_.4} parent=0 // loop_header_branch
    %21 = sbr.rel (%p19) target = $region8
  $region5: #{_lambda_.4} parent=0 // loop_body
    %s23 = ssub.s32 %s18, 1
    %s24 = ssub.s32 %s18, 2
    %s25 = sadd.s32 %s18, 1
    %s26 = ssub.s32 %s18, %s25
    %p27 = scmp.eq.s32.totalorder %s26, 0
    %s29 = sadd.s32 %s28, 1
    %s30 = scalar_select %p27, %s28, %s29
    %p33 = pneg %p27
    %p34 = scmp.eq.s32.totalorder %s18, 1
    %p35 = por %p33, %p34
    %p36 = scmp.ne.s32.totalorder %s28, %s31
    %p37 = scmp.eq.s32.totalorder %s18, 0
    %p38 = por %p36, %p37
    %p39 = scmp.ne.s32.totalorder %s28, %s31
    %p40 = scmp.eq.s32.totalorder %s23, 1
    %p41 = por %p39, %p40
    %p42 = scmp.ne.s32.totalorder %s31, %s32
    %p43 = scmp.eq.s32.totalorder %s23, 0
    %p44 = por %p42, %p43
    %p45 = scmp.ne.s32.totalorder %s31, %s32
    %p46 = scmp.eq.s32.totalorder %s24, 1
    %p47 = por %p45, %p46
    %p49 = scmp.ne.s32.totalorder %s32, %s48
    %p50 = scmp.eq.s32.totalorder %s24, 0
    %p51 = por %p49, %p50
    %s53 = sadd.s32 %s52, 1
    %p56 = scmp.eq.s32.totalorder %s18, 1
    %p57 = scmp.ne.s32.totalorder %s52, %s54
    %p58 = scmp.eq.s32.totalorder %s18, 0
    %p59 = por %p57, %p58
    %p60 = scmp.ne.s32.totalorder %s52, %s54
    %p61 = scmp.eq.s32.totalorder %s23, 1
    %p62 = por %p60, %p61
    %p63 = scmp.ne.s32.totalorder %s54, %s55
    %p64 = scmp.eq.s32.totalorder %s23, 0
    %p65 = por %p63, %p64
    %p66 = scmp.ne.s32.totalorder %s54, %s55
    %p67 = scmp.eq.s32.totalorder %s24, 1
    %p68 = por %p66, %p67
    %p70 = scmp.ne.s32.totalorder %s55, %s69
    %p71 = scmp.eq.s32.totalorder %s24, 0
    %p72 = por %p70, %p71
    %s74 = sadd.s32 %s73, 1
    %p77 = scmp.eq.s32.totalorder %s18, 1
    %p78 = scmp.ne.s32.totalorder %s73, %s75
    %p79 = scmp.eq.s32.totalorder %s18, 0
    %p80 = por %p78, %p79
    %p81 = scmp.ne.s32.totalorder %s73, %s75
    %p82 = scmp.eq.s32.totalorder %s23, 1
    %p83 = por %p81, %p82
    %p84 = scmp.ne.s32.totalorder %s75, %s76
    %p85 = scmp.eq.s32.totalorder %s23, 0
    %p86 = por %p84, %p85
    %p87 = scmp.ne.s32.totalorder %s75, %s76
    %p88 = scmp.eq.s32.totalorder %s24, 1
    %p89 = por %p87, %p88
    %p91 = scmp.ne.s32.totalorder %s76, %s90
    %p92 = scmp.eq.s32.totalorder %s24, 0
    %p93 = por %p91, %p92
    %s95 = sadd.s32 %s94, 1
    %p98 = scmp.eq.s32.totalorder %s18, 1
    %p99 = scmp.ne.s32.totalorder %s94, %s96
    %p100 = scmp.eq.s32.totalorder %s18, 0
    %p101 = por %p99, %p100
    %p102 = scmp.ne.s32.totalorder %s94, %s96
    %p103 = scmp.eq.s32.totalorder %s23, 1
    %p104 = por %p102, %p103
    %p105 = scmp.ne.s32.totalorder %s96, %s97
    %p106 = scmp.eq.s32.totalorder %s23, 0
    %p107 = por %p105, %p106
    %p108 = scmp.ne.s32.totalorder %s96, %s97
    %p109 = scmp.eq.s32.totalorder %s24, 1
    %p110 = por %p108, %p109
    %p112 = scmp.ne.s32.totalorder %s97, %s111
    %p113 = scmp.eq.s32.totalorder %s24, 0
    %p114 = por %p112, %p113
    %s116 = sadd.s32 %s115, 1
    %p119 = scmp.eq.s32.totalorder %s18, 1
    %p120 = scmp.ne.s32.totalorder %s115, %s117
    %p121 = scmp.eq.s32.totalorder %s18, 0
    %p122 = por %p120, %p121
    %p123 = scmp.ne.s32.totalorder %s115, %s117
    %p124 = scmp.eq.s32.totalorder %s23, 1
    %p125 = por %p123, %p124
    %p126 = scmp.ne.s32.totalorder %s117, %s118
    %p127 = scmp.eq.s32.totalorder %s23, 0
    %p128 = por %p126, %p127
    %p129 = scmp.ne.s32.totalorder %s117, %s118
    %p130 = scmp.eq.s32.totalorder %s24, 1
    %p131 = por %p129, %p130
    %p133 = scmp.ne.s32.totalorder %s118, %s132
    %p134 = scmp.eq.s32.totalorder %s24, 0
    %p135 = por %p133, %p134
    %s137 = sadd.s32 %s136, 1
    %p140 = scmp.eq.s32.totalorder %s18, 1
    %p141 = scmp.ne.s32.totalorder %s136, %s138
    %p142 = scmp.eq.s32.totalorder %s18, 0
    %p143 = por %p141, %p142
    %p144 = scmp.ne.s32.totalorder %s136, %s138
    %p145 = scmp.eq.s32.totalorder %s23, 1
    %p146 = por %p144, %p145
    %p147 = scmp.ne.s32.totalorder %s138, %s139
    %p148 = scmp.eq.s32.totalorder %s23, 0
    %p149 = por %p147, %p148
    %p150 = scmp.ne.s32.totalorder %s138, %s139
    %p151 = scmp.eq.s32.totalorder %s24, 1
    %p152 = por %p150, %p151
    %p154 = scmp.ne.s32.totalorder %s139, %s153
    %p155 = scmp.eq.s32.totalorder %s24, 0
    %p156 = por %p154, %p155
    %s158 = sadd.s32 %s157, 1
    %p161 = scmp.eq.s32.totalorder %s18, 1
    %p162 = scmp.ne.s32.totalorder %s157, %s159
    %p163 = scmp.eq.s32.totalorder %s18, 0
    %p164 = por %p162, %p163
    %p165 = scmp.ne.s32.totalorder %s157, %s159
    %p166 = scmp.eq.s32.totalorder %s23, 1
    %p167 = por %p165, %p166
    %p168 = scmp.ne.s32.totalorder %s159, %s160
    %p169 = scmp.eq.s32.totalorder %s23, 0
    %p170 = por %p168, %p169
    %p171 = scmp.ne.s32.totalorder %s159, %s160
    %p172 = scmp.eq.s32.totalorder %s24, 1
    %p173 = por %p171, %p172
    %p175 = scmp.ne.s32.totalorder %s160, %s174
    %p176 = scmp.eq.s32.totalorder %s24, 0
    %p177 = por %p175, %p176
    %s179 = sadd.s32 %s178, 1
    %p182 = scmp.eq.s32.totalorder %s18, 1
    %p183 = scmp.ne.s32.totalorder %s178, %s180
    %p184 = scmp.eq.s32.totalorder %s18, 0
    %p185 = por %p183, %p184
    %p186 = scmp.ne.s32.totalorder %s178, %s180
    %p187 = scmp.eq.s32.totalorder %s23, 1
    %p188 = por %p186, %p187
    %p189 = scmp.ne.s32.totalorder %s180, %s181
    %p190 = scmp.eq.s32.totalorder %s23, 0
    %p191 = por %p189, %p190
    %p192 = scmp.ne.s32.totalorder %s180, %s181
    %p193 = scmp.eq.s32.totalorder %s24, 1
    %p194 = por %p192, %p193
    %p196 = scmp.ne.s32.totalorder %s181, %s195
    %p197 = scmp.eq.s32.totalorder %s24, 0
    %p198 = por %p196, %p197
    %s200 = sadd.s32 %s199, 1
    %p203 = scmp.eq.s32.totalorder %s18, 1
    %p204 = scmp.ne.s32.totalorder %s199, %s201
    %p205 = scmp.eq.s32.totalorder %s18, 0
    %p206 = por %p204, %p205
    %p207 = scmp.ne.s32.totalorder %s199, %s201
    %p208 = scmp.eq.s32.totalorder %s23, 1
    %p209 = por %p207, %p208
    %p210 = scmp.ne.s32.totalorder %s201, %s202
    %p211 = scmp.eq.s32.totalorder %s23, 0
    %p212 = por %p210, %p211
    %p213 = scmp.ne.s32.totalorder %s201, %s202
    %p214 = scmp.eq.s32.totalorder %s24, 1
    %p215 = por %p213, %p214
    %p217 = scmp.ne.s32.totalorder %s202, %s216
    %p218 = scmp.eq.s32.totalorder %s24, 0
    %p219 = por %p217, %p218
    %s221 = sadd.s32 %s220, 1
    %p224 = scmp.eq.s32.totalorder %s18, 1
    %p225 = scmp.ne.s32.totalorder %s220, %s222
    %p226 = scmp.eq.s32.totalorder %s18, 0
    %p227 = por %p225, %p226
    %p228 = scmp.ne.s32.totalorder %s220, %s222
    %p229 = scmp.eq.s32.totalorder %s23, 1
    %p230 = por %p228, %p229
    %p231 = scmp.ne.s32.totalorder %s222, %s223
    %p232 = scmp.eq.s32.totalorder %s23, 0
    %p233 = por %p231, %p232
    %p234 = scmp.ne.s32.totalorder %s222, %s223
    %p235 = scmp.eq.s32.totalorder %s24, 1
    %p236 = por %p234, %p235
    %p238 = scmp.ne.s32.totalorder %s223, %s237
    %p239 = scmp.eq.s32.totalorder %s24, 0
    %p240 = por %p238, %p239
    %s242 = sadd.s32 %s241, 1
    %p245 = scmp.eq.s32.totalorder %s18, 1
    %p246 = scmp.ne.s32.totalorder %s241, %s243
    %p247 = scmp.eq.s32.totalorder %s18, 0
    %p248 = por %p246, %p247
    %p249 = scmp.ne.s32.totalorder %s241, %s243
    %p250 = scmp.eq.s32.totalorder %s23, 1
    %p251 = por %p249, %p250
    %p252 = scmp.ne.s32.totalorder %s243, %s244
    %p253 = scmp.eq.s32.totalorder %s23, 0
    %p254 = por %p252, %p253
    %p255 = scmp.ne.s32.totalorder %s243, %s244
    %p256 = scmp.eq.s32.totalorder %s24, 1
    %p257 = por %p255, %p256
    %p259 = scmp.ne.s32.totalorder %s244, %s258
    %p260 = scmp.eq.s32.totalorder %s24, 0
    %p261 = por %p259, %p260
    %s263 = sadd.s32 %s262, 1
    %p266 = scmp.eq.s32.totalorder %s18, 1
    %p267 = scmp.ne.s32.totalorder %s262, %s264
    %p268 = scmp.eq.s32.totalorder %s18, 0
    %p269 = por %p267, %p268
    %p270 = scmp.ne.s32.totalorder %s262, %s264
    %p271 = scmp.eq.s32.totalorder %s23, 1
    %p272 = por %p270, %p271
    %p273 = scmp.ne.s32.totalorder %s264, %s265
    %p274 = scmp.eq.s32.totalorder %s23, 0
    %p275 = por %p273, %p274
    %p276 = scmp.ne.s32.totalorder %s264, %s265
    %p277 = scmp.eq.s32.totalorder %s24, 1
    %p278 = por %p276, %p277
    %p280 = scmp.ne.s32.totalorder %s265, %s279
    %p281 = scmp.eq.s32.totalorder %s24, 0
    %p282 = por %p280, %p281
    %s283 = ssub.s32 %s18, %s25
    %p284 = scmp.eq.s32.totalorder %s283, 0
    %s286 = sadd.s32 %s285, 1
    %s287 = scalar_select %p284, %s285, %s286
    %p290 = pneg %p284
    %p291 = scmp.eq.s32.totalorder %s18, 1
    %p292 = por %p290, %p291
    %p293 = scmp.ne.s32.totalorder %s285, %s288
    %p294 = scmp.eq.s32.totalorder %s18, 0
    %p295 = por %p293, %p294
    %p296 = scmp.ne.s32.totalorder %s285, %s288
    %p297 = scmp.eq.s32.totalorder %s23, 1
    %p298 = por %p296, %p297
    %p299 = scmp.ne.s32.totalorder %s288, %s289
    %p300 = scmp.eq.s32.totalorder %s23, 0
    %p301 = por %p299, %p300
    %p302 = scmp.ne.s32.totalorder %s288, %s289
    %p303 = scmp.eq.s32.totalorder %s24, 1
    %p304 = por %p302, %p303
    %p306 = scmp.ne.s32.totalorder %s289, %s305
    %p307 = scmp.eq.s32.totalorder %s24, 0
    %p308 = por %p306, %p307
    %p309 = scmp.le.s32.totalorder 1, %s18
    %p310 = scmp.lt.s32.totalorder %s18, 3
    %p311 = pnand %p309, %p310
    %p312 = pneg %p311
    // Predicated region
    $region9: #{_lambda_.4} parent=5 // pred_check
      _
    $region10: #{_lambda_.4} parent=5 // pred_check_branch
      %314 = sbr.rel (%p311) target = $region12
    $region11: #{_lambda_.4} parent=5 // pred_region
      %s315 = ssub.s32 %s18, 1
      // Predicated region
      $region13: #{_lambda_.4} parent=11 // pred_check
        %p316 = pneg %p65
      $region14: #{_lambda_.4} parent=11 // pred_check_branch
        %318 = sbr.rel (%p316) target = $region16
      $region15: #{_lambda_.4} parent=11 // pred_region
        _
      $region16: #{_lambda_.4} parent=11 // pred_fallthru
        _
      // Predicated region
      $region17: #{_lambda_.4} parent=11 // pred_check
        %p319 = pneg %p86
      $region18: #{_lambda_.4} parent=11 // pred_check_branch
        %321 = sbr.rel (%p319) target = $region20
      $region19: #{_lambda_.4} parent=11 // pred_region
        _
      $region20: #{_lambda_.4} parent=11 // pred_fallthru
        _
      // Predicated region
      $region21: #{_lambda_.4} parent=11 // pred_check
        %p322 = pneg %p107
      $region22: #{_lambda_.4} parent=11 // pred_check_branch
        %324 = sbr.rel (%p322) target = $region24
      $region23: #{_lambda_.4} parent=11 // pred_region
        _
      $region24: #{_lambda_.4} parent=11 // pred_fallthru
        _
      // Predicated region
      $region25: #{_lambda_.4} parent=11 // pred_check
        %p325 = pneg %p128
      $region26: #{_lambda_.4} parent=11 // pred_check_branch
        %327 = sbr.rel (%p325) target = $region28
      $region27: #{_lambda_.4} parent=11 // pred_region
        _
      $region28: #{_lambda_.4} parent=11 // pred_fallthru
        _
      // Predicated region
      $region29: #{_lambda_.4} parent=11 // pred_check
        %p328 = pneg %p149
      $region30: #{_lambda_.4} parent=11 // pred_check_branch
        %330 = sbr.rel (%p328) target = $region32
      $region31: #{_lambda_.4} parent=11 // pred_region
        _
      $region32: #{_lambda_.4} parent=11 // pred_fallthru
        _
      // Predicated region
      $region33: #{_lambda_.4} parent=11 // pred_check
        %p331 = pneg %p170
      $region34: #{_lambda_.4} parent=11 // pred_check_branch
        %333 = sbr.rel (%p331) target = $region36
      $region35: #{_lambda_.4} parent=11 // pred_region
        _
      $region36: #{_lambda_.4} parent=11 // pred_fallthru
        _
      // Predicated region
      $region37: #{_lambda_.4} parent=11 // pred_check
        %p334 = pneg %p191
      $region38: #{_lambda_.4} parent=11 // pred_check_branch
        %336 = sbr.rel (%p334) target = $region40
      $region39: #{_lambda_.4} parent=11 // pred_region
        _
      $region40: #{_lambda_.4} parent=11 // pred_fallthru
        _
      // Predicated region
      $region41: #{_lambda_.4} parent=11 // pred_check
        %p337 = pneg %p212
      $region42: #{_lambda_.4} parent=11 // pred_check_branch
        %339 = sbr.rel (%p337) target = $region44
      $region43: #{_lambda_.4} parent=11 // pred_region
        _
      $region44: #{_lambda_.4} parent=11 // pred_fallthru
        _
      // Predicated region
      $region45: #{_lambda_.4} parent=11 // pred_check
        %p340 = pneg %p233
      $region46: #{_lambda_.4} parent=11 // pred_check_branch
        %342 = sbr.rel (%p340) target = $region48
      $region47: #{_lambda_.4} parent=11 // pred_region
        _
      $region48: #{_lambda_.4} parent=11 // pred_fallthru
        _
      // Predicated region
      $region49: #{_lambda_.4} parent=11 // pred_check
        %p343 = pneg %p254
      $region50: #{_lambda_.4} parent=11 // pred_check_branch
        %345 = sbr.rel (%p343) target = $region52
      $region51: #{_lambda_.4} parent=11 // pred_region
        _
      $region52: #{_lambda_.4} parent=11 // pred_fallthru
        _
      // Predicated region
      $region53: #{_lambda_.4} parent=11 // pred_check
        %p346 = pneg %p275
      $region54: #{_lambda_.4} parent=11 // pred_check_branch
        %348 = sbr.rel (%p346) target = $region56
      $region55: #{_lambda_.4} parent=11 // pred_region
        _
      $region56: #{_lambda_.4} parent=11 // pred_fallthru
        _
    $region12: #{_lambda_.4} parent=5 // pred_fallthru
      _
    %p349 = scmp.lt.s32.totalorder %s18, 2
    // Predicated region
    $region57: #{_lambda_.4} parent=5 // pred_check
      %p350 = pneg %p349
    $region58: #{_lambda_.4} parent=5 // pred_check_branch
      %352 = sbr.rel (%p350) target = $region60
    $region59: #{_lambda_.4} parent=5 // pred_region
      // Predicated region
      $region61: #{_lambda_.4} parent=59 // pred_check
        %p353 = pneg %p38
      $region62: #{_lambda_.4} parent=59 // pred_check_branch
        %355 = sbr.rel (%p353) target = $region64
      $region63: #{_lambda_.4} parent=59 // pred_region
        %p356 = scmp.lt.s32.totalorder %s18, 1
        %s357 = scalar_select %p356, %s18, 1
        %s358 = smul.addr %s357, 8
        %s359 = scalar_lea.vmem %s0, %s358
      $region64: #{_lambda_.4} parent=59 // pred_fallthru
        _
    $region60: #{_lambda_.4} parent=5 // pred_fallthru
      _
    %p360 = scmp.le.s32.totalorder 1, %s18
    %p361 = scmp.lt.s32.totalorder %s18, 3
    %p362 = pnand %p360, %p361
    %p363 = pneg %p362
    // Predicated region
    $region65: #{_lambda_.4} parent=5 // pred_check
      _
    $region66: #{_lambda_.4} parent=5 // pred_check_branch
      %365 = sbr.rel (%p362) target = $region68
    $region67: #{_lambda_.4} parent=5 // pred_region
      %s366 = ssub.s32 %s18, 1
      %p367 = scmp.lt.s32.totalorder %s23, 1
      %s368 = scalar_select %p367, %s23, 1
      %s369 = smul.addr %s368, 8
      %s370 = scalar_lea.vmem %s0, %s369
      %p371 = pneg %p44
      %p372 = pneg %p41
      %p373 = pneg %p65
      %p374 = pneg %p62
      %p375 = pneg %p86
      %p376 = pneg %p83
      %p377 = pneg %p107
      %p378 = pneg %p104
      %p379 = pneg %p128
      %p380 = pneg %p125
      %p381 = pneg %p149
      %p382 = pneg %p146
      %p383 = pneg %p170
      %p384 = pneg %p167
      %p385 = pneg %p191
      %p386 = pneg %p188
      %p387 = pneg %p212
      %p388 = pneg %p209
      %p389 = pneg %p233
      %p390 = pneg %p230
      %p391 = pneg %p254
      %p392 = pneg %p251
      %p393 = pneg %p275
      %p394 = pneg %p272
      %p395 = pneg %p301
      %p396 = pneg %p298
      %p397 = scmp.lt.s32.totalorder %s23, 1
      %s398 = scalar_select %p397, %s23, 1
      %s399 = smul.addr %s398, 4
      %s400 = scalar_lea.vmem %s12, %s399
      %p401 = scmp.lt.s32.totalorder %s23, 1
      %s402 = scalar_select %p401, %s23, 1
      %s403 = smul.addr %s402, 8
      %s404 = scalar_lea.vmem %s0, %s403
      %p405 = scmp.lt.s32.totalorder %s23, 1
      %s406 = scalar_select %p405, %s23, 1
      %s407 = smul.addr %s406, 4
      %s408 = scalar_lea.vmem %s12, %s407
      %v410 = vld [vmem:[%s404] sm:$0xff]
      %v411 = vld [vmem:[%s1] sm:$0xff]
      %v412 = vld [vmem:[%s1 + $0x8] sm:$0xff]
      %v413 = vld [vmem:[%s1 + $0x10] sm:$0xff]
      %v414 = vld [vmem:[%s1 + $0x18] sm:$0xff]
      %v415 = vld [vmem:[%s1 + $0x20] sm:$0xff]
      %v416 = vld [vmem:[%s1 + $0x28] sm:$0xff]
      %v417 = vld [vmem:[%s1 + $0x30] sm:$0xff]
      %v418 = vld [vmem:[%s1 + $0x38] sm:$0xff]
      %v419 = vld [vmem:[%s2] sm:$0x1]
      %v420 = vld [vmem:[%s3] sm:$0x1]
      %vm421 = vcmask 523264
      %v422 = vsel %vm421, %v410, 0.0
      %v423 = vrot.slane %v422, 4
      %v424 = vadd.f32 %v422, %v423
      %v425 = vrot.slane %v424, 2
      %v426 = vadd.f32 %v424, %v425
      %v427 = vrot.slane %v426, 1
      %v428 = vadd.f32 %v426, %v427
      %v430 = vsel %vm421, %v428, 0
      %432 = vmatpush.msra.mxu0 0.0
      %433 = vmatpush.msra.mxu0 0.0
      %434 = vmatpush.msra.mxu0 0.0
      %435 = vmatpush.msra.mxu0 0.0
      %436 = vmatpush.msra.mxu0 0.0
      %437 = vmatpush.msra.mxu0 0.0
      %438 = vmatpush.msra.mxu0 0.0
      %439 = vmatpush.msra.mxu0 0.0
      %440 = vmatpush.msra.mxu0 %v418
      %441 = vmatpush.msra.mxu0 %v417
      %442 = vmatpush.msra.mxu0 %v416
      %443 = vmatpush.msra.mxu0 %v415
      %444 = vmatpush.msra.mxu0 %v414
      %445 = vmatpush.msra.mxu0 %v413
      %446 = vmatpush.msra.mxu0 %v412
      %447 = vmatpush.msra.mxu0 %v411
      %448 = vmatmul.f32.gmra.mxu0 %v430
      %v449 = vpop.f32.mrf.mxu0
      %v450 = vadd.f32 0.0, %v449
      %451 = vdwg.mxu0
      %v452 = vmul.f32 %v450, 0.03125
      %vm453 = vcmask 130048
      %v455 = vsel %vm453, %v452, 0
      %v458 = vsel %vm453, %v411, 0
      %v461 = vsel %vm453, %v412, 0
      %v464 = vsel %vm453, %v413, 0
      %v467 = vsel %vm453, %v414, 0
      %v470 = vsel %vm453, %v415, 0
      %v473 = vsel %vm453, %v416, 0
      %v476 = vsel %vm453, %v417, 0
      %v479 = vsel %vm453, %v418, 0
      %481 = vmatpush.xpose.msra.mxu0 0.0
      %482 = vmatpush.xpose.msra.mxu0 0.0
      %483 = vmatpush.xpose.msra.mxu0 0.0
      %484 = vmatpush.xpose.msra.mxu0 0.0
      %485 = vmatpush.xpose.msra.mxu0 0.0
      %486 = vmatpush.xpose.msra.mxu0 0.0
      %487 = vmatpush.xpose.msra.mxu0 0.0
      %488 = vmatpush.xpose.msra.mxu0 0.0
      %489 = vmatpush.xpose.msra.mxu0 %v479
      %490 = vmatpush.xpose.msra.mxu0 %v476
      %491 = vmatpush.xpose.msra.mxu0 %v473
      %492 = vmatpush.xpose.msra.mxu0 %v470
      %493 = vmatpush.xpose.msra.mxu0 %v467
      %494 = vmatpush.xpose.msra.mxu0 %v464
      %495 = vmatpush.xpose.msra.mxu0 %v461
      %496 = vmatpush.xpose.msra.mxu0 %v458
      %497 = vmatmul.f32.gmra.mxu0 %v455
      %v498 = vpop.f32.mrf.mxu0
      %v499 = vadd.f32 0.0, %v498
      %500 = vdwg.mxu0
      %v501 = vperm.slane %v499, 0
      %v502 = vsub.f32 %v410, %v501
      %v503 = vmul.f32 %v502, %v502
      %v504 = vsel %vm421, %v503, 0.0
      %v505 = vrot.slane %v504, 4
      %v506 = vadd.f32 %v504, %v505
      %v507 = vrot.slane %v506, 2
      %v508 = vadd.f32 %v506, %v507
      %v509 = vrot.slane %v508, 1
      %v510 = vadd.f32 %v508, %v509
      %v512 = vsel %vm421, %v510, 0
      %514 = vmatpush.msra.mxu0 0.0
      %515 = vmatpush.msra.mxu0 0.0
      %516 = vmatpush.msra.mxu0 0.0
      %517 = vmatpush.msra.mxu0 0.0
      %518 = vmatpush.msra.mxu0 0.0
      %519 = vmatpush.msra.mxu0 0.0
      %520 = vmatpush.msra.mxu0 0.0
      %521 = vmatpush.msra.mxu0 0.0
      %522 = vmatpush.msra.mxu0 %v418
      %523 = vmatpush.msra.mxu0 %v417
      %524 = vmatpush.msra.mxu0 %v416
      %525 = vmatpush.msra.mxu0 %v415
      %526 = vmatpush.msra.mxu0 %v414
      %527 = vmatpush.msra.mxu0 %v413
      %528 = vmatpush.msra.mxu0 %v412
      %529 = vmatpush.msra.mxu0 %v411
      %530 = vmatmul.f32.gmra.mxu0 %v512
      %v531 = vpop.f32.mrf.mxu0
      %v532 = vadd.f32 0.0, %v531
      %533 = vdwg.mxu0
      %v534 = vmul.f32 %v532, 0.03125
      %v536 = vsel %vm453, %v534, 0
      %538 = vmatpush.xpose.msra.mxu0 0.0
      %539 = vmatpush.xpose.msra.mxu0 0.0
      %540 = vmatpush.xpose.msra.mxu0 0.0
      %541 = vmatpush.xpose.msra.mxu0 0.0
      %542 = vmatpush.xpose.msra.mxu0 0.0
      %543 = vmatpush.xpose.msra.mxu0 0.0
      %544 = vmatpush.xpose.msra.mxu0 0.0
      %545 = vmatpush.xpose.msra.mxu0 0.0
      %546 = vmatpush.xpose.msra.mxu0 %v479
      %547 = vmatpush.xpose.msra.mxu0 %v476
      %548 = vmatpush.xpose.msra.mxu0 %v473
      %549 = vmatpush.xpose.msra.mxu0 %v470
      %550 = vmatpush.xpose.msra.mxu0 %v467
      %551 = vmatpush.xpose.msra.mxu0 %v464
      %552 = vmatpush.xpose.msra.mxu0 %v461
      %553 = vmatpush.xpose.msra.mxu0 %v458
      %554 = vmatmul.f32.gmra.mxu0 %v536
      %v555 = vpop.f32.mrf.mxu0
      %v556 = vadd.f32 1e-05, %v555
      %557 = vdwg.mxu0
      %v558 = vrsqrt.pop %v556
      %v559 = vmul.f32 %v558, %v556
      %v560 = vmul.f32 %v559, %v558
      %v561 = vmul.f32 0.5, %v560
      %v562 = vsub.f32 1.5, %v561
      %v563 = vmul.f32 %v558, %v562
      %vm564 = vweird.f32 %v556
      %vm565 = vweird.f32 %v558
      %vm566 = vmor %vm564, %vm565
      %v567 = vsel %vm566, %v558, %v563
      %v568 = vperm.slane %v567, 0
      %v569 = vmul.f32 %v502, %v568
      %v571 = vperm.slane %v419, 0
      %v573 = vmul.f32 %v569, %v571
      %v575 = vperm.slane %v420, 0
      %v577 = vadd.f32 %v573, %v575
      %v578 = vsub.f32 0.0, %v577
      %v579 = vmul.f32 %v578, 1.442695
      %v580 = vpow.pop %v579
      %v581 = vadd.f32 %v580, 1.0
      %v582 = vrcp.pop %v581
      %v583 = vmul.f32 %v581, %v582
      %v584 = vsub.f32 1.0, %v583
      %v585 = vmul.f32 %v582, %v584
      %v586 = vadd.f32 %v582, %v585
      %vm587 = vweird.f32 %v581
      %vm588 = vweird.f32 %v582
      %vm589 = vmor %vm587, %vm588
      %v590 = vsel %vm589, %v582, %v586
      %v591 = vand.u32 2147483647, %v581
      %vm592 = vcmp.eq.f32.partialorder %v591, 8.507059e+37
      %v593 = vand.u32 %v581, 2147483648
      %v594 = vor.u32 1.1754944e-38, %v593
      %v595 = vsel %vm592, %v594, %v590
      %v596 = vmul.f32 1.0, %v595
      %v597 = vmul.f32 %v577, %v596
      %v598 = vld [vmem:[%s4] sm:$0xf]
      %v599 = vld [vmem:[%s4 + $0x4] sm:$0xf]
      %v600 = vld [vmem:[%s4 + $0x8] sm:$0xf]
      %v601 = vld [vmem:[%s4 + $0xc] sm:$0xf]
      %v602 = vld [vmem:[%s4 + $0x10] sm:$0xf]
      %v603 = vld [vmem:[%s4 + $0x14] sm:$0xf]
      %v604 = vld [vmem:[%s4 + $0x18] sm:$0xf]
      %v605 = vld [vmem:[%s4 + $0x1c] sm:$0xf]
      %v606 = vld [vmem:[%s4 + $0x20] sm:$0xf]
      %v607 = vld [vmem:[%s4 + $0x24] sm:$0xf]
      %v608 = vld [vmem:[%s4 + $0x28] sm:$0xf]
      %v609 = vld [vmem:[%s4 + $0x2c] sm:$0xf]
      %v610 = vld [vmem:[%s4 + $0x30] sm:$0xf]
      %v611 = vld [vmem:[%s4 + $0x34] sm:$0xf]
      %v612 = vld [vmem:[%s4 + $0x38] sm:$0xf]
      %v613 = vld [vmem:[%s4 + $0x3c] sm:$0xf]
      %v614 = vld [vmem:[%s4 + $0x40] sm:$0xf]
      %v615 = vld [vmem:[%s4 + $0x44] sm:$0xf]
      %v616 = vld [vmem:[%s4 + $0x48] sm:$0xf]
      %v617 = vld [vmem:[%s4 + $0x4c] sm:$0xf]
      %v618 = vld [vmem:[%s4 + $0x50] sm:$0xf]
      %v619 = vld [vmem:[%s4 + $0x54] sm:$0xf]
      %v620 = vld [vmem:[%s4 + $0x58] sm:$0xf]
      %v621 = vld [vmem:[%s4 + $0x5c] sm:$0xf]
      %v622 = vld [vmem:[%s5] sm:$0x1]
      %v624 = vrot.slane %v597, 7
      %vm626 = vcmask 1040384
      %v627 = vsel %vm626, 0.0, %v624
      %v628 = vsel %vm626, %v624, 0.0
      %vm631 = vcmask 1046528
      %v632 = vrot.slane %v627, 1
      %v633 = vrot.slane %v628, 1
      %v634 = vsel %vm631, %v632, %v633
      %635 = vrot.lane.b32.xlu0 %v634, 64
      %v636 = vpop.permute.xlu0 %635
      %vm638 = vcmask 1045504
      %v639 = vrot.slane %v627, 2
      %v640 = vrot.slane %v628, 2
      %v641 = vsel %vm638, %v639, %v640
      %v643 = vsel %vm421, %v627, %v636
      %v644 = vpack.c.bf16 %v643, %v643
      %v645 = vpack.c.bf16 %v641, %v641
      %v647 = vperm.slane %v622, 0
      %v673 = vunpack.c.l.b16 %v598
      %v674 = vunpack.c.l.b16 %v599
      %v675 = vunpack.c.l.b16 %v600
      %v676 = vunpack.c.l.b16 %v601
      %v677 = vunpack.c.l.b16 %v602
      %v678 = vunpack.c.l.b16 %v603
      %v679 = vunpack.c.l.b16 %v604
      %v680 = vunpack.c.l.b16 %v605
      %v681 = vunpack.c.l.b16 %v606
      %v682 = vunpack.c.l.b16 %v607
      %v683 = vunpack.c.l.b16 %v608
      %v684 = vunpack.c.l.b16 %v609
      %v685 = vunpack.c.l.b16 %v610
      %v686 = vunpack.c.l.b16 %v611
      %v687 = vunpack.c.l.b16 %v612
      %v688 = vunpack.c.l.b16 %v613
      %v689 = vunpack.c.l.b16 %v614
      %v690 = vunpack.c.l.b16 %v615
      %v691 = vunpack.c.l.b16 %v616
      %v692 = vunpack.c.l.b16 %v617
      %v693 = vunpack.c.l.b16 %v618
      %v694 = vunpack.c.l.b16 %v619
      %v695 = vunpack.c.l.b16 %v620
      %v696 = vunpack.c.l.b16 %v621
      %v697 = vpack.c.b16 %v674, %v673
      %v698 = vpack.c.b16 %v676, %v675
      %v699 = vpack.c.b16 %v678, %v677
      %v700 = vpack.c.b16 %v680, %v679
      %v701 = vpack.c.b16 %v682, %v681
      %v702 = vpack.c.b16 %v684, %v683
      %v703 = vpack.c.b16 %v686, %v685
      %v704 = vpack.c.b16 %v688, %v687
      %v705 = vpack.c.b16 %v690, %v689
      %v706 = vpack.c.b16 %v692, %v691
      %v707 = vpack.c.b16 %v694, %v693
      %v708 = vpack.c.b16 %v696, %v695
      %v722 = vsel %vm421, %v645, 0
      %724 = vmatpush.bf16.msra.mxu0 %v704
      %725 = vmatpush.bf16.msra.mxu0 %v703
      %726 = vmatpush.bf16.msra.mxu0 %v702
      %727 = vmatpush.bf16.msra.mxu0 %v701
      %728 = vmatpush.bf16.msra.mxu0 %v700
      %729 = vmatpush.bf16.msra.mxu0 %v699
      %730 = vmatpush.bf16.msra.mxu0 %v698
      %731 = vmatpush.bf16.msra.mxu0 %v697
      %732 = vmatmul.bf16.gmra.mxu0 %v644
      %v733 = vpop.f32.mrf.mxu0
      %v734 = vadd.f32 %v647, %v733
      %v735 = vpop.f32.mrf.mxu0
      %736 = vdwg.mxu0
      %737 = vmatpush.bf16.msra.mxu0 0
      %738 = vmatpush.bf16.msra.mxu0 0
      %739 = vmatpush.bf16.msra.mxu0 0
      %740 = vmatpush.bf16.msra.mxu0 0
      %741 = vmatpush.bf16.msra.mxu0 %v708
      %742 = vmatpush.bf16.msra.mxu0 %v707
      %743 = vmatpush.bf16.msra.mxu0 %v706
      %744 = vmatpush.bf16.msra.mxu0 %v705
      %745 = vmatmul.bf16.gmra.mxu0 %v722
      %v746 = vpop.f32.mrf.mxu0
      %v747 = vadd.f32 %v734, %v746
      %v748 = vpop.f32.mrf.mxu0
      %749 = vdwg.mxu0
      %v750 = vld [vmem:[%s6] sm:$0x1]
      %v751 = vld [vmem:[%s7] sm:$0x1]
      %v752 = vsel %vm421, %v747, 0.0
      %v753 = vrot.slane %v752, 4
      %v754 = vadd.f32 %v752, %v753
      %v755 = vrot.slane %v754, 2
      %v756 = vadd.f32 %v754, %v755
      %v757 = vrot.slane %v756, 1
      %v758 = vadd.f32 %v756, %v757
      %v760 = vsel %vm421, %v758, 0
      %762 = vmatpush.msra.mxu0 0.0
      %763 = vmatpush.msra.mxu0 0.0
      %764 = vmatpush.msra.mxu0 0.0
      %765 = vmatpush.msra.mxu0 0.0
      %766 = vmatpush.msra.mxu0 0.0
      %767 = vmatpush.msra.mxu0 0.0
      %768 = vmatpush.msra.mxu0 0.0
      %769 = vmatpush.msra.mxu0 0.0
      %770 = vmatpush.msra.mxu0 %v418
      %771 = vmatpush.msra.mxu0 %v417
      %772 = vmatpush.msra.mxu0 %v416
      %773 = vmatpush.msra.mxu0 %v415
      %774 = vmatpush.msra.mxu0 %v414
      %775 = vmatpush.msra.mxu0 %v413
      %776 = vmatpush.msra.mxu0 %v412
      %777 = vmatpush.msra.mxu0 %v411
      %778 = vmatmul.f32.gmra.mxu0 %v760
      %v779 = vpop.f32.mrf.mxu0
      %v780 = vadd.f32 0.0, %v779
      %781 = vdwg.mxu0
      %v782 = vmul.f32 %v780, 0.03125
      %v784 = vsel %vm453, %v782, 0
      %786 = vmatpush.xpose.msra.mxu0 0.0
      %787 = vmatpush.xpose.msra.mxu0 0.0
      %788 = vmatpush.xpose.msra.mxu0 0.0
      %789 = vmatpush.xpose.msra.mxu0 0.0
      %790 = vmatpush.xpose.msra.mxu0 0.0
      %791 = vmatpush.xpose.msra.mxu0 0.0
      %792 = vmatpush.xpose.msra.mxu0 0.0
      %793 = vmatpush.xpose.msra.mxu0 0.0
      %794 = vmatpush.xpose.msra.mxu0 %v479
      %795 = vmatpush.xpose.msra.mxu0 %v476
      %796 = vmatpush.xpose.msra.mxu0 %v473
      %797 = vmatpush.xpose.msra.mxu0 %v470
      %798 = vmatpush.xpose.msra.mxu0 %v467
      %799 = vmatpush.xpose.msra.mxu0 %v464
      %800 = vmatpush.xpose.msra.mxu0 %v461
      %801 = vmatpush.xpose.msra.mxu0 %v458
      %802 = vmatmul.f32.gmra.mxu0 %v784
      %v803 = vpop.f32.mrf.mxu0
      %v804 = vadd.f32 0.0, %v803
      %805 = vdwg.mxu0
      %v806 = vperm.slane %v804, 0
      %v807 = vsub.f32 %v747, %v806
      %v808 = vmul.f32 %v807, %v807
      %v809 = vsel %vm421, %v808, 0.0
      %v810 = vrot.slane %v809, 4
      %v811 = vadd.f32 %v809, %v810
      %v812 = vrot.slane %v811, 2
      %v813 = vadd.f32 %v811, %v812
      %v814 = vrot.slane %v813, 1
      %v815 = vadd.f32 %v813, %v814
      %v817 = vsel %vm421, %v815, 0
      %819 = vmatpush.msra.mxu0 0.0
      %820 = vmatpush.msra.mxu0 0.0
      %821 = vmatpush.msra.mxu0 0.0
      %822 = vmatpush.msra.mxu0 0.0
      %823 = vmatpush.msra.mxu0 0.0
      %824 = vmatpush.msra.mxu0 0.0
      %825 = vmatpush.msra.mxu0 0.0
      %826 = vmatpush.msra.mxu0 0.0
      %827 = vmatpush.msra.mxu0 %v418
      %828 = vmatpush.msra.mxu0 %v417
      %829 = vmatpush.msra.mxu0 %v416
      %830 = vmatpush.msra.mxu0 %v415
      %831 = vmatpush.msra.mxu0 %v414
      %832 = vmatpush.msra.mxu0 %v413
      %833 = vmatpush.msra.mxu0 %v412
      %834 = vmatpush.msra.mxu0 %v411
      %835 = vmatmul.f32.gmra.mxu0 %v817
      %v836 = vpop.f32.mrf.mxu0
      %v837 = vadd.f32 0.0, %v836
      %838 = vdwg.mxu0
      %v839 = vmul.f32 %v837, 0.03125
      %v841 = vsel %vm453, %v839, 0
      %843 = vmatpush.xpose.msra.mxu0 0.0
      %844 = vmatpush.xpose.msra.mxu0 0.0
      %845 = vmatpush.xpose.msra.mxu0 0.0
      %846 = vmatpush.xpose.msra.mxu0 0.0
      %847 = vmatpush.xpose.msra.mxu0 0.0
      %848 = vmatpush.xpose.msra.mxu0 0.0
      %849 = vmatpush.xpose.msra.mxu0 0.0
      %850 = vmatpush.xpose.msra.mxu0 0.0
      %851 = vmatpush.xpose.msra.mxu0 %v479
      %852 = vmatpush.xpose.msra.mxu0 %v476
      %853 = vmatpush.xpose.msra.mxu0 %v473
      %854 = vmatpush.xpose.msra.mxu0 %v470
      %855 = vmatpush.xpose.msra.mxu0 %v467
      %856 = vmatpush.xpose.msra.mxu0 %v464
      %857 = vmatpush.xpose.msra.mxu0 %v461
      %858 = vmatpush.xpose.msra.mxu0 %v458
      %859 = vmatmul.f32.gmra.mxu0 %v841
      %v860 = vpop.f32.mrf.mxu0
      %v861 = vadd.f32 1e-05, %v860
      %862 = vdwg.mxu0
      %v863 = vrsqrt.pop %v861
      %v864 = vmul.f32 %v863, %v861
      %v865 = vmul.f32 %v864, %v863
      %v866 = vmul.f32 0.5, %v865
      %v867 = vsub.f32 1.5, %v866
      %v868 = vmul.f32 %v863, %v867
      %vm869 = vweird.f32 %v861
      %vm870 = vweird.f32 %v863
      %vm871 = vmor %vm869, %vm870
      %v872 = vsel %vm871, %v863, %v868
      %v873 = vperm.slane %v872, 0
      %v874 = vmul.f32 %v807, %v873
      %v876 = vperm.slane %v750, 0
      %v878 = vmul.f32 %v874, %v876
      %v880 = vperm.slane %v751, 0
      %v882 = vadd.f32 %v878, %v880
      %v883 = vsub.f32 0.0, %v882
      %v884 = vmul.f32 %v883, 1.442695
      %v885 = vpow.pop %v884
      %v886 = vadd.f32 %v885, 1.0
      %v887 = vrcp.pop %v886
      %v888 = vmul.f32 %v886, %v887
      %v889 = vsub.f32 1.0, %v888
      %v890 = vmul.f32 %v887, %v889
      %v891 = vadd.f32 %v887, %v890
      %vm892 = vweird.f32 %v886
      %vm893 = vweird.f32 %v887
      %vm894 = vmor %vm892, %vm893
      %v895 = vsel %vm894, %v887, %v891
      %v896 = vand.u32 2147483647, %v886
      %vm897 = vcmp.eq.f32.partialorder %v896, 8.507059e+37
      %v898 = vand.u32 %v886, 2147483648
      %v899 = vor.u32 1.1754944e-38, %v898
      %v900 = vsel %vm897, %v899, %v895
      %v901 = vmul.f32 1.0, %v900
      %v902 = vmul.f32 %v882, %v901
      %v903 = vld [vmem:[%s8] sm:$0xf]
      %v904 = vld [vmem:[%s8 + $0x4] sm:$0xf]
      %v905 = vld [vmem:[%s8 + $0x8] sm:$0xf]
      %v906 = vld [vmem:[%s8 + $0xc] sm:$0xf]
      %v907 = vld [vmem:[%s8 + $0x10] sm:$0xf]
      %v908 = vld [vmem:[%s8 + $0x14] sm:$0xf]
      %v909 = vld [vmem:[%s8 + $0x18] sm:$0xf]
      %v910 = vld [vmem:[%s8 + $0x1c] sm:$0xf]
      %v911 = vld [vmem:[%s8 + $0x20] sm:$0xf]
      %v912 = vld [vmem:[%s8 + $0x24] sm:$0xf]
      %v913 = vld [vmem:[%s8 + $0x28] sm:$0xf]
      %v914 = vld [vmem:[%s8 + $0x2c] sm:$0xf]
      %v915 = vld [vmem:[%s8 + $0x30] sm:$0xf]
      %v916 = vld [vmem:[%s8 + $0x34] sm:$0xf]
      %v917 = vld [vmem:[%s8 + $0x38] sm:$0xf]
      %v918 = vld [vmem:[%s8 + $0x3c] sm:$0xf]
      %v919 = vld [vmem:[%s8 + $0x40] sm:$0xf]
      %v920 = vld [vmem:[%s8 + $0x44] sm:$0xf]
      %v921 = vld [vmem:[%s8 + $0x48] sm:$0xf]
      %v922 = vld [vmem:[%s8 + $0x4c] sm:$0xf]
      %v923 = vld [vmem:[%s8 + $0x50] sm:$0xf]
      %v924 = vld [vmem:[%s8 + $0x54] sm:$0xf]
      %v925 = vld [vmem:[%s8 + $0x58] sm:$0xf]
      %v926 = vld [vmem:[%s8 + $0x5c] sm:$0xf]
      %v927 = vld [vmem:[%s9] sm:$0x1]
      %v929 = vrot.slane %v902, 7
      %v931 = vsel %vm626, 0.0, %v929
      %v932 = vsel %vm626, %v929, 0.0
      %v935 = vrot.slane %v931, 1
      %v936 = vrot.slane %v932, 1
      %v937 = vsel %vm631, %v935, %v936
      %938 = vrot.lane.b32.xlu0 %v937, 64
      %v939 = vpop.permute.xlu0 %938
      %v941 = vrot.slane %v931, 2
      %v942 = vrot.slane %v932, 2
      %v943 = vsel %vm638, %v941, %v942
      %v945 = vsel %vm421, %v931, %v939
      %v946 = vpack.c.bf16 %v945, %v945
      %v947 = vpack.c.bf16 %v943, %v943
      %v949 = vperm.slane %v927, 0
      %v975 = vunpack.c.l.b16 %v903
      %v976 = vunpack.c.l.b16 %v904
      %v977 = vunpack.c.l.b16 %v905
      %v978 = vunpack.c.l.b16 %v906
      %v979 = vunpack.c.l.b16 %v907
      %v980 = vunpack.c.l.b16 %v908
      %v981 = vunpack.c.l.b16 %v909
      %v982 = vunpack.c.l.b16 %v910
      %v983 = vunpack.c.l.b16 %v911
      %v984 = vunpack.c.l.b16 %v912
      %v985 = vunpack.c.l.b16 %v913
      %v986 = vunpack.c.l.b16 %v914
      %v987 = vunpack.c.l.b16 %v915
      %v988 = vunpack.c.l.b16 %v916
      %v989 = vunpack.c.l.b16 %v917
      %v990 = vunpack.c.l.b16 %v918
      %v991 = vunpack.c.l.b16 %v919
      %v992 = vunpack.c.l.b16 %v920
      %v993 = vunpack.c.l.b16 %v921
      %v994 = vunpack.c.l.b16 %v922
      %v995 = vunpack.c.l.b16 %v923
      %v996 = vunpack.c.l.b16 %v924
      %v997 = vunpack.c.l.b16 %v925
      %v998 = vunpack.c.l.b16 %v926
      %v999 = vpack.c.b16 %v976, %v975
      %v1000 = vpack.c.b16 %v978, %v977
      %v1001 = vpack.c.b16 %v980, %v979
      %v1002 = vpack.c.b16 %v982, %v981
      %v1003 = vpack.c.b16 %v984, %v983
      %v1004 = vpack.c.b16 %v986, %v985
      %v1005 = vpack.c.b16 %v988, %v987
      %v1006 = vpack.c.b16 %v990, %v989
      %v1007 = vpack.c.b16 %v992, %v991
      %v1008 = vpack.c.b16 %v994, %v993
      %v1009 = vpack.c.b16 %v996, %v995
      %v1010 = vpack.c.b16 %v998, %v997
      %v1024 = vsel %vm421, %v947, 0
      %1026 = vmatpush.bf16.msra.mxu0 %v1006
      %1027 = vmatpush.bf16.msra.mxu0 %v1005
      %1028 = vmatpush.bf16.msra.mxu0 %v1004
      %1029 = vmatpush.bf16.msra.mxu0 %v1003
      %1030 = vmatpush.bf16.msra.mxu0 %v1002
      %1031 = vmatpush.bf16.msra.mxu0 %v1001
      %1032 = vmatpush.bf16.msra.mxu0 %v1000
      %1033 = vmatpush.bf16.msra.mxu0 %v999
      %1034 = vmatmul.bf16.gmra.mxu0 %v946
      %v1035 = vpop.f32.mrf.mxu0
      %v1036 = vadd.f32 %v949, %v1035
      %v1037 = vpop.f32.mrf.mxu0
      %1038 = vdwg.mxu0
      %1039 = vmatpush.bf16.msra.mxu0 0
      %1040 = vmatpush.bf16.msra.mxu0 0
      %1041 = vmatpush.bf16.msra.mxu0 0
      %1042 = vmatpush.bf16.msra.mxu0 0
      %1043 = vmatpush.bf16.msra.mxu0 %v1010
      %1044 = vmatpush.bf16.msra.mxu0 %v1009
      %1045 = vmatpush.bf16.msra.mxu0 %v1008
      %1046 = vmatpush.bf16.msra.mxu0 %v1007
      %1047 = vmatmul.bf16.gmra.mxu0 %v1024
      %v1048 = vpop.f32.mrf.mxu0
      %v1049 = vadd.f32 %v1036, %v1048
      %v1050 = vpop.f32.mrf.mxu0
      %1051 = vdwg.mxu0
      %v1052 = vadd.f32 %v410, %v1049
      %v1053 = vld [vmem:[%s10] sm:$0xf]
      %v1054 = vld [vmem:[%s10 + $0x4] sm:$0xf]
      %v1055 = vld [vmem:[%s10 + $0x8] sm:$0xf]
      %v1056 = vld [vmem:[%s10 + $0xc] sm:$0xf]
      %v1057 = vld [vmem:[%s10 + $0x10] sm:$0xf]
      %v1058 = vld [vmem:[%s10 + $0x14] sm:$0xf]
      %v1059 = vld [vmem:[%s10 + $0x18] sm:$0xf]
      %v1060 = vld [vmem:[%s10 + $0x1c] sm:$0xf]
      %v1061 = vld [vmem:[%s10 + $0x20] sm:$0xf]
      %v1062 = vld [vmem:[%s10 + $0x24] sm:$0xf]
      %v1063 = vld [vmem:[%s10 + $0x28] sm:$0xf]
      %v1064 = vld [vmem:[%s10 + $0x2c] sm:$0xf]
      %v1065 = vld [vmem:[%s10 + $0x30] sm:$0xf]
      %v1066 = vld [vmem:[%s10 + $0x34] sm:$0xf]
      %v1067 = vld [vmem:[%s10 + $0x38] sm:$0xf]
      %v1068 = vld [vmem:[%s10 + $0x3c] sm:$0xf]
      %v1069 = vld [vmem:[%s10 + $0x40] sm:$0xf]
      %v1070 = vld [vmem:[%s10 + $0x44] sm:$0xf]
      %v1071 = vld [vmem:[%s10 + $0x48] sm:$0xf]
      %v1072 = vld [vmem:[%s10 + $0x4c] sm:$0xf]
      %v1073 = vld [vmem:[%s10 + $0x50] sm:$0xf]
      %v1074 = vld [vmem:[%s10 + $0x54] sm:$0xf]
      %v1075 = vld [vmem:[%s10 + $0x58] sm:$0xf]
      %v1076 = vld [vmem:[%s10 + $0x5c] sm:$0xf]
      %v1077 = vld [vmem:[%s10 + $0x60] sm:$0xf]
      %v1078 = vld [vmem:[%s10 + $0x64] sm:$0xf]
      %v1079 = vld [vmem:[%s10 + $0x68] sm:$0xf]
      %v1080 = vld [vmem:[%s10 + $0x6c] sm:$0xf]
      %v1081 = vld [vmem:[%s10 + $0x70] sm:$0xf]
      %v1082 = vld [vmem:[%s10 + $0x74] sm:$0xf]
      %v1083 = vld [vmem:[%s10 + $0x78] sm:$0xf]
      %v1084 = vld [vmem:[%s10 + $0x7c] sm:$0xf]
      %v1085 = vld [vmem:[%s10 + $0x80] sm:$0xf]
      %v1086 = vld [vmem:[%s10 + $0x84] sm:$0xf]
      %v1087 = vld [vmem:[%s10 + $0x88] sm:$0xf]
      %v1088 = vld [vmem:[%s10 + $0x8c] sm:$0xf]
      %v1089 = vld [vmem:[%s10 + $0x90] sm:$0xf]
      %v1090 = vld [vmem:[%s10 + $0x94] sm:$0xf]
      %v1091 = vld [vmem:[%s10 + $0x98] sm:$0xf]
      %v1092 = vld [vmem:[%s10 + $0x9c] sm:$0xf]
      %v1093 = vld [vmem:[%s11] sm:$0x1]
      %v1095 = vrot.slane %v1052, 6
      %vm1097 = vcmask 1041408
      %v1098 = vsel %vm1097, 0.0, %v1095
      %v1099 = vsel %vm1097, %v1095, 0.0
      %v1102 = vrot.slane %v1098, 1
      %v1103 = vrot.slane %v1099, 1
      %v1104 = vsel %vm631, %v1102, %v1103
      %1105 = vrot.lane.b32.xlu0 %v1104, 64
      %v1106 = vpop.permute.xlu0 %1105
      %v1108 = vrot.slane %v1098, 2
      %v1109 = vrot.slane %v1099, 2
      %v1110 = vsel %vm638, %v1108, %v1109
      %vm1112 = vcmask 1044480
      %v1113 = vrot.slane %v1098, 3
      %v1114 = vrot.slane %v1099, 3
      %v1115 = vsel %vm1112, %v1113, %v1114
      %1116 = vrot.lane.b32.xlu0 %v1115, 64
      %v1117 = vpop.permute.xlu0 %1116
      %vm1119 = vcmask 1043456
      %v1120 = vrot.slane %v1098, 4
      %v1121 = vrot.slane %v1099, 4
      %v1122 = vsel %vm1119, %v1120, %v1121
      %v1124 = vsel %vm421, %v1098, %v1106
      %v1125 = vsel %vm421, %v1110, %v1117
      %v1126 = vpack.c.bf16 %v1124, %v1124
      %v1127 = vpack.c.bf16 %v1125, %v1125
      %v1128 = vpack.c.bf16 %v1122, %v1122
      %v1130 = vperm.slane %v1093, 0
      %v1172 = vunpack.c.l.b16 %v1053
      %v1173 = vunpack.c.l.b16 %v1054
      %v1174 = vunpack.c.l.b16 %v1055
      %v1175 = vunpack.c.l.b16 %v1056
      %v1176 = vunpack.c.l.b16 %v1057
      %v1177 = vunpack.c.l.b16 %v1058
      %v1178 = vunpack.c.l.b16 %v1059
      %v1179 = vunpack.c.l.b16 %v1060
      %v1180 = vunpack.c.l.b16 %v1061
      %v1181 = vunpack.c.l.b16 %v1062
      %v1182 = vunpack.c.l.b16 %v1063
      %v1183 = vunpack.c.l.b16 %v1064
      %v1184 = vunpack.c.l.b16 %v1065
      %v1185 = vunpack.c.l.b16 %v1066
      %v1186 = vunpack.c.l.b16 %v1067
      %v1187 = vunpack.c.l.b16 %v1068
      %v1188 = vunpack.c.l.b16 %v1069
      %v1189 = vunpack.c.l.b16 %v1070
      %v1190 = vunpack.c.l.b16 %v1071
      %v1191 = vunpack.c.l.b16 %v1072
      %v1192 = vunpack.c.l.b16 %v1073
      %v1193 = vunpack.c.l.b16 %v1074
      %v1194 = vunpack.c.l.b16 %v1075
      %v1195 = vunpack.c.l.b16 %v1076
      %v1196 = vunpack.c.l.b16 %v1077
      %v1197 = vunpack.c.l.b16 %v1078
      %v1198 = vunpack.c.l.b16 %v1079
      %v1199 = vunpack.c.l.b16 %v1080
      %v1200 = vunpack.c.l.b16 %v1081
      %v1201 = vunpack.c.l.b16 %v1082
      %v1202 = vunpack.c.l.b16 %v1083
      %v1203 = vunpack.c.l.b16 %v1084
      %v1204 = vunpack.c.l.b16 %v1085
      %v1205 = vunpack.c.l.b16 %v1086
      %v1206 = vunpack.c.l.b16 %v1087
      %v1207 = vunpack.c.l.b16 %v1088
      %v1208 = vunpack.c.l.b16 %v1089
      %v1209 = vunpack.c.l.b16 %v1090
      %v1210 = vunpack.c.l.b16 %v1091
      %v1211 = vunpack.c.l.b16 %v1092
      %v1212 = vpack.c.b16 %v1173, %v1172
      %v1213 = vpack.c.b16 %v1175, %v1174
      %v1214 = vpack.c.b16 %v1177, %v1176
      %v1215 = vpack.c.b16 %v1179, %v1178
      %v1216 = vpack.c.b16 %v1181, %v1180
      %v1217 = vpack.c.b16 %v1183, %v1182
      %v1218 = vpack.c.b16 %v1185, %v1184
      %v1219 = vpack.c.b16 %v1187, %v1186
      %v1220 = vpack.c.b16 %v1189, %v1188
      %v1221 = vpack.c.b16 %v1191, %v1190
      %v1222 = vpack.c.b16 %v1193, %v1192
      %v1223 = vpack.c.b16 %v1195, %v1194
      %v1224 = vpack.c.b16 %v1197, %v1196
      %v1225 = vpack.c.b16 %v1199, %v1198
      %v1226 = vpack.c.b16 %v1201, %v1200
      %v1227 = vpack.c.b16 %v1203, %v1202
      %v1228 = vpack.c.b16 %v1205, %v1204
      %v1229 = vpack.c.b16 %v1207, %v1206
      %v1230 = vpack.c.b16 %v1209, %v1208
      %v1231 = vpack.c.b16 %v1211, %v1210
      %v1253 = vsel %vm421, %v1128, 0
      %1255 = vmatpush.bf16.msra.mxu0 %v1219
      %1256 = vmatpush.bf16.msra.mxu0 %v1218
      %1257 = vmatpush.bf16.msra.mxu0 %v1217
      %1258 = vmatpush.bf16.msra.mxu0 %v1216
      %1259 = vmatpush.bf16.msra.mxu0 %v1215
      %1260 = vmatpush.bf16.msra.mxu0 %v1214
      %1261 = vmatpush.bf16.msra.mxu0 %v1213
      %1262 = vmatpush.bf16.msra.mxu0 %v1212
      %1263 = vmatmul.bf16.gmra.mxu0 %v1126
      %v1264 = vpop.f32.mrf.mxu0
      %v1265 = vadd.f32 %v1130, %v1264
      %v1266 = vpop.f32.mrf.mxu0
      %1267 = vdwg.mxu0
      %1268 = vmatpush.bf16.msra.mxu0 %v1227
      %1269 = vmatpush.bf16.msra.mxu0 %v1226
      %1270 = vmatpush.bf16.msra.mxu0 %v1225
      %1271 = vmatpush.bf16.msra.mxu0 %v1224
      %1272 = vmatpush.bf16.msra.mxu0 %v1223
      %1273 = vmatpush.bf16.msra.mxu0 %v1222
      %1274 = vmatpush.bf16.msra.mxu0 %v1221
      %1275 = vmatpush.bf16.msra.mxu0 %v1220
      %1276 = vmatmul.bf16.gmra.mxu0 %v1127
      %v1277 = vpop.f32.mrf.mxu0
      %v1278 = vadd.f32 %v1265, %v1277
      %v1279 = vpop.f32.mrf.mxu0
      %1280 = vdwg.mxu0
      %1281 = vmatpush.bf16.msra.mxu0 0
      %1282 = vmatpush.bf16.msra.mxu0 0
      %1283 = vmatpush.bf16.msra.mxu0 0
      %1284 = vmatpush.bf16.msra.mxu0 0
      %1285 = vmatpush.bf16.msra.mxu0 %v1231
      %1286 = vmatpush.bf16.msra.mxu0 %v1230
      %1287 = vmatpush.bf16.msra.mxu0 %v1229
      %1288 = vmatpush.bf16.msra.mxu0 %v1228
      %1289 = vmatmul.bf16.gmra.mxu0 %v1253
      %v1290 = vpop.f32.mrf.mxu0
      %v1291 = vadd.f32 %v1278, %v1290
      %v1292 = vpop.f32.mrf.mxu0
      %1293 = vdwg.mxu0
      %v1294 = vlaneseq
      %v1295 = vshrl.u32 %v1294, 7
      %v1296 = vlaneseq
      %v1297 = vand.u32 %v1296, 127
      %v1298 = vmul.u32 %v1295, 2
      %vm1299 = vcmp.eq.s32.totalorder %v1297, %v1298
      %v1300 = vsel %vm1299, 1, 0
      %v1301 = vcvt.s32.f32 %v1300
      %vm1302 = vcmask 64512
      %v1304 = vsel %vm1302, %v1301, 0
      %1306 = vmatpush.msra.mxu0 0.0
      %1307 = vmatpush.msra.mxu0 0.0
      %1308 = vmatpush.msra.mxu0 0.0
      %1309 = vmatpush.msra.mxu0 0.0
      %1310 = vmatpush.msra.mxu0 0.0
      %1311 = vmatpush.msra.mxu0 0.0
      %1312 = vmatpush.msra.mxu0 0.0
      %1313 = vmatpush.msra.mxu0 0.0
      %1314 = vmatpush.msra.mxu0 0.0
      %1315 = vmatpush.msra.mxu0 0.0
      %1316 = vmatpush.msra.mxu0 0.0
      %1317 = vmatpush.msra.mxu0 0.0
      %1318 = vmatpush.msra.mxu0 0.0
      %1319 = vmatpush.msra.mxu0 0.0
      %1320 = vmatpush.msra.mxu0 0.0
      %1321 = vmatpush.msra.mxu0 %v1291
      %1322 = vmatmul.f32.gmra.mxu0 %v1304
      %v1323 = vpop.f32.mrf.mxu0
      %v1324 = vadd.f32 0.0, %v1323
      %1325 = vdwg.mxu0
      %1326 = vst [vmem:[%s408] sm:$0xf] %v1324
      %p1327 = scmp.lt.s32.totalorder %s23, 1
      %s1328 = scalar_select %p1327, %s23, 1
      %s1329 = smul.addr %s1328, 4
      %s1330 = scalar_lea.vmem %s12, %s1329
      // Predicated region
      $region69: #{_lambda_.4} parent=67 // pred_check
        %p1331 = pneg %p298
      $region70: #{_lambda_.4} parent=67 // pred_check_branch
        %1333 = sbr.rel (%p1331) target = $region72
      $region71: #{_lambda_.4} parent=67 // pred_region
        _
      $region72: #{_lambda_.4} parent=67 // pred_fallthru
        _
    $region68: #{_lambda_.4} parent=5 // pred_fallthru
      _
    %p1334 = scmp.le.s32.totalorder 2, %s18
    // Predicated region
    $region73: #{_lambda_.4} parent=5 // pred_check
      %p1335 = pneg %p1334
    $region74: #{_lambda_.4} parent=5 // pred_check_branch
      %1337 = sbr.rel (%p1335) target = $region76
    $region75: #{_lambda_.4} parent=5 // pred_region
      %s1338 = ssub.s32 %s18, 2
      // Predicated region
      $region77: #{_lambda_.4} parent=75 // pred_check
        %p1339 = pneg %p304
      $region78: #{_lambda_.4} parent=75 // pred_check_branch
        %1341 = sbr.rel (%p1339) target = $region80
      $region79: #{_lambda_.4} parent=75 // pred_region
        %p1342 = scmp.lt.s32.totalorder %s24, 1
        %s1343 = scalar_select %p1342, %s24, 1
        %s1344 = smul.addr %s1343, 4
        %s1345 = scalar_lea.vmem %s12, %s1344
      $region80: #{_lambda_.4} parent=75 // pred_fallthru
        _
    $region76: #{_lambda_.4} parent=5 // pred_fallthru
      _
  $region6: #{_lambda_.4} parent=0 // loop_footer
    %s22 = sadd.s32 1, %s18
  $region7: #{_lambda_.4} parent=0 // loop_footer_branch
    %17 = sbr.rel target = $region3
  $region8: #{_lambda_.4} parent=0 // loop_exit
    _

</llo_original>
